<compile_context>
chip_gen: v7x
topology: tpu7x:2x2x1
jax: 0.10.0
libtpu: 0.0.40
codegen_flags: <defaults>
</compile_context>

<pallas_src>
import functools

import jax
import jax.numpy as jnp
from jax.experimental import pallas as pl
from jax.experimental.pallas import tpu as pltpu


def _round_up(x, m):
    return (x + m - 1) // m * m


# ---------------------------------------------------------------------------
# LayerNorm helpers (f32, in-kernel).
# ---------------------------------------------------------------------------
def _layernorm_f32(x, g, b, eps=1e-5):
    mu = jnp.mean(x, axis=-1, keepdims=True)
    var = jnp.mean(jnp.square(x - mu), axis=-1, keepdims=True)
    return (x - mu) * jax.lax.rsqrt(var + eps) * g + b


def _padded_zero_layernorm_f32(y, g, b, n_real, eps=1e-5):
    """LayerNorm over the first n_real columns of y.

    Relies on columns >= n_real being EXACTLY zero (the wrapper zero-pads the
    weight columns and bias), so plain sums give the real-column moments
    E[y] / E[y^2] with no masking.  Padded gamma/beta are zero, so the padded
    output columns stay zero.
    """
    inv_n = 1.0 / float(n_real)
    mu = jnp.sum(y, axis=-1, keepdims=True) * inv_n
    var = jnp.sum(y * y, axis=-1, keepdims=True) * inv_n - mu * mu
    return (y - mu) * jax.lax.rsqrt(var + eps) * g + b


# ---------------------------------------------------------------------------
# Pallas kernel: optional pre-LN -> matmul (MXU, f32 accumulate over a K
# reduction grid axis) -> optional bias -> optional padded-zero post-LN.
# When pre-LN needs a tiled K, the k grid axis is doubled: the first n_k steps
# accumulate LN statistics, the last n_k steps normalize + matmul (two-pass).
# refs: x, w, [side_k (2, bk): pre gamma/beta], [side_n (r, bn): bias/post g/b],
#       out, acc_scratch, [sum_scratch, sq_scratch]
# ---------------------------------------------------------------------------
def _fused_linear_kernel(*refs, use_bias, pre_ln, post_ln, two_pass, n_k,
                         k_real, n_real, mxu_dtype, eps=1e-5):
    it = iter(refs)
    x_ref = next(it)
    w_ref = next(it)
    side_k_ref = next(it) if pre_ln else None
    side_n_ref = next(it) if (use_bias or post_ln) else None
    o_ref = next(it)
    acc_ref = next(it)
    sum_ref = next(it) if two_pass else None
    sq_ref = next(it) if two_pass else None

    k = pl.program_id(2)
    k_last = pl.num_programs(2) - 1

    if two_pass:
        @pl.when(k == 0)
        def _stats_init():
            sum_ref[...] = jnp.zeros_like(sum_ref)
            sq_ref[...] = jnp.zeros_like(sq_ref)

        @pl.when(k < n_k)
        def _stats_acc():
            xf = x_ref[...].astype(jnp.float32)
            sum_ref[...] += jnp.sum(xf, axis=-1, keepdims=True)
            sq_ref[...] += jnp.sum(xf * xf, axis=-1, keepdims=True)

        @pl.when(k == n_k - 1)
        def _stats_fin():
            inv = 1.0 / float(k_real)
            mu = sum_ref[...] * inv
            var = sq_ref[...] * inv - mu * mu
            sum_ref[...] = mu                          # reuse: mean
            sq_ref[...] = jax.lax.rsqrt(var + eps)     # reuse: inv std

    k_init = n_k if two_pass else 0

    @pl.when(k == k_init)
    def _acc_init():
        acc_ref[...] = jnp.zeros_like(acc_ref)

    def _accumulate():
        x = x_ref[...].astype(jnp.float32)
        if pre_ln:
            g = side_k_ref[0:1, :]
            b = side_k_ref[1:2, :]
            if two_pass:
                x = (x - sum_ref[...]) * sq_ref[...] * g + b
            else:
                x = _layernorm_f32(x, g, b, eps)
        # weights are pre-cast to mxu_dtype outside the kernel (halves weight
        # DMA); activations are cast here, accumulation stays f32.
        acc_ref[...] += jnp.dot(x.astype(mxu_dtype), w_ref[...],
                                preferred_element_type=jnp.float32)

    if two_pass:
        pl.when(k >= n_k)(_accumulate)
    else:
        _accumulate()

    @pl.when(k == k_last)
    def _finalize():
        y = acc_ref[...]
        row = 0
        if use_bias:
            y = y + side_n_ref[0:1, :]
            row = 1
        if post_ln:
            y = _padded_zero_layernorm_f32(
                y, side_n_ref[row:row + 1, :], side_n_ref[row + 1:row + 2, :],
                n_real, eps)
        o_ref[...] = y.astype(o_ref.dtype)


def fused_linear(x, w, bias=None, pre_ln=None, post_ln=None, *,
                 out_dtype=None, block_m=512, block_k=1024,
                 single_k_weight_bytes=4 * 1024 * 1024,
                 mxu_dtype=jnp.bfloat16, eps=1e-5):
    """y = post_ln( pre_ln(x) @ w + bias ) as one Pallas TPU kernel.

    x: (M, K), w: (K, N). pre_ln / post_ln are optional (gamma, beta) tuples of
    size K / N.  The wrapper zero-pads N to a lane-dense width (128, or a
    multiple of 256 when N > 128 to feed the full 256-wide MXU on v6e/v7x),
    pads M up to the block size, pre-casts the weights to `mxu_dtype`
    (bf16 everywhere; fp8 e4m3 is an option on v7x), and slices the result.

    K handling: if the whole weight is small (or K <= block_k) it runs as a
    single K block; otherwise K is tiled (bk = block_k, a multiple of 256) and,
    when a pre-LN is present, the kernel runs a two-pass k sweep (statistics,
    then normalize + matmul).
    """
    M, K = x.shape
    Kw, N = w.shape
    assert K == Kw
    use_bias = bias is not None
    has_pre = pre_ln is not None
    has_post = post_ln is not None
    out_dtype = x.dtype if out_dtype is None else out_dtype
    f32 = jnp.float32
    mxu_itemsize = jnp.dtype(mxu_dtype).itemsize

    # ---- N padding / tiling (lane-dense weight columns & output stores) ----
    if N <= 128:
        Np, bn = 128, 128
    else:
        Np, bn = _round_up(N, 256), 256
    if has_post:
        bn = Np  # post-LN needs full-N statistics -> single N block
    if Np != N:
        # zero padding keeps padded output columns exactly zero (load-bearing
        # for the padded-zero post-LN).
        w = jnp.pad(w, ((0, 0), (0, Np - N)))
        if use_bias:
            bias = jnp.pad(bias, (0, Np - N))
        if has_post:
            post_ln = (jnp.pad(post_ln[0], (0, Np - N)),
                       jnp.pad(post_ln[1], (0, Np - N)))
    n_n = Np // bn

    # ---- K tiling: single block when the weight is small (weight DMA'd once
    #      per (m, n) block, no reduction axis); tiled otherwise. ----
    if K <= block_k or K * Np * mxu_itemsize <= single_k_weight_bytes:
        bk, Kp, n_k = K, K, 1          # full-extent K block, no padding needed
    else:
        bk = block_k                   # multiple of 256 for the MXU
        Kp = _round_up(K, bk)
        if Kp != K:
            # zero K padding contributes 0 to both the dot and the LN sums.
            x = jnp.pad(x, ((0, 0), (0, Kp - K)))
            w = jnp.pad(w, ((0, Kp - K), (0, 0)))
            if has_pre:
                pre_ln = (jnp.pad(pre_ln[0], (0, Kp - K)),
                          jnp.pad(pre_ln[1], (0, Kp - K)))
        n_k = Kp // bk
    two_pass = has_pre and n_k > 1
    n_k_grid = 2 * n_k if two_pass else n_k

    # ---- M blocking: >= 2 blocks once M >= 256 so the "parallel" M axis can
    #      be sharded across both v7x TensorCores. ----
    if M < 256:
        bm, Mp = M, M
    else:
        bm = min(block_m, _round_up((M + 1) // 2, 8))
        Mp = _round_up(M, bm)
        if Mp != M:
            x = jnp.pad(x, ((0, Mp - M), (0, 0)))
    n_m = Mp // bm

    # ---- pack side parameters into at most two stacked f32 arrays ----
    args = [x, w.astype(mxu_dtype)]   # weights pre-cast for the MXU
    if two_pass:
        x_map = lambda i, j, k: (i, k % n_k)
        w_map = lambda i, j, k: (jnp.maximum(k - n_k, 0), j)
        sk_map = lambda i, j, k: (0, k % n_k)
    else:
        x_map = lambda i, j, k: (i, k)
        w_map = lambda i, j, k: (k, j)
        sk_map = lambda i, j, k: (0, k)
    in_specs = [pl.BlockSpec((bm, bk), x_map),
                pl.BlockSpec((bk, bn), w_map)]
    # TODO(synk): on v5e, pipeline_mode=pl.Buffered(3) on the weight BlockSpec
    # hides the slower HBM if the weight DMA becomes exposed at real dims.
    r_n = 0
    if has_pre:
        side_k = jnp.stack([pre_ln[0].astype(f32), pre_ln[1].astype(f32)])
        in_specs.append(pl.BlockSpec((2, bk), sk_map))
        args.append(side_k)
    if use_bias or has_post:
        rows = []
        if use_bias:
            rows.append(bias.astype(f32))
        if has_post:
            rows += [post_ln[0].astype(f32), post_ln[1].astype(f32)]
        side_n = jnp.stack(rows)
        r_n = side_n.shape[0]
        in_specs.append(pl.BlockSpec((r_n, bn), lambda i, j, k: (0, j)))
        args.append(side_n)

    scratch = [pltpu.VMEM((bm, bn), jnp.float32)]
    if two_pass:
        scratch += [pltpu.VMEM((bm, 1), jnp.float32),
                    pltpu.VMEM((bm, 1), jnp.float32)]

    # ---- VMEM budget from the actual block footprint (double-buffered inputs
    #      and output + f32 accumulator + side params), with headroom. ----
    footprint = (2 * bm * bk * x.dtype.itemsize
                 + 2 * bk * bn * mxu_itemsize
                 + 2 * bm * bn * jnp.dtype(out_dtype).itemsize
                 + bm * bn * 4)
    if has_pre:
        footprint += 2 * 2 * bk * 4
    if r_n:
        footprint += 2 * r_n * bn * 4
    if two_pass:
        footprint += 2 * bm * 4
    vmem_limit_bytes = int(min(max(footprint + (2 << 20), 16 << 20), 64 << 20))

    kernel = functools.partial(_fused_linear_kernel, use_bias=use_bias,
                               pre_ln=has_pre, post_ln=has_post,
                               two_pass=two_pass, n_k=n_k, k_real=K,
                               n_real=N, mxu_dtype=mxu_dtype, eps=eps)
    out = pl.pallas_call(
        kernel,
        out_shape=jax.ShapeDtypeStruct((Mp, Np), out_dtype),
        grid=(n_m, n_n, n_k_grid),
        in_specs=in_specs,
        out_specs=pl.BlockSpec((bm, bn), lambda i, j, k: (i, j)),
        scratch_shapes=scratch,
        compiler_params=pltpu.CompilerParams(
            dimension_semantics=("parallel", "parallel", "arbitrary"),
            vmem_limit_bytes=vmem_limit_bytes),
    )(*args)
    if Mp != M or Np != N:
        out = out[:M, :N]
    return out


# ---------------------------------------------------------------------------
# Pure-XLA reference for self-testing the tiled / two-pass kernel paths.
# ---------------------------------------------------------------------------
def _reference_fused_linear(x, w, bias=None, pre_ln=None, post_ln=None, eps=1e-5):
    def ln(v, g, b):
        mu = jnp.mean(v, axis=-1, keepdims=True)
        var = jnp.mean(jnp.square(v - mu), axis=-1, keepdims=True)
        return (v - mu) * jax.lax.rsqrt(var + eps) * g + b
    y = x.astype(jnp.float32)
    if pre_ln is not None:
        y = ln(y, pre_ln[0], pre_ln[1])
    y = y @ w.astype(jnp.float32)
    if bias is not None:
        y = y + bias
    if post_ln is not None:
        y = ln(y, post_ln[0], post_ln[1])
    return y


def _self_test_fused_linear():
    """Exercises the paths the toy model does not reach: two-pass pre-LN over a
    tiled K, N tiling, split M blocks, and the padded-zero post-LN."""
    key = jax.random.PRNGKey(1)
    k1, k2, k3, k4, k5, k6 = jax.random.split(key, 6)

    # (a) two-pass pre-LN (tiled K with zero padding), N tiling (n_n=2),
    #     M split into 2 blocks, bias.  f32 MXU path for a tight comparison.
    M, K, N = 300, 1280, 384
    x = jax.random.normal(k1, (M, K), jnp.float32)
    w = 0.05 * jax.random.normal(k2, (K, N), jnp.float32)
    b = 0.05 * jax.random.normal(k3, (N,), jnp.float32)
    g = 1.0 + 0.1 * jax.random.normal(k4, (K,), jnp.float32)
    be = 0.1 * jax.random.normal(k5, (K,), jnp.float32)
    out = fused_linear(x, w, bias=b, pre_ln=(g, be), out_dtype=jnp.float32,
                       block_k=512, single_k_weight_bytes=0,
                       mxu_dtype=jnp.float32)
    ref = _reference_fused_linear(x, w, bias=b, pre_ln=(g, be))
    assert jnp.allclose(out, ref, atol=1e-3, rtol=1e-3), \
        float(jnp.max(jnp.abs(out - ref)))

    # (b) two-pass pre-LN + zero-padded output columns + padded-zero post-LN.
    M2, K2, N2 = 64, 1100, 40
    x2 = jax.random.normal(k6, (M2, K2), jnp.float32)
    w2 = 0.05 * jax.random.normal(k2, (K2, N2), jnp.float32)
    g2 = 1.0 + 0.1 * jax.random.normal(k5, (K2,), jnp.float32)
    be2 = 0.1 * jax.random.normal(k1, (K2,), jnp.float32)
    pg = 1.0 + 0.1 * jax.random.normal(k3, (N2,), jnp.float32)
    pb = 0.1 * jax.random.normal(k4, (N2,), jnp.float32)
    out2 = fused_linear(x2, w2, pre_ln=(g2, be2), post_ln=(pg, pb),
                        out_dtype=jnp.float32, block_k=512,
                        single_k_weight_bytes=0, mxu_dtype=jnp.float32)
    ref2 = _reference_fused_linear(x2, w2, pre_ln=(g2, be2), post_ln=(pg, pb))
    assert jnp.allclose(out2, ref2, atol=1e-3, rtol=1e-3), \
        float(jnp.max(jnp.abs(out2 - ref2)))


# ---------------------------------------------------------------------------
# Parameter construction (deterministic, matches the shapes implied by
# swin_Unet.__init__ at the small hyper-parameters chosen in __main__).
# ---------------------------------------------------------------------------
def init_params(key, *, img_size, patch_size, in_chans, embed_dim,
                num_layers, num_channels, dim_scale):
    keys = jax.random.split(key, 3 + num_layers)
    p = {}
    # PatchEmbed: Conv2d(in_chans, embed_dim, k=patch_size, stride=patch_size) + LayerNorm
    p["patch_proj_w"] = 0.02 * jax.random.normal(
        keys[0], (embed_dim, in_chans, patch_size, patch_size), jnp.float32)
    p["patch_proj_b"] = 0.02 * jax.random.normal(keys[1], (embed_dim,), jnp.float32)
    p["patch_ln_g"] = jnp.ones((embed_dim,), jnp.float32)
    p["patch_ln_b"] = jnp.zeros((embed_dim,), jnp.float32)
    # Encoder patch-merging stages: LayerNorm(4C) + Linear(4C -> 2C, bias=False)
    p["merge"] = []
    dim = embed_dim
    for i in range(num_layers - 1):
        w = 0.02 * jax.random.normal(keys[3 + i], (4 * dim, 2 * dim), jnp.float32)
        p["merge"].append({
            "w": w,
            "ln_g": jnp.ones((4 * dim,), jnp.float32),
            "ln_b": jnp.zeros((4 * dim,), jnp.float32),
        })
        dim *= 2
    # final_conv: Conv2d(embed_dim // dim_scale**2, num_channels, kernel_size=1, bias=False)
    p["final_conv_w"] = 0.02 * jax.random.normal(
        keys[2], (num_channels, embed_dim // dim_scale ** 2, 1, 1), jnp.float32)
    return p


# ---------------------------------------------------------------------------
# Forward pass of swin_Unet
# ---------------------------------------------------------------------------
def swin_unet_forward(params, img, *, img_size, patch_size, embed_dim,
                      num_layers, dim_scale):
    B, Cin, H, W = img.shape
    P = patch_size
    Hout, Wout = H // P, W // P
    act_dtype = jnp.bfloat16  # intermediate activations (halves writeback bytes)

    # ---- PatchEmbed: conv k=s=P expressed as a patch-flatten matmul (Pallas) ----
    patches = (img.reshape(B, Cin, Hout, P, Wout, P)
                  .transpose(0, 2, 4, 1, 3, 5)
                  .reshape(B * Hout * Wout, Cin * P * P))
    w_pe = params["patch_proj_w"].reshape(embed_dim, Cin * P * P).T  # (K, N)
    x = fused_linear(patches, w_pe, bias=params["patch_proj_b"],
                     post_ln=(params["patch_ln_g"], params["patch_ln_b"]),
                     out_dtype=act_dtype)
    x = x.reshape(B, Hout * Wout, embed_dim)

    # ---- Encoder (SwinTransformerDown): skip-connection + patch-merging trunk ----
    # TODO(synk): SwinTransformerDown's window-attention / MLP blocks are omitted —
    # the class source was not provided; only its downsample / skip structure is kept.
    skips = []
    h, wd, dim = Hout, Wout, embed_dim
    for i in range(num_layers):
        skips.append(x)
        if i < num_layers - 1:
            # 2x2 strided gather + channel concat: one small XLA fusion.
            xm = x.reshape(B, h, wd, dim)
            x0 = xm[:, 0::2, 0::2, :]
            x1 = xm[:, 1::2, 0::2, :]
            x2 = xm[:, 0::2, 1::2, :]
            x3 = xm[:, 1::2, 1::2, :]
            xc = jnp.concatenate([x0, x1, x2, x3], axis=-1)
            xc = xc.reshape(B * (h // 2) * (wd // 2), 4 * dim)
            m = params["merge"][i]
            x = fused_linear(xc, m["w"], pre_ln=(m["ln_g"], m["ln_b"]),
                             out_dtype=act_dtype)
            h, wd, dim = h // 2, wd // 2, dim * 2
            x = x.reshape(B, h * wd, dim)

    # ---- Decoder (the rearrange/concat loop of swin_Unet.forward), i > 0 ----
    for i in range(num_layers - 1, 0, -1):
        x = jnp.concatenate([x, skips[i]], axis=-1)
        Bx, L2, C2 = x.shape
        # 'b n (p d) -> b (n p) d', p=4
        x = x.reshape(Bx, L2 * 4, C2 // 4)

    # ---- i == 0 pixel-shuffle rearrange fused with the final 1x1 conv ----
    # The 1x1 conv mixes only the innermost `c` of the (p1 p2 c) channel split, so it is
    # applied BEFORE the rearrange as the block-diagonal matmul kron(I_{p1*p2}, w^T):
    # lane-dense K/N tiles instead of (B*H*W, 2) @ (2, 2).
    Bx, L, C = x.shape
    num_patch = img_size // patch_size
    ds2 = dim_scale ** 2
    num_channels = params["final_conv_w"].shape[0]
    c_in = C // ds2
    w_fc = params["final_conv_w"].reshape(num_channels, c_in)       # (oc, ci)
    w_big = jnp.kron(jnp.eye(ds2, dtype=jnp.float32), w_fc.T)        # (C, ds2*oc)
    y = fused_linear(x.reshape(Bx * L, C), w_big, out_dtype=jnp.float32)
    # rows = (b, Hp, Wp); cols = (p1, p2, oc)  ->  NCHW
    y = y.reshape(Bx, num_patch, num_patch, dim_scale, dim_scale, num_channels)
    y = y.transpose(0, 5, 1, 3, 2, 4).reshape(
        Bx, num_channels, num_patch * dim_scale, num_patch * dim_scale)
    return y


# ---------------------------------------------------------------------------
if __name__ == "__main__":
    # Validate the tiled / two-pass kernel paths against a pure-XLA reference
    # (these paths are not reached at the toy model shapes below).
    _self_test_fused_linear()

    # Small, self-consistent hyper-parameters:
    #   img_size=32, patch_size=4 -> 8x8 patches; 3 encoder stages;
    #   embed_dim=32 (divisible by dim_scale**2=16); num_channels=2.
    B = 2
    img_size = 32
    patch_size = 4
    in_chans = 3
    embed_dim = 32
    num_layers = 3
    num_channels = 2
    dim_scale = 4

    key = jax.random.PRNGKey(0)
    k_img, k_par = jax.random.split(key)
    img = jax.random.normal(k_img, (B, in_chans, img_size, img_size), jnp.float32)
    params = init_params(k_par, img_size=img_size, patch_size=patch_size,
                         in_chans=in_chans, embed_dim=embed_dim,
                         num_layers=num_layers, num_channels=num_channels,
                         dim_scale=dim_scale)

    fwd = jax.jit(functools.partial(
        swin_unet_forward, img_size=img_size, patch_size=patch_size,
        embed_dim=embed_dim, num_layers=num_layers, dim_scale=dim_scale))

    out = fwd(params, img)
    out = jax.block_until_ready(out)
    assert out.shape == (B, num_channels, img_size, img_size), out.shape
    assert jnp.all(jnp.isfinite(out))
    print("KERNEL_OK")
</pallas_src>

<mosaic_0001>
module attributes {stable_mosaic.version = 11 : i64} {
  func.func @_fused_linear_kernel(%arg0: i32, %arg1: i32, %arg2: i32, %arg3: memref<152x512xf32, #tpu.memory_space<vmem>>, %arg4: memref<512x256xf32, #tpu.memory_space<vmem>>, %arg5: memref<2x512xf32, #tpu.memory_space<vmem>>, %arg6: memref<1x256xf32, #tpu.memory_space<vmem>>, %arg7: memref<152x256xf32, #tpu.memory_space<vmem>>, %arg8: memref<152x256xf32, #tpu.memory_space<vmem>>, %arg9: memref<152x1xf32, #tpu.memory_space<vmem>>, %arg10: memref<152x1xf32, #tpu.memory_space<vmem>>) attributes {dimension_semantics = [#tpu.dimension_semantics<parallel>, #tpu.dimension_semantics<parallel>, #tpu.dimension_semantics<arbitrary>], iteration_bounds = array<i64: 2, 2, 6>, scalar_prefetch = 0 : i64, scratch_operands = 3 : i64, tpu.core_type = #tpu.core_type<tc>, window_params = [{transform_indices = @transform_0, window_bounds = array<i64: 152, 512>}, {transform_indices = @transform_1, window_bounds = array<i64: 512, 256>}, {transform_indices = @transform_2, window_bounds = array<i64: 2, 512>}, {transform_indices = @transform_3, window_bounds = array<i64: 1, 256>}, {transform_indices = @transform_4, window_bounds = array<i64: 152, 256>}]} {
    %c0_i32 = arith.constant 0 : i32
    %0 = arith.cmpi eq, %arg2, %c0_i32 : i32
    %1 = arith.extui %0 : i1 to i32
    %c0_i32_0 = arith.constant 0 : i32
    %2 = arith.cmpi ne, %1, %c0_i32_0 : i32
    scf.if %2 {
      %cst = arith.constant 0.000000e+00 : f32
      %18 = vector.broadcast %cst : f32 to vector<152x1xf32>
      %c0 = arith.constant 0 : index
      %c0_8 = arith.constant 0 : index
      %19 = vector.load %arg9[%c0, %c0_8] : memref<152x1xf32, #tpu.memory_space<vmem>>, vector<152x1xf32>
      tpu.vector_store %arg9[%c0, %c0_8], %18 {strides = array<i32>} : memref<152x1xf32, #tpu.memory_space<vmem>>, vector<152x1xf32>,
      %cst_9 = arith.constant 0.000000e+00 : f32
      %20 = vector.broadcast %cst_9 : f32 to vector<152x1xf32>
      %c0_10 = arith.constant 0 : index
      %c0_11 = arith.constant 0 : index
      %21 = vector.load %arg10[%c0_10, %c0_11] : memref<152x1xf32, #tpu.memory_space<vmem>>, vector<152x1xf32>
      tpu.vector_store %arg10[%c0_10, %c0_11], %20 {strides = array<i32>} : memref<152x1xf32, #tpu.memory_space<vmem>>, vector<152x1xf32>,
    } else {
    }
    %c3_i32 = arith.constant 3 : i32
    %3 = arith.cmpi slt, %arg2, %c3_i32 : i32
    %4 = arith.extui %3 : i1 to i32
    %c0_i32_1 = arith.constant 0 : i32
    %5 = arith.cmpi ne, %4, %c0_i32_1 : i32
    scf.if %5 {
      %c0 = arith.constant 0 : index
      %c0_8 = arith.constant 0 : index
      %18 = vector.load %arg3[%c0, %c0_8] : memref<152x512xf32, #tpu.memory_space<vmem>>, vector<152x512xf32>
      %c0_9 = arith.constant 0 : index
      %c0_10 = arith.constant 0 : index
      %19 = vector.load %arg9[%c0_9, %c0_10] : memref<152x1xf32, #tpu.memory_space<vmem>>, vector<152x1xf32>
      %cst = arith.constant dense<0.000000e+00> : vector<152xf32>
      %20 = vector.multi_reduction <add>, %18, %cst [1] : vector<152x512xf32> to vector<152xf32>
      %21 = vector.shape_cast %20 : vector<152xf32> to vector<152x1xf32>
      %22 = arith.addf %19, %21 : vector<152x1xf32>
      %c0_11 = arith.constant 0 : index
      %c0_12 = arith.constant 0 : index
      %23 = vector.load %arg9[%c0_11, %c0_12] : memref<152x1xf32, #tpu.memory_space<vmem>>, vector<152x1xf32>
      tpu.vector_store %arg9[%c0_11, %c0_12], %22 {strides = array<i32>} : memref<152x1xf32, #tpu.memory_space<vmem>>, vector<152x1xf32>,
      %c0_13 = arith.constant 0 : index
      %c0_14 = arith.constant 0 : index
      %24 = vector.load %arg10[%c0_13, %c0_14] : memref<152x1xf32, #tpu.memory_space<vmem>>, vector<152x1xf32>
      %25 = arith.mulf %18, %18 : vector<152x512xf32>
      %cst_15 = arith.constant dense<0.000000e+00> : vector<152xf32>
      %26 = vector.multi_reduction <add>, %25, %cst_15 [1] : vector<152x512xf32> to vector<152xf32>
      %27 = vector.shape_cast %26 : vector<152xf32> to vector<152x1xf32>
      %28 = arith.addf %24, %27 : vector<152x1xf32>
      %c0_16 = arith.constant 0 : index
      %c0_17 = arith.constant 0 : index
      %29 = vector.load %arg10[%c0_16, %c0_17] : memref<152x1xf32, #tpu.memory_space<vmem>>, vector<152x1xf32>
      tpu.vector_store %arg10[%c0_16, %c0_17], %28 {strides = array<i32>} : memref<152x1xf32, #tpu.memory_space<vmem>>, vector<152x1xf32>,
    } else {
    }
    %c2_i32 = arith.constant 2 : i32
    %6 = arith.cmpi eq, %arg2, %c2_i32 : i32
    %7 = arith.extui %6 : i1 to i32
    %c0_i32_2 = arith.constant 0 : i32
    %8 = arith.cmpi ne, %7, %c0_i32_2 : i32
    scf.if %8 {
      %c0 = arith.constant 0 : index
      %c0_8 = arith.constant 0 : index
      %18 = vector.load %arg9[%c0, %c0_8] : memref<152x1xf32, #tpu.memory_space<vmem>>, vector<152x1xf32>
      %cst = arith.constant 7.812500e-04 : f32
      %19 = vector.broadcast %cst : f32 to vector<152x1xf32>
      %20 = arith.mulf %18, %19 : vector<152x1xf32>
      %c0_9 = arith.constant 0 : index
      %c0_10 = arith.constant 0 : index
      %21 = vector.load %arg10[%c0_9, %c0_10] : memref<152x1xf32, #tpu.memory_space<vmem>>, vector<152x1xf32>
      %cst_11 = arith.constant 7.812500e-04 : f32
      %22 = vector.broadcast %cst_11 : f32 to vector<152x1xf32>
      %23 = arith.mulf %21, %22 : vector<152x1xf32>
      %24 = arith.mulf %20, %20 : vector<152x1xf32>
      %25 = arith.subf %23, %24 : vector<152x1xf32>
      %c0_12 = arith.constant 0 : index
      %c0_13 = arith.constant 0 : index
      %26 = vector.load %arg9[%c0_12, %c0_13] : memref<152x1xf32, #tpu.memory_space<vmem>>, vector<152x1xf32>
      tpu.vector_store %arg9[%c0_12, %c0_13], %20 {strides = array<i32>} : memref<152x1xf32, #tpu.memory_space<vmem>>, vector<152x1xf32>,
      %cst_14 = arith.constant 9.99999974E-6 : f32
      %27 = vector.broadcast %cst_14 : f32 to vector<152x1xf32>
      %28 = arith.addf %25, %27 : vector<152x1xf32>
      %29 = math.rsqrt %28 : vector<152x1xf32>
      %c0_15 = arith.constant 0 : index
      %c0_16 = arith.constant 0 : index
      %30 = vector.load %arg10[%c0_15, %c0_16] : memref<152x1xf32, #tpu.memory_space<vmem>>, vector<152x1xf32>
      tpu.vector_store %arg10[%c0_15, %c0_16], %29 {strides = array<i32>} : memref<152x1xf32, #tpu.memory_space<vmem>>, vector<152x1xf32>,
    } else {
    }
    %c3_i32_3 = arith.constant 3 : i32
    %9 = arith.cmpi eq, %arg2, %c3_i32_3 : i32
    %10 = arith.extui %9 : i1 to i32
    %c0_i32_4 = arith.constant 0 : i32
    %11 = arith.cmpi ne, %10, %c0_i32_4 : i32
    scf.if %11 {
      %cst = arith.constant 0.000000e+00 : f32
      %18 = vector.broadcast %cst : f32 to vector<152x256xf32>
      %c0 = arith.constant 0 : index
      %c0_8 = arith.constant 0 : index
      %19 = vector.load %arg8[%c0, %c0_8] : memref<152x256xf32, #tpu.memory_space<vmem>>, vector<152x256xf32>
      tpu.vector_store %arg8[%c0, %c0_8], %18 {strides = array<i32>} : memref<152x256xf32, #tpu.memory_space<vmem>>, vector<152x256xf32>,
    } else {
    }
    %c3_i32_5 = arith.constant 3 : i32
    %12 = arith.cmpi sge, %arg2, %c3_i32_5 : i32
    %13 = arith.extui %12 : i1 to i32
    %c0_i32_6 = arith.constant 0 : i32
    %14 = arith.cmpi ne, %13, %c0_i32_6 : i32
    scf.if %14 {
      %c0 = arith.constant 0 : index
      %c0_8 = arith.constant 0 : index
      %18 = vector.load %arg3[%c0, %c0_8] : memref<152x512xf32, #tpu.memory_space<vmem>>, vector<152x512xf32>
      %c0_9 = arith.constant 0 : index
      %c0_10 = arith.constant 0 : index
      %19 = vector.load %arg5[%c0_9, %c0_10] : memref<2x512xf32, #tpu.memory_space<vmem>>, vector<1x512xf32>
      %c1 = arith.constant 1 : index
      %c0_11 = arith.constant 0 : index
      %20 = vector.load %arg5[%c1, %c0_11] : memref<2x512xf32, #tpu.memory_space<vmem>>, vector<1x512xf32>
      %c0_12 = arith.constant 0 : index
      %c0_13 = arith.constant 0 : index
      %21 = vector.load %arg9[%c0_12, %c0_13] : memref<152x1xf32, #tpu.memory_space<vmem>>, vector<152x1xf32>
      %22 = vector.broadcast %21 : vector<152x1xf32> to vector<152x512xf32>
      %23 = arith.subf %18, %22 : vector<152x512xf32>
      %c0_14 = arith.constant 0 : index
      %c0_15 = arith.constant 0 : index
      %24 = vector.load %arg10[%c0_14, %c0_15] : memref<152x1xf32, #tpu.memory_space<vmem>>, vector<152x1xf32>
      %25 = vector.broadcast %24 : vector<152x1xf32> to vector<152x512xf32>
      %26 = arith.mulf %23, %25 : vector<152x512xf32>
      %27 = vector.broadcast %19 : vector<1x512xf32> to vector<152x512xf32>
      %28 = arith.mulf %26, %27 : vector<152x512xf32>
      %29 = vector.broadcast %20 : vector<1x512xf32> to vector<152x512xf32>
      %30 = arith.addf %28, %29 : vector<152x512xf32>
      %c0_16 = arith.constant 0 : index
      %c0_17 = arith.constant 0 : index
      %31 = vector.load %arg8[%c0_16, %c0_17] : memref<152x256xf32, #tpu.memory_space<vmem>>, vector<152x256xf32>
      %c0_18 = arith.constant 0 : index
      %c0_19 = arith.constant 0 : index
      %32 = vector.load %arg4[%c0_18, %c0_19] : memref<512x256xf32, #tpu.memory_space<vmem>>, vector<512x256xf32>
      %cst = arith.constant dense<0.000000e+00> : vector<152x256xf32>
      %33 = tpu.matmul %30, %32, %cst {dimension_numbers = #tpu.dot_dimension_numbers<[1], [0], [0], [1], [0, 0, 1, 1], [], []>} : vector<152x512xf32>, vector<512x256xf32>, vector<152x256xf32> -> vector<152x256xf32>
      %34 = arith.addf %31, %33 : vector<152x256xf32>
      %c0_20 = arith.constant 0 : index
      %c0_21 = arith.constant 0 : index
      %35 = vector.load %arg8[%c0_20, %c0_21] : memref<152x256xf32, #tpu.memory_space<vmem>>, vector<152x256xf32>
      tpu.vector_store %arg8[%c0_20, %c0_21], %34 {strides = array<i32>} : memref<152x256xf32, #tpu.memory_space<vmem>>, vector<152x256xf32>,
    } else {
    }
    %c5_i32 = arith.constant 5 : i32
    %15 = arith.cmpi eq, %arg2, %c5_i32 : i32
    %16 = arith.extui %15 : i1 to i32
    %c0_i32_7 = arith.constant 0 : i32
    %17 = arith.cmpi ne, %16, %c0_i32_7 : i32
    scf.if %17 {
      %c0 = arith.constant 0 : index
      %c0_8 = arith.constant 0 : index
      %18 = vector.load %arg8[%c0, %c0_8] : memref<152x256xf32, #tpu.memory_space<vmem>>, vector<152x256xf32>
      %c0_9 = arith.constant 0 : index
      %c0_10 = arith.constant 0 : index
      %19 = vector.load %arg6[%c0_9, %c0_10] : memref<1x256xf32, #tpu.memory_space<vmem>>, vector<1x256xf32>
      %20 = vector.broadcast %19 : vector<1x256xf32> to vector<152x256xf32>
      %21 = arith.addf %18, %20 : vector<152x256xf32>
      %c0_11 = arith.constant 0 : index
      %c0_12 = arith.constant 0 : index
      %22 = vector.load %arg7[%c0_11, %c0_12] : memref<152x256xf32, #tpu.memory_space<vmem>>, vector<152x256xf32>
      tpu.vector_store %arg7[%c0_11, %c0_12], %21 {strides = array<i32>} : memref<152x256xf32, #tpu.memory_space<vmem>>, vector<152x256xf32>,
    } else {
    }
    return
  }
  func.func @transform_0(%arg0: i32, %arg1: i32, %arg2: i32) -> (i32, i32) {
    %c3_i32 = arith.constant 3 : i32
    %c0_i32 = arith.constant 0 : i32
    %0 = arith.cmpi eq, %c3_i32, %c0_i32 : i32
    %c1_i32 = arith.constant 1 : i32
    %1 = arith.select %0, %c1_i32, %c3_i32 : i32
    %2 = arith.remsi %arg2, %1 : i32
    %c0_i32_0 = arith.constant 0 : i32
    %3 = arith.cmpi ne, %2, %c0_i32_0 : i32
    %c0_i32_1 = arith.constant 0 : i32
    %4 = arith.cmpi slt, %2, %c0_i32_1 : i32
    %c0_i32_2 = arith.constant 0 : i32
    %5 = arith.cmpi slt, %1, %c0_i32_2 : i32
    %6 = arith.xori %4, %5 : i1
    %7 = arith.andi %6, %3 : i1
    %8 = arith.addi %2, %1 : i32
    %9 = arith.select %7, %8, %2 : i32
    %c0_i32_3 = arith.constant 0 : i32
    return %arg0, %9 : i32, i32
  }
  func.func @transform_1(%arg0: i32, %arg1: i32, %arg2: i32) -> (i32, i32) {
    %c3_i32 = arith.constant 3 : i32
    %0 = arith.subi %arg2, %c3_i32 : i32
    %c0_i32 = arith.constant 0 : i32
    %1 = arith.maxsi %0, %c0_i32 : i32
    %c0_i32_0 = arith.constant 0 : i32
    return %1, %arg1 : i32, i32
  }
  func.func @transform_2(%arg0: i32, %arg1: i32, %arg2: i32) -> (i32, i32) {
    %c3_i32 = arith.constant 3 : i32
    %c0_i32 = arith.constant 0 : i32
    %0 = arith.cmpi eq, %c3_i32, %c0_i32 : i32
    %c1_i32 = arith.constant 1 : i32
    %1 = arith.select %0, %c1_i32, %c3_i32 : i32
    %2 = arith.remsi %arg2, %1 : i32
    %c0_i32_0 = arith.constant 0 : i32
    %3 = arith.cmpi ne, %2, %c0_i32_0 : i32
    %c0_i32_1 = arith.constant 0 : i32
    %4 = arith.cmpi slt, %2, %c0_i32_1 : i32
    %c0_i32_2 = arith.constant 0 : i32
    %5 = arith.cmpi slt, %1, %c0_i32_2 : i32
    %6 = arith.xori %4, %5 : i1
    %7 = arith.andi %6, %3 : i1
    %8 = arith.addi %2, %1 : i32
    %9 = arith.select %7, %8, %2 : i32
    %c0_i32_3 = arith.constant 0 : i32
    %c0_i32_4 = arith.constant 0 : i32
    return %c0_i32_3, %9 : i32, i32
  }
  func.func @transform_3(%arg0: i32, %arg1: i32, %arg2: i32) -> (i32, i32) {
    %c0_i32 = arith.constant 0 : i32
    %c0_i32_0 = arith.constant 0 : i32
    return %c0_i32, %arg1 : i32, i32
  }
  func.func @transform_4(%arg0: i32, %arg1: i32, %arg2: i32) -> (i32, i32) {
    %c0_i32 = arith.constant 0 : i32
    return %arg0, %arg1 : i32, i32
  }
}

</mosaic_0001>

<llo_original>
// kernel: tpu_custom_call.1
$region0: #{tpu_custom_call.1}
  #allocation0 [shape = 'u32[]', space=smem, size = 0x4, offset = 0x4, fixed_abs, tag = 'smem constant byte address 0x4 - core index']
  #allocation1 [shape = 'u32[144,128]{1,0:T(1,128)}', space=vmem, size = 0x12000, scoped, tag = 'internal scratch']
  #allocation2 [shape = 'f32[152,256]{1,0:T(8,128)}', space=vmem, size = 0x26000, scoped, tag = 'scratch operand']
  #allocation3 [shape = 'f32[152,1]{1,0:T(8,128)}', space=vmem, size = 0x13000, scoped, tag = 'scratch operand']
  #allocation4 [shape = 'f32[152,1]{1,0:T(8,128)}', space=vmem, size = 0x13000, scoped, tag = 'scratch operand']
  %s0 = inlined_call_operand.hbm [shape: f32[304,1536], index: 0, kind: input, shape index: {}]
  %s1 = inlined_call_operand.hbm [shape: f32[1536,512], index: 1, kind: input, shape index: {}]
  %s2 = inlined_call_operand.hbm [shape: f32[2,1536], index: 2, kind: input, shape index: {}]
  %s3 = inlined_call_operand.hbm [shape: f32[1,512], index: 3, kind: input, shape index: {}]
  %s4 = inlined_call_operand.hbm [shape: f32[304,512], index: 4, kind: output, shape index: {}]
  %s5 = sld [smem:[#allocation0]]
  $region89: #{tpu_custom_call.1} parent=0
    _
  %s7 = ssub.s32 1, %s5
  %s8 = scalar_select 0, %s7, %s5
  $region1: #{tpu_custom_call.1} parent=0
    #allocation5 [shape = 'u8[622592]{0}', space=vmem, size = 0x98000, scoped, tag = 'input window, operand 0']
    #allocation6 [shape = 's32[2]{0}', space=sflag, size = 0x8, scoped, tag = 'scoped memory for tpu_custom_call.1']
    #allocation7 [shape = 's32[2]{0}', space=sflag, size = 0x8, scoped, tag = 'scoped memory for tpu_custom_call.1']
    #allocation8 [shape = 'u8[1048576]{0}', space=vmem, size = 0x100000, scoped, tag = 'input window, operand 1']
    #allocation9 [shape = 's32[2]{0}', space=sflag, size = 0x8, scoped, tag = 'scoped memory for tpu_custom_call.1']
    #allocation10 [shape = 'u8[8192]{0}', space=vmem, size = 0x2000, scoped, tag = 'input window, operand 2']
    #allocation11 [shape = 'u8[2048]{0}', space=vmem, size = 0x800, scoped, tag = 'input window, operand 3']
    #allocation12 [shape = 's32[2]{0}', space=sflag, size = 0x8, scoped, tag = 'scoped memory for tpu_custom_call.1']
    #allocation13 [shape = 'u8[311296]{0}', space=vmem, size = 0x4c000, scoped, tag = 'output window, operand 0']
    %9 = vsyncpa [#allocation6], 0
    %s10 = scalar_lea.sflag [#allocation6], 1
    %11 = vsyncpa %s10, 0
    %12 = vsyncpa [#allocation9], 0
    %s13 = scalar_lea.sflag [#allocation9], 1
    %14 = vsyncpa %s13, 0
    %15 = vsyncpa [#allocation12], 0
    %s16 = scalar_lea.sflag [#allocation12], 1
    %17 = vsyncpa %s16, 0
    %18 = vsyncpa [#allocation7], 0
    %s19 = scalar_lea.sflag [#allocation7], 1
    %20 = vsyncpa %s19, 0
    loop: start=0, step=1, limit=26
    $region2: #{tpu_custom_call.1} parent=1 // loop_pre_header
      _
    $region3: #{tpu_custom_call.1} parent=1 // loop_header
      %s22 = sphi 0, %s26
      %p23 = scmp.ge.s32.totalorder %s22, 26
      %s29 = sphi 0, %s48
      %s30 = sphi 0, %s44
      %s31 = sphi 0, %s40
      %s32 = sphi 0, %s29
      %s33 = sphi 0, %s30
      %s34 = sphi 0, %s31
      %s35 = sphi 0, %s32
      %s36 = sphi 0, %s33
      %s37 = sphi 0, %s34
      %s79 = sphi 0, %s81
      %s82 = sphi 0, %s79
      %s83 = sphi 0, %s82
      %s99 = sphi 0, %s83
      %s113 = sphi 0, %s115
      %s116 = sphi 0, %s113
      %s117 = sphi 0, %s116
      %s133 = sphi 0, %s117
      %s165 = sphi 0, %s167
      %s168 = sphi 0, %s165
      %s169 = sphi 0, %s168
      %s185 = sphi 0, %s169
      %s191 = sphi 0, %s193
      %s194 = sphi 0, %s191
      %s195 = sphi 0, %s194
      %s211 = sphi 0, %s195
      %s219 = sphi 0, %s221
      %s222 = sphi 0, %s219
      %s223 = sphi 0, %s222
      %s239 = sphi 0, %s223
    $region4: #{tpu_custom_call.1} parent=1 // loop_header_branch
      %25 = sbr.rel (%p23) target = $region8
    $region5: #{tpu_custom_call.1} parent=1 // loop_body
      %s27 = ssub.s32 %s22, 1
      %s28 = ssub.s32 %s22, 2
      %s38 = sadd.s32 1, %s31
      %p39 = scmp.ge.s32.totalorder %s38, 6
      %s40 = scalar_select %p39, 0, %s38
      %s41 = sadd.s32 1, %s30
      %s42 = scalar_select %p39, %s41, %s30
      %p43 = scmp.ge.s32.totalorder %s42, 2
      %s44 = scalar_select %p43, 0, %s42
      %s45 = sadd.s32 1, %s29
      %s46 = scalar_select %p43, %s45, %s29
      %p47 = scmp.ge.s32.totalorder %s46, 2
      %s48 = scalar_select %p47, 0, %s46
      %p49 = scmp.lt.s32.totalorder %s31, 0
      %s50 = ssub.s32 0, %s31
      %s51 = scalar_select %p49, %s50, %s31
      %s52 = sdiv.u32.pop %s51, 3
      %s53 = srem.u32.pop %s51, 3
      %s54 = ssub.s32 0, %s53
      %s55 = scalar_select %p49, %s54, %s53
      %p56 = scmp.ne.s32.totalorder %s55, 0
      %p57 = scmp.lt.s32.totalorder %s55, 0
      %p58 = pnand %p57, %p56
      %p59 = pneg %p58
      %s60 = sadd.s32 %s55, 3
      %s61 = scalar_select %p59, %s60, %s55
      %p62 = scmp.lt.s32.totalorder %s40, 0
      %s63 = ssub.s32 0, %s40
      %s64 = scalar_select %p62, %s63, %s40
      %s65 = sdiv.u32.pop %s64, 3
      %s66 = srem.u32.pop %s64, 3
      %s67 = ssub.s32 0, %s66
      %s68 = scalar_select %p62, %s67, %s66
      %p69 = scmp.ne.s32.totalorder %s68, 0
      %p70 = scmp.lt.s32.totalorder %s68, 0
      %p71 = pnand %p70, %p69
      %p72 = pneg %p71
      %s73 = sadd.s32 %s68, 3
      %s74 = scalar_select %p72, %s73, %s68
      %s75 = ssub.s32 %s29, %s48
      %s76 = ssub.s32 %s61, %s74
      %s77 = sor.u32 %s75, %s76
      %p78 = scmp.eq.s32.totalorder %s77, 0
      %s80 = sadd.s32 %s79, 1
      %s81 = scalar_select %p78, %s79, %s80
      %p84 = pneg %p78
      %p85 = scmp.eq.s32.totalorder %s22, 23
      %p86 = por %p84, %p85
      %p87 = scmp.ne.s32.totalorder %s79, %s82
      %p88 = scmp.eq.s32.totalorder %s22, 0
      %p89 = por %p87, %p88
      %p90 = scmp.ne.s32.totalorder %s79, %s82
      %p91 = scmp.eq.s32.totalorder %s27, 23
      %p92 = por %p90, %p91
      %p93 = scmp.ne.s32.totalorder %s82, %s83
      %p94 = scmp.eq.s32.totalorder %s27, 0
      %p95 = por %p93, %p94
      %p96 = scmp.ne.s32.totalorder %s82, %s83
      %p97 = scmp.eq.s32.totalorder %s28, 23
      %p98 = por %p96, %p97
      %p100 = scmp.ne.s32.totalorder %s83, %s99
      %p101 = scmp.eq.s32.totalorder %s28, 0
      %p102 = por %p100, %p101
      %s103 = ssub.s32 %s31, 3
      %p104 = scmp.gt.s32.totalorder %s103, 0
      %s105 = scalar_select %p104, %s103, 0
      %s106 = ssub.s32 %s40, 3
      %p107 = scmp.gt.s32.totalorder %s106, 0
      %s108 = scalar_select %p107, %s106, 0
      %s109 = ssub.s32 %s105, %s108
      %s110 = ssub.s32 %s30, %s44
      %s111 = sor.u32 %s109, %s110
      %p112 = scmp.eq.s32.totalorder %s111, 0
      %s114 = sadd.s32 %s113, 1
      %s115 = scalar_select %p112, %s113, %s114
      %p118 = pneg %p112
      %p119 = scmp.eq.s32.totalorder %s22, 23
      %p120 = por %p118, %p119
      %p121 = scmp.ne.s32.totalorder %s113, %s116
      %p122 = scmp.eq.s32.totalorder %s22, 0
      %p123 = por %p121, %p122
      %p124 = scmp.ne.s32.totalorder %s113, %s116
      %p125 = scmp.eq.s32.totalorder %s27, 23
      %p126 = por %p124, %p125
      %p127 = scmp.ne.s32.totalorder %s116, %s117
      %p128 = scmp.eq.s32.totalorder %s27, 0
      %p129 = por %p127, %p128
      %p130 = scmp.ne.s32.totalorder %s116, %s117
      %p131 = scmp.eq.s32.totalorder %s28, 23
      %p132 = por %p130, %p131
      %p134 = scmp.ne.s32.totalorder %s117, %s133
      %p135 = scmp.eq.s32.totalorder %s28, 0
      %p136 = por %p134, %p135
      %p137 = scmp.lt.s32.totalorder %s31, 0
      %s138 = ssub.s32 0, %s31
      %s139 = scalar_select %p137, %s138, %s31
      %s140 = sdiv.u32.pop %s139, 3
      %s141 = srem.u32.pop %s139, 3
      %s142 = ssub.s32 0, %s141
      %s143 = scalar_select %p137, %s142, %s141
      %p144 = scmp.ne.s32.totalorder %s143, 0
      %p145 = scmp.lt.s32.totalorder %s143, 0
      %p146 = pnand %p145, %p144
      %p147 = pneg %p146
      %s148 = sadd.s32 %s143, 3
      %s149 = scalar_select %p147, %s148, %s143
      %p150 = scmp.lt.s32.totalorder %s40, 0
      %s151 = ssub.s32 0, %s40
      %s152 = scalar_select %p150, %s151, %s40
      %s153 = sdiv.u32.pop %s152, 3
      %s154 = srem.u32.pop %s152, 3
      %s155 = ssub.s32 0, %s154
      %s156 = scalar_select %p150, %s155, %s154
      %p157 = scmp.ne.s32.totalorder %s156, 0
      %p158 = scmp.lt.s32.totalorder %s156, 0
      %p159 = pnand %p158, %p157
      %p160 = pneg %p159
      %s161 = sadd.s32 %s156, 3
      %s162 = scalar_select %p160, %s161, %s156
      %s163 = ssub.s32 %s149, %s162
      %p164 = scmp.eq.s32.totalorder %s163, 0
      %s166 = sadd.s32 %s165, 1
      %s167 = scalar_select %p164, %s165, %s166
      %p170 = pneg %p164
      %p171 = scmp.eq.s32.totalorder %s22, 23
      %p172 = por %p170, %p171
      %p173 = scmp.ne.s32.totalorder %s165, %s168
      %p174 = scmp.eq.s32.totalorder %s22, 0
      %p175 = por %p173, %p174
      %p176 = scmp.ne.s32.totalorder %s165, %s168
      %p177 = scmp.eq.s32.totalorder %s27, 23
      %p178 = por %p176, %p177
      %p179 = scmp.ne.s32.totalorder %s168, %s169
      %p180 = scmp.eq.s32.totalorder %s27, 0
      %p181 = por %p179, %p180
      %p182 = scmp.ne.s32.totalorder %s168, %s169
      %p183 = scmp.eq.s32.totalorder %s28, 23
      %p184 = por %p182, %p183
      %p186 = scmp.ne.s32.totalorder %s169, %s185
      %p187 = scmp.eq.s32.totalorder %s28, 0
      %p188 = por %p186, %p187
      %s189 = ssub.s32 %s30, %s44
      %p190 = scmp.eq.s32.totalorder %s189, 0
      %s192 = sadd.s32 %s191, 1
      %s193 = scalar_select %p190, %s191, %s192
      %p196 = pneg %p190
      %p197 = scmp.eq.s32.totalorder %s22, 23
      %p198 = por %p196, %p197
      %p199 = scmp.ne.s32.totalorder %s191, %s194
      %p200 = scmp.eq.s32.totalorder %s22, 0
      %p201 = por %p199, %p200
      %p202 = scmp.ne.s32.totalorder %s191, %s194
      %p203 = scmp.eq.s32.totalorder %s27, 23
      %p204 = por %p202, %p203
      %p205 = scmp.ne.s32.totalorder %s194, %s195
      %p206 = scmp.eq.s32.totalorder %s27, 0
      %p207 = por %p205, %p206
      %p208 = scmp.ne.s32.totalorder %s194, %s195
      %p209 = scmp.eq.s32.totalorder %s28, 23
      %p210 = por %p208, %p209
      %p212 = scmp.ne.s32.totalorder %s195, %s211
      %p213 = scmp.eq.s32.totalorder %s28, 0
      %p214 = por %p212, %p213
      %s215 = ssub.s32 %s29, %s48
      %s216 = ssub.s32 %s30, %s44
      %s217 = sor.u32 %s215, %s216
      %p218 = scmp.eq.s32.totalorder %s217, 0
      %s220 = sadd.s32 %s219, 1
      %s221 = scalar_select %p218, %s219, %s220
      %p224 = pneg %p218
      %p225 = scmp.eq.s32.totalorder %s22, 23
      %p226 = por %p224, %p225
      %p227 = scmp.ne.s32.totalorder %s219, %s222
      %p228 = scmp.eq.s32.totalorder %s22, 0
      %p229 = por %p227, %p228
      %p230 = scmp.ne.s32.totalorder %s219, %s222
      %p231 = scmp.eq.s32.totalorder %s27, 23
      %p232 = por %p230, %p231
      %p233 = scmp.ne.s32.totalorder %s222, %s223
      %p234 = scmp.eq.s32.totalorder %s27, 0
      %p235 = por %p233, %p234
      %p236 = scmp.ne.s32.totalorder %s222, %s223
      %p237 = scmp.eq.s32.totalorder %s28, 23
      %p238 = por %p236, %p237
      %p240 = scmp.ne.s32.totalorder %s223, %s239
      %p241 = scmp.eq.s32.totalorder %s28, 0
      %p242 = por %p240, %p241
      %p243 = scmp.le.s32.totalorder 1, %s22
      %p244 = scmp.lt.s32.totalorder %s22, 25
      %p245 = pnand %p243, %p244
      %p246 = pneg %p245
      // Predicated region
      $region9: #{tpu_custom_call.1} parent=5 // pred_check
        _
      $region10: #{tpu_custom_call.1} parent=5 // pred_check_branch
        %248 = sbr.rel (%p245) target = $region12
      $region11: #{tpu_custom_call.1} parent=5 // pred_region
        %s249 = ssub.s32 %s22, 1
      $region12: #{tpu_custom_call.1} parent=5 // pred_fallthru
        _
      %p250 = scmp.lt.s32.totalorder %s22, 24
      // Predicated region
      $region13: #{tpu_custom_call.1} parent=5 // pred_check
        %p251 = pneg %p250
      $region14: #{tpu_custom_call.1} parent=5 // pred_check_branch
        %253 = sbr.rel (%p251) target = $region16
      $region15: #{tpu_custom_call.1} parent=5 // pred_region
        // Predicated region
        $region17: #{tpu_custom_call.1} parent=15 // pred_check
          %p254 = pneg %p89
        $region18: #{tpu_custom_call.1} parent=15 // pred_check_branch
          %256 = sbr.rel (%p254) target = $region20
        $region19: #{tpu_custom_call.1} parent=15 // pred_region
          %s257 = sand.u32 %s79, 1
          %s258 = scalar_lea.sflag [#allocation6], %s257
          %s259 = sand.u32 %s79, 1
          %s260 = smul.addr %s259, 608
          %s261 = scalar_lea.vmem [#allocation5], %s260
          %p262 = scmp.lt.s32.totalorder %s31, 0
          %s263 = ssub.s32 0, %s31
          %s264 = scalar_select %p262, %s263, %s31
          %s265 = sdiv.u32.pop %s264, 3
          %s266 = srem.u32.pop %s264, 3
          %s267 = ssub.s32 0, %s266
          %s268 = scalar_select %p262, %s267, %s266
          %p269 = scmp.ne.s32.totalorder %s268, 0
          %p270 = scmp.lt.s32.totalorder %s268, 0
          %p271 = pnand %p270, %p269
          %p272 = pneg %p271
          %s273 = sadd.s32 %s268, 3
          %s274 = scalar_select %p272, %s273, %s268
          %s275 = smul.u32 19, %s29
          %s276 = smul.u32 4, %s274
          %s278 = ssub.s32 9728, 9728
          %279 = vsyncadd %s258, %s278
          %s280 = smul.addr %s275, 12
          %s281 = sadd.s32 %s276, %s280
          %s282 = smul.addr %s281, 128
          %s283 = scalar_lea.hbm %s0, %s282
          %s284 = sshll.u32 %s261, 4
          %s285 = int_to_ptr.vmem [resolvable:$true] %s284
          %290 = dma.hbm_to_vmem [thread:$0]  %s283, 9728, %s285, %s258, 1536, 512, 32
        $region20: #{tpu_custom_call.1} parent=15 // pred_fallthru
          _
        // Predicated region
        $region21: #{tpu_custom_call.1} parent=15 // pred_check
          %p291 = pneg %p123
        $region22: #{tpu_custom_call.1} parent=15 // pred_check_branch
          %293 = sbr.rel (%p291) target = $region24
        $region23: #{tpu_custom_call.1} parent=15 // pred_region
          %s294 = sand.u32 %s22, 1
          %s295 = scalar_lea.sflag [#allocation9], %s294
          %s296 = sand.u32 %s113, 1
          %s297 = smul.addr %s296, 1024
          %s298 = scalar_lea.vmem [#allocation8], %s297
          %s299 = ssub.s32 %s31, 3
          %p300 = scmp.gt.s32.totalorder %s299, 0
          %s301 = scalar_select %p300, %s299, 0
          %s302 = smul.u32 64, %s301
          %s303 = smul.u32 2, %s30
          %s305 = ssub.s32 16384, 16384
          %306 = vsyncadd %s295, %s305
          %s307 = smul.addr %s302, 4
          %s308 = sadd.s32 %s303, %s307
          %s309 = smul.addr %s308, 128
          %s310 = scalar_lea.hbm %s1, %s309
          %s311 = sshll.u32 %s298, 4
          %s312 = int_to_ptr.vmem [resolvable:$true] %s311
          %317 = dma.hbm_to_vmem [thread:$0]  %s310, 16384, %s312, %s295, 512, 256, 16
        $region24: #{tpu_custom_call.1} parent=15 // pred_fallthru
          _
        // Predicated region
        $region25: #{tpu_custom_call.1} parent=15 // pred_check
          %p318 = pneg %p175
        $region26: #{tpu_custom_call.1} parent=15 // pred_check_branch
          %320 = sbr.rel (%p318) target = $region28
        $region27: #{tpu_custom_call.1} parent=15 // pred_region
          %s321 = sand.u32 %s22, 1
          %s322 = scalar_lea.sflag [#allocation9], %s321
          %s323 = sand.u32 %s165, 1
          %s324 = smul.addr %s323, 8
          %s325 = scalar_lea.vmem [#allocation10], %s324
          %p326 = scmp.lt.s32.totalorder %s31, 0
          %s327 = ssub.s32 0, %s31
          %s328 = scalar_select %p326, %s327, %s31
          %s329 = sdiv.u32.pop %s328, 3
          %s330 = srem.u32.pop %s328, 3
          %s331 = ssub.s32 0, %s330
          %s332 = scalar_select %p326, %s331, %s330
          %p333 = scmp.ne.s32.totalorder %s332, 0
          %p334 = scmp.lt.s32.totalorder %s332, 0
          %p335 = pnand %p334, %p333
          %p336 = pneg %p335
          %s337 = sadd.s32 %s332, 3
          %s338 = scalar_select %p336, %s337, %s332
          %s339 = smul.u32 4, %s338
          %s341 = ssub.s32 128, 128
          %342 = vsyncadd %s322, %s341
          %s343 = smul.addr %s339, 32
          %s344 = scalar_lea.hbm %s2, %s343
          %s346 = sshll.u32 %s325, 4
          %s347 = int_to_ptr.vmem [resolvable:$true] %s346
          %349 = dma.hbm_to_vmem [thread:$0]  %s344, 128, %s347, %s322
        $region28: #{tpu_custom_call.1} parent=15 // pred_fallthru
          _
        // Predicated region
        $region29: #{tpu_custom_call.1} parent=15 // pred_check
          %p350 = pneg %p201
        $region30: #{tpu_custom_call.1} parent=15 // pred_check_branch
          %352 = sbr.rel (%p350) target = $region32
        $region31: #{tpu_custom_call.1} parent=15 // pred_region
          %s353 = sand.u32 %s191, 1
          %s354 = scalar_lea.sflag [#allocation12], %s353
          %s355 = sand.u32 %s191, 1
          %s356 = smul.addr %s355, 2
          %s357 = scalar_lea.vmem [#allocation11], %s356
          %s358 = smul.u32 2, %s30
          %s360 = ssub.s32 32, 32
          %361 = vsyncadd %s354, %s360
          %s362 = smul.addr %s358, 16
          %s363 = scalar_lea.hbm %s3, %s362
          %s365 = sshll.u32 %s357, 4
          %s366 = int_to_ptr.vmem [resolvable:$true] %s365
          %368 = dma.hbm_to_vmem [thread:$0]  %s363, 32, %s366, %s354
        $region32: #{tpu_custom_call.1} parent=15 // pred_fallthru
          _
      $region16: #{tpu_custom_call.1} parent=5 // pred_fallthru
        _
      %p369 = scmp.le.s32.totalorder 1, %s22
      %p370 = scmp.lt.s32.totalorder %s22, 25
      %p371 = pnand %p369, %p370
      %p372 = pneg %p371
      // Predicated region
      $region33: #{tpu_custom_call.1} parent=5 // pred_check
        _
      $region34: #{tpu_custom_call.1} parent=5 // pred_check_branch
        %374 = sbr.rel (%p371) target = $region36
      $region35: #{tpu_custom_call.1} parent=5 // pred_region
        %s375 = ssub.s32 %s22, 1
        %s376 = sand.u32 %s82, 1
        %s377 = scalar_lea.sflag [#allocation6], %s376
        %s378 = sand.u32 %s82, 1
        %s379 = smul.addr %s378, 608
        %s380 = scalar_lea.vmem [#allocation5], %s379
        // Predicated region
        $region37: #{tpu_custom_call.1} parent=35 // pred_check
          %p381 = pneg %p95
        $region38: #{tpu_custom_call.1} parent=35 // pred_check_branch
          %383 = sbr.rel (%p381) target = $region40
        $region39: #{tpu_custom_call.1} parent=35 // pred_region
          %384 = dma.done %s377, 9728
        $region40: #{tpu_custom_call.1} parent=35 // pred_fallthru
          _
        %s385 = sand.u32 %s27, 1
        %s386 = scalar_lea.sflag [#allocation9], %s385
        %s387 = sand.u32 %s116, 1
        %s388 = smul.addr %s387, 1024
        %s389 = scalar_lea.vmem [#allocation8], %s388
        // Predicated region
        $region41: #{tpu_custom_call.1} parent=35 // pred_check
          %p390 = pneg %p129
        $region42: #{tpu_custom_call.1} parent=35 // pred_check_branch
          %392 = sbr.rel (%p390) target = $region44
        $region43: #{tpu_custom_call.1} parent=35 // pred_region
          %393 = dma.done %s386, 16384
        $region44: #{tpu_custom_call.1} parent=35 // pred_fallthru
          _
        %s394 = sand.u32 %s27, 1
        %s395 = scalar_lea.sflag [#allocation9], %s394
        %s396 = sand.u32 %s168, 1
        %s397 = smul.addr %s396, 8
        %s398 = scalar_lea.vmem [#allocation10], %s397
        // Predicated region
        $region45: #{tpu_custom_call.1} parent=35 // pred_check
          %p399 = pneg %p181
        $region46: #{tpu_custom_call.1} parent=35 // pred_check_branch
          %401 = sbr.rel (%p399) target = $region48
        $region47: #{tpu_custom_call.1} parent=35 // pred_region
          %402 = dma.done %s395, 128
        $region48: #{tpu_custom_call.1} parent=35 // pred_fallthru
          _
        %s403 = sand.u32 %s194, 1
        %s404 = scalar_lea.sflag [#allocation12], %s403
        %s405 = sand.u32 %s194, 1
        %s406 = smul.addr %s405, 2
        %s407 = scalar_lea.vmem [#allocation11], %s406
        // Predicated region
        $region49: #{tpu_custom_call.1} parent=35 // pred_check
          %p408 = pneg %p207
        $region50: #{tpu_custom_call.1} parent=35 // pred_check_branch
          %410 = sbr.rel (%p408) target = $region52
        $region51: #{tpu_custom_call.1} parent=35 // pred_region
          %411 = dma.done %s404, 32
        $region52: #{tpu_custom_call.1} parent=35 // pred_fallthru
          _
        %s412 = sand.u32 %s82, 1
        %s413 = scalar_lea.sflag [#allocation6], %s412
        %s414 = sand.u32 %s82, 1
        %s415 = smul.addr %s414, 608
        %s416 = scalar_lea.vmem [#allocation5], %s415
        %p417 = pneg %p95
        %p418 = pneg %p92
        %s419 = sand.u32 %s27, 1
        %s420 = scalar_lea.sflag [#allocation9], %s419
        %s421 = sand.u32 %s116, 1
        %s422 = smul.addr %s421, 1024
        %s423 = scalar_lea.vmem [#allocation8], %s422
        %p424 = pneg %p129
        %p425 = pneg %p126
        %s426 = sand.u32 %s27, 1
        %s427 = scalar_lea.sflag [#allocation9], %s426
        %s428 = sand.u32 %s168, 1
        %s429 = smul.addr %s428, 8
        %s430 = scalar_lea.vmem [#allocation10], %s429
        %p431 = pneg %p181
        %p432 = pneg %p178
        %s433 = sand.u32 %s194, 1
        %s434 = scalar_lea.sflag [#allocation12], %s433
        %s435 = sand.u32 %s194, 1
        %s436 = smul.addr %s435, 2
        %s437 = scalar_lea.vmem [#allocation11], %s436
        %p438 = pneg %p207
        %p439 = pneg %p204
        %p440 = pneg %p235
        %p441 = pneg %p232
        %s442 = sand.u32 %s222, 1
        %s443 = scalar_lea.sflag [#allocation7], %s442
        %s444 = sand.u32 %s222, 1
        %s445 = smul.addr %s444, 304
        %s446 = scalar_lea.vmem [#allocation13], %s445
        %p447 = scmp.lt.s32.totalorder %s34, 0
        %s448 = ssub.s32 0, %s34
        %s449 = scalar_select %p447, %s448, %s34
        %s450 = sdiv.u32.pop %s449, 3
        %s451 = srem.u32.pop %s449, 3
        %s452 = ssub.s32 0, %s451
        %s453 = scalar_select %p447, %s452, %s451
        %p454 = scmp.ne.s32.totalorder %s453, 0
        %p455 = scmp.lt.s32.totalorder %s453, 0
        %p456 = pnand %p455, %p454
        %p457 = pneg %p456
        %s458 = sadd.s32 %s453, 3
        %s459 = scalar_select %p457, %s458, %s453
        %s460 = smul.u32 19, %s32
        %s461 = smul.u32 4, %s459
        %s462 = ssub.s32 %s34, 3
        %p463 = scmp.gt.s32.totalorder %s462, 0
        %s464 = scalar_select %p463, %s462, 0
        %s465 = smul.u32 64, %s464
        %s466 = smul.u32 2, %s33
        %p467 = scmp.lt.s32.totalorder %s34, 0
        %s468 = ssub.s32 0, %s34
        %s469 = scalar_select %p467, %s468, %s34
        %s470 = sdiv.u32.pop %s469, 3
        %s471 = srem.u32.pop %s469, 3
        %s472 = ssub.s32 0, %s471
        %s473 = scalar_select %p467, %s472, %s471
        %p474 = scmp.ne.s32.totalorder %s473, 0
        %p475 = scmp.lt.s32.totalorder %s473, 0
        %p476 = pnand %p475, %p474
        %p477 = pneg %p476
        %s478 = sadd.s32 %s473, 3
        %s479 = scalar_select %p477, %s478, %s473
        %s480 = smul.u32 4, %s479
        %s481 = smul.u32 2, %s33
        %s482 = smul.u32 19, %s32
        %s483 = smul.u32 2, %s33
        %p484 = scmp.eq.s32.totalorder %s34, 0
        // Predicated region
        $region53: #{tpu_custom_call.1} parent=35 // pred_check
          %p485 = pneg %p484
        $region54: #{tpu_custom_call.1} parent=35 // pred_check_branch
          %487 = sbr.rel (%p485) target = $region56
        $region55: #{tpu_custom_call.1} parent=35 // pred_region
          %vm488 = vcmask 7168
          %489 = vst.msk [vmem:[#allocation3] sm:$0xff] %vm488, 0.0
          %490 = vst.msk [vmem:[#allocation3 + $0x8] sm:$0xff] %vm488, 0.0
          %491 = vst.msk [vmem:[#allocation3 + $0x10] sm:$0xff] %vm488, 0.0
          %492 = vst.msk [vmem:[#allocation3 + $0x18] sm:$0xff] %vm488, 0.0
          %493 = vst.msk [vmem:[#allocation3 + $0x20] sm:$0xff] %vm488, 0.0
          %494 = vst.msk [vmem:[#allocation3 + $0x28] sm:$0xff] %vm488, 0.0
          %495 = vst.msk [vmem:[#allocation3 + $0x30] sm:$0xff] %vm488, 0.0
          %496 = vst.msk [vmem:[#allocation3 + $0x38] sm:$0xff] %vm488, 0.0
          %497 = vst.msk [vmem:[#allocation3 + $0x40] sm:$0xff] %vm488, 0.0
          %498 = vst.msk [vmem:[#allocation3 + $0x48] sm:$0xff] %vm488, 0.0
          %499 = vst.msk [vmem:[#allocation3 + $0x50] sm:$0xff] %vm488, 0.0
          %500 = vst.msk [vmem:[#allocation3 + $0x58] sm:$0xff] %vm488, 0.0
          %501 = vst.msk [vmem:[#allocation3 + $0x60] sm:$0xff] %vm488, 0.0
          %502 = vst.msk [vmem:[#allocation3 + $0x68] sm:$0xff] %vm488, 0.0
          %503 = vst.msk [vmem:[#allocation3 + $0x70] sm:$0xff] %vm488, 0.0
          %504 = vst.msk [vmem:[#allocation3 + $0x78] sm:$0xff] %vm488, 0.0
          %505 = vst.msk [vmem:[#allocation3 + $0x80] sm:$0xff] %vm488, 0.0
          %506 = vst.msk [vmem:[#allocation3 + $0x88] sm:$0xff] %vm488, 0.0
          %507 = vst.msk [vmem:[#allocation3 + $0x90] sm:$0xff] %vm488, 0.0
          %508 = vst.msk [vmem:[#allocation4] sm:$0xff] %vm488, 0.0
          %509 = vst.msk [vmem:[#allocation4 + $0x8] sm:$0xff] %vm488, 0.0
          %510 = vst.msk [vmem:[#allocation4 + $0x10] sm:$0xff] %vm488, 0.0
          %511 = vst.msk [vmem:[#allocation4 + $0x18] sm:$0xff] %vm488, 0.0
          %512 = vst.msk [vmem:[#allocation4 + $0x20] sm:$0xff] %vm488, 0.0
          %513 = vst.msk [vmem:[#allocation4 + $0x28] sm:$0xff] %vm488, 0.0
          %514 = vst.msk [vmem:[#allocation4 + $0x30] sm:$0xff] %vm488, 0.0
          %515 = vst.msk [vmem:[#allocation4 + $0x38] sm:$0xff] %vm488, 0.0
          %516 = vst.msk [vmem:[#allocation4 + $0x40] sm:$0xff] %vm488, 0.0
          %517 = vst.msk [vmem:[#allocation4 + $0x48] sm:$0xff] %vm488, 0.0
          %518 = vst.msk [vmem:[#allocation4 + $0x50] sm:$0xff] %vm488, 0.0
          %519 = vst.msk [vmem:[#allocation4 + $0x58] sm:$0xff] %vm488, 0.0
          %520 = vst.msk [vmem:[#allocation4 + $0x60] sm:$0xff] %vm488, 0.0
          %521 = vst.msk [vmem:[#allocation4 + $0x68] sm:$0xff] %vm488, 0.0
          %522 = vst.msk [vmem:[#allocation4 + $0x70] sm:$0xff] %vm488, 0.0
          %523 = vst.msk [vmem:[#allocation4 + $0x78] sm:$0xff] %vm488, 0.0
          %524 = vst.msk [vmem:[#allocation4 + $0x80] sm:$0xff] %vm488, 0.0
          %525 = vst.msk [vmem:[#allocation4 + $0x88] sm:$0xff] %vm488, 0.0
          %526 = vst.msk [vmem:[#allocation4 + $0x90] sm:$0xff] %vm488, 0.0
        $region56: #{tpu_custom_call.1} parent=35 // pred_fallthru
          _
        %p527 = scmp.lt.s32.totalorder %s34, 3
        // Predicated region
        $region57: #{tpu_custom_call.1} parent=35 // pred_check
          %p528 = pneg %p527
        $region58: #{tpu_custom_call.1} parent=35 // pred_check_branch
          %530 = sbr.rel (%p528) target = $region60
        $region59: #{tpu_custom_call.1} parent=35 // pred_region
          %v531 = vld [vmem:[%s380] sm:$0xff]
          %v532 = vld [vmem:[%s380 + $0x8] sm:$0xff]
          %v533 = vld [vmem:[%s380 + $0x10] sm:$0xff]
          %v534 = vld [vmem:[%s380 + $0x18] sm:$0xff]
          %v535 = vld [vmem:[%s380 + $0x20] sm:$0xff]
          %v536 = vld [vmem:[%s380 + $0x28] sm:$0xff]
          %v537 = vld [vmem:[%s380 + $0x30] sm:$0xff]
          %v538 = vld [vmem:[%s380 + $0x38] sm:$0xff]
          %v539 = vld [vmem:[%s380 + $0x40] sm:$0xff]
          %v540 = vld [vmem:[%s380 + $0x48] sm:$0xff]
          %v541 = vld [vmem:[%s380 + $0x50] sm:$0xff]
          %v542 = vld [vmem:[%s380 + $0x58] sm:$0xff]
          %v543 = vld [vmem:[%s380 + $0x60] sm:$0xff]
          %v544 = vld [vmem:[%s380 + $0x68] sm:$0xff]
          %v545 = vld [vmem:[%s380 + $0x70] sm:$0xff]
          %v546 = vld [vmem:[%s380 + $0x78] sm:$0xff]
          %v547 = vld [vmem:[%s380 + $0x80] sm:$0xff]
          %v548 = vld [vmem:[%s380 + $0x88] sm:$0xff]
          %v549 = vld [vmem:[%s380 + $0x90] sm:$0xff]
          %v550 = vld [vmem:[%s380 + $0x98] sm:$0xff]
          %v551 = vld [vmem:[%s380 + $0xa0] sm:$0xff]
          %v552 = vld [vmem:[%s380 + $0xa8] sm:$0xff]
          %v553 = vld [vmem:[%s380 + $0xb0] sm:$0xff]
          %v554 = vld [vmem:[%s380 + $0xb8] sm:$0xff]
          %v555 = vld [vmem:[%s380 + $0xc0] sm:$0xff]
          %v556 = vld [vmem:[%s380 + $0xc8] sm:$0xff]
          %v557 = vld [vmem:[%s380 + $0xd0] sm:$0xff]
          %v558 = vld [vmem:[%s380 + $0xd8] sm:$0xff]
          %v559 = vld [vmem:[%s380 + $0xe0] sm:$0xff]
          %v560 = vld [vmem:[%s380 + $0xe8] sm:$0xff]
          %v561 = vld [vmem:[%s380 + $0xf0] sm:$0xff]
          %v562 = vld [vmem:[%s380 + $0xf8] sm:$0xff]
          %v563 = vld [vmem:[%s380 + $0x100] sm:$0xff]
          %v564 = vld [vmem:[%s380 + $0x108] sm:$0xff]
          %v565 = vld [vmem:[%s380 + $0x110] sm:$0xff]
          %v566 = vld [vmem:[%s380 + $0x118] sm:$0xff]
          %v567 = vld [vmem:[%s380 + $0x120] sm:$0xff]
          %v568 = vld [vmem:[%s380 + $0x128] sm:$0xff]
          %v569 = vld [vmem:[%s380 + $0x130] sm:$0xff]
          %v570 = vld [vmem:[%s380 + $0x138] sm:$0xff]
          %v571 = vld [vmem:[%s380 + $0x140] sm:$0xff]
          %v572 = vld [vmem:[%s380 + $0x148] sm:$0xff]
          %v573 = vld [vmem:[%s380 + $0x150] sm:$0xff]
          %v574 = vld [vmem:[%s380 + $0x158] sm:$0xff]
          %v575 = vld [vmem:[%s380 + $0x160] sm:$0xff]
          %v576 = vld [vmem:[%s380 + $0x168] sm:$0xff]
          %v577 = vld [vmem:[%s380 + $0x170] sm:$0xff]
          %v578 = vld [vmem:[%s380 + $0x178] sm:$0xff]
          %v579 = vld [vmem:[%s380 + $0x180] sm:$0xff]
          %v580 = vld [vmem:[%s380 + $0x188] sm:$0xff]
          %v581 = vld [vmem:[%s380 + $0x190] sm:$0xff]
          %v582 = vld [vmem:[%s380 + $0x198] sm:$0xff]
          %v583 = vld [vmem:[%s380 + $0x1a0] sm:$0xff]
          %v584 = vld [vmem:[%s380 + $0x1a8] sm:$0xff]
          %v585 = vld [vmem:[%s380 + $0x1b0] sm:$0xff]
          %v586 = vld [vmem:[%s380 + $0x1b8] sm:$0xff]
          %v587 = vld [vmem:[%s380 + $0x1c0] sm:$0xff]
          %v588 = vld [vmem:[%s380 + $0x1c8] sm:$0xff]
          %v589 = vld [vmem:[%s380 + $0x1d0] sm:$0xff]
          %v590 = vld [vmem:[%s380 + $0x1d8] sm:$0xff]
          %v591 = vld [vmem:[%s380 + $0x1e0] sm:$0xff]
          %v592 = vld [vmem:[%s380 + $0x1e8] sm:$0xff]
          %v593 = vld [vmem:[%s380 + $0x1f0] sm:$0xff]
          %v594 = vld [vmem:[%s380 + $0x1f8] sm:$0xff]
          %v595 = vld [vmem:[%s380 + $0x200] sm:$0xff]
          %v596 = vld [vmem:[%s380 + $0x208] sm:$0xff]
          %v597 = vld [vmem:[%s380 + $0x210] sm:$0xff]
          %v598 = vld [vmem:[%s380 + $0x218] sm:$0xff]
          %v599 = vld [vmem:[%s380 + $0x220] sm:$0xff]
          %v600 = vld [vmem:[%s380 + $0x228] sm:$0xff]
          %v601 = vld [vmem:[%s380 + $0x230] sm:$0xff]
          %v602 = vld [vmem:[%s380 + $0x238] sm:$0xff]
          %v603 = vld [vmem:[%s380 + $0x240] sm:$0xff]
          %v604 = vld [vmem:[%s380 + $0x248] sm:$0xff]
          %v605 = vld [vmem:[%s380 + $0x250] sm:$0xff]
          %v606 = vld [vmem:[%s380 + $0x258] sm:$0xff]
          %v607 = vld [vmem:[#allocation3] sm:$0xff]
          %v608 = vld [vmem:[#allocation3 + $0x8] sm:$0xff]
          %v609 = vld [vmem:[#allocation3 + $0x10] sm:$0xff]
          %v610 = vld [vmem:[#allocation3 + $0x18] sm:$0xff]
          %v611 = vld [vmem:[#allocation3 + $0x20] sm:$0xff]
          %v612 = vld [vmem:[#allocation3 + $0x28] sm:$0xff]
          %v613 = vld [vmem:[#allocation3 + $0x30] sm:$0xff]
          %v614 = vld [vmem:[#allocation3 + $0x38] sm:$0xff]
          %v615 = vld [vmem:[#allocation3 + $0x40] sm:$0xff]
          %v616 = vld [vmem:[#allocation3 + $0x48] sm:$0xff]
          %v617 = vld [vmem:[#allocation3 + $0x50] sm:$0xff]
          %v618 = vld [vmem:[#allocation3 + $0x58] sm:$0xff]
          %v619 = vld [vmem:[#allocation3 + $0x60] sm:$0xff]
          %v620 = vld [vmem:[#allocation3 + $0x68] sm:$0xff]
          %v621 = vld [vmem:[#allocation3 + $0x70] sm:$0xff]
          %v622 = vld [vmem:[#allocation3 + $0x78] sm:$0xff]
          %v623 = vld [vmem:[#allocation3 + $0x80] sm:$0xff]
          %v624 = vld [vmem:[#allocation3 + $0x88] sm:$0xff]
          %v625 = vld [vmem:[#allocation3 + $0x90] sm:$0xff]
          %v626 = vadd.f32 %v531, %v532
          %v627 = vadd.f32 %v626, %v533
          %v628 = vadd.f32 %v627, %v534
          %629 = vadd.xlane.f32.xlu0 %v628
          %v630 = vpop.xlane.xlu0 %629
          %v631 = vadd.f32 %v535, %v536
          %v632 = vadd.f32 %v631, %v537
          %v633 = vadd.f32 %v632, %v538
          %634 = vadd.xlane.f32.xlu0 %v633
          %v635 = vpop.xlane.xlu0 %634
          %v636 = vadd.f32 %v539, %v540
          %v637 = vadd.f32 %v636, %v541
          %v638 = vadd.f32 %v637, %v542
          %639 = vadd.xlane.f32.xlu0 %v638
          %v640 = vpop.xlane.xlu0 %639
          %v641 = vadd.f32 %v543, %v544
          %v642 = vadd.f32 %v641, %v545
          %v643 = vadd.f32 %v642, %v546
          %644 = vadd.xlane.f32.xlu0 %v643
          %v645 = vpop.xlane.xlu0 %644
          %v646 = vadd.f32 %v547, %v548
          %v647 = vadd.f32 %v646, %v549
          %v648 = vadd.f32 %v647, %v550
          %649 = vadd.xlane.f32.xlu0 %v648
          %v650 = vpop.xlane.xlu0 %649
          %v651 = vadd.f32 %v551, %v552
          %v652 = vadd.f32 %v651, %v553
          %v653 = vadd.f32 %v652, %v554
          %654 = vadd.xlane.f32.xlu0 %v653
          %v655 = vpop.xlane.xlu0 %654
          %v656 = vadd.f32 %v555, %v556
          %v657 = vadd.f32 %v656, %v557
          %v658 = vadd.f32 %v657, %v558
          %659 = vadd.xlane.f32.xlu0 %v658
          %v660 = vpop.xlane.xlu0 %659
          %v661 = vadd.f32 %v559, %v560
          %v662 = vadd.f32 %v661, %v561
          %v663 = vadd.f32 %v662, %v562
          %664 = vadd.xlane.f32.xlu0 %v663
          %v665 = vpop.xlane.xlu0 %664
          %v666 = vadd.f32 %v563, %v564
          %v667 = vadd.f32 %v666, %v565
          %v668 = vadd.f32 %v667, %v566
          %669 = vadd.xlane.f32.xlu0 %v668
          %v670 = vpop.xlane.xlu0 %669
          %v671 = vadd.f32 %v567, %v568
          %v672 = vadd.f32 %v671, %v569
          %v673 = vadd.f32 %v672, %v570
          %674 = vadd.xlane.f32.xlu0 %v673
          %v675 = vpop.xlane.xlu0 %674
          %v676 = vadd.f32 %v571, %v572
          %v677 = vadd.f32 %v676, %v573
          %v678 = vadd.f32 %v677, %v574
          %679 = vadd.xlane.f32.xlu0 %v678
          %v680 = vpop.xlane.xlu0 %679
          %v681 = vadd.f32 %v575, %v576
          %v682 = vadd.f32 %v681, %v577
          %v683 = vadd.f32 %v682, %v578
          %684 = vadd.xlane.f32.xlu0 %v683
          %v685 = vpop.xlane.xlu0 %684
          %v686 = vadd.f32 %v579, %v580
          %v687 = vadd.f32 %v686, %v581
          %v688 = vadd.f32 %v687, %v582
          %689 = vadd.xlane.f32.xlu0 %v688
          %v690 = vpop.xlane.xlu0 %689
          %v691 = vadd.f32 %v583, %v584
          %v692 = vadd.f32 %v691, %v585
          %v693 = vadd.f32 %v692, %v586
          %694 = vadd.xlane.f32.xlu0 %v693
          %v695 = vpop.xlane.xlu0 %694
          %v696 = vadd.f32 %v587, %v588
          %v697 = vadd.f32 %v696, %v589
          %v698 = vadd.f32 %v697, %v590
          %699 = vadd.xlane.f32.xlu0 %v698
          %v700 = vpop.xlane.xlu0 %699
          %v701 = vadd.f32 %v591, %v592
          %v702 = vadd.f32 %v701, %v593
          %v703 = vadd.f32 %v702, %v594
          %704 = vadd.xlane.f32.xlu0 %v703
          %v705 = vpop.xlane.xlu0 %704
          %v706 = vadd.f32 %v595, %v596
          %v707 = vadd.f32 %v706, %v597
          %v708 = vadd.f32 %v707, %v598
          %709 = vadd.xlane.f32.xlu0 %v708
          %v710 = vpop.xlane.xlu0 %709
          %v711 = vadd.f32 %v599, %v600
          %v712 = vadd.f32 %v711, %v601
          %v713 = vadd.f32 %v712, %v602
          %714 = vadd.xlane.f32.xlu0 %v713
          %v715 = vpop.xlane.xlu0 %714
          %v716 = vadd.f32 %v603, %v604
          %v717 = vadd.f32 %v716, %v605
          %v718 = vadd.f32 %v717, %v606
          %719 = vadd.xlane.f32.xlu0 %v718
          %v720 = vpop.xlane.xlu0 %719
          %v721 = vadd.f32 %v607, %v630
          %v722 = vadd.f32 %v608, %v635
          %v723 = vadd.f32 %v609, %v640
          %v724 = vadd.f32 %v610, %v645
          %v725 = vadd.f32 %v611, %v650
          %v726 = vadd.f32 %v612, %v655
          %v727 = vadd.f32 %v613, %v660
          %v728 = vadd.f32 %v614, %v665
          %v729 = vadd.f32 %v615, %v670
          %v730 = vadd.f32 %v616, %v675
          %v731 = vadd.f32 %v617, %v680
          %v732 = vadd.f32 %v618, %v685
          %v733 = vadd.f32 %v619, %v690
          %v734 = vadd.f32 %v620, %v695
          %v735 = vadd.f32 %v621, %v700
          %v736 = vadd.f32 %v622, %v705
          %v737 = vadd.f32 %v623, %v710
          %v738 = vadd.f32 %v624, %v715
          %v739 = vadd.f32 %v625, %v720
          %vm740 = vcmask 7168
          %741 = vst.msk [vmem:[#allocation3] sm:$0xff] %vm740, %v721
          %742 = vst.msk [vmem:[#allocation3 + $0x8] sm:$0xff] %vm740, %v722
          %743 = vst.msk [vmem:[#allocation3 + $0x10] sm:$0xff] %vm740, %v723
          %744 = vst.msk [vmem:[#allocation3 + $0x18] sm:$0xff] %vm740, %v724
          %745 = vst.msk [vmem:[#allocation3 + $0x20] sm:$0xff] %vm740, %v725
          %746 = vst.msk [vmem:[#allocation3 + $0x28] sm:$0xff] %vm740, %v726
          %747 = vst.msk [vmem:[#allocation3 + $0x30] sm:$0xff] %vm740, %v727
          %748 = vst.msk [vmem:[#allocation3 + $0x38] sm:$0xff] %vm740, %v728
          %749 = vst.msk [vmem:[#allocation3 + $0x40] sm:$0xff] %vm740, %v729
          %750 = vst.msk [vmem:[#allocation3 + $0x48] sm:$0xff] %vm740, %v730
          %751 = vst.msk [vmem:[#allocation3 + $0x50] sm:$0xff] %vm740, %v731
          %752 = vst.msk [vmem:[#allocation3 + $0x58] sm:$0xff] %vm740, %v732
          %753 = vst.msk [vmem:[#allocation3 + $0x60] sm:$0xff] %vm740, %v733
          %754 = vst.msk [vmem:[#allocation3 + $0x68] sm:$0xff] %vm740, %v734
          %755 = vst.msk [vmem:[#allocation3 + $0x70] sm:$0xff] %vm740, %v735
          %756 = vst.msk [vmem:[#allocation3 + $0x78] sm:$0xff] %vm740, %v736
          %757 = vst.msk [vmem:[#allocation3 + $0x80] sm:$0xff] %vm740, %v737
          %758 = vst.msk [vmem:[#allocation3 + $0x88] sm:$0xff] %vm740, %v738
          %759 = vst.msk [vmem:[#allocation3 + $0x90] sm:$0xff] %vm740, %v739
          %v760 = vld [vmem:[#allocation4] sm:$0xff]
          %v761 = vld [vmem:[#allocation4 + $0x8] sm:$0xff]
          %v762 = vld [vmem:[#allocation4 + $0x10] sm:$0xff]
          %v763 = vld [vmem:[#allocation4 + $0x18] sm:$0xff]
          %v764 = vld [vmem:[#allocation4 + $0x20] sm:$0xff]
          %v765 = vld [vmem:[#allocation4 + $0x28] sm:$0xff]
          %v766 = vld [vmem:[#allocation4 + $0x30] sm:$0xff]
          %v767 = vld [vmem:[#allocation4 + $0x38] sm:$0xff]
          %v768 = vld [vmem:[#allocation4 + $0x40] sm:$0xff]
          %v769 = vld [vmem:[#allocation4 + $0x48] sm:$0xff]
          %v770 = vld [vmem:[#allocation4 + $0x50] sm:$0xff]
          %v771 = vld [vmem:[#allocation4 + $0x58] sm:$0xff]
          %v772 = vld [vmem:[#allocation4 + $0x60] sm:$0xff]
          %v773 = vld [vmem:[#allocation4 + $0x68] sm:$0xff]
          %v774 = vld [vmem:[#allocation4 + $0x70] sm:$0xff]
          %v775 = vld [vmem:[#allocation4 + $0x78] sm:$0xff]
          %v776 = vld [vmem:[#allocation4 + $0x80] sm:$0xff]
          %v777 = vld [vmem:[#allocation4 + $0x88] sm:$0xff]
          %v778 = vld [vmem:[#allocation4 + $0x90] sm:$0xff]
          %v779 = vmul.f32 %v531, %v531
          %v780 = vmul.f32 %v532, %v532
          %v781 = vmul.f32 %v533, %v533
          %v782 = vmul.f32 %v534, %v534
          %v783 = vmul.f32 %v535, %v535
          %v784 = vmul.f32 %v536, %v536
          %v785 = vmul.f32 %v537, %v537
          %v786 = vmul.f32 %v538, %v538
          %v787 = vmul.f32 %v539, %v539
          %v788 = vmul.f32 %v540, %v540
          %v789 = vmul.f32 %v541, %v541
          %v790 = vmul.f32 %v542, %v542
          %v791 = vmul.f32 %v543, %v543
          %v792 = vmul.f32 %v544, %v544
          %v793 = vmul.f32 %v545, %v545
          %v794 = vmul.f32 %v546, %v546
          %v795 = vmul.f32 %v547, %v547
          %v796 = vmul.f32 %v548, %v548
          %v797 = vmul.f32 %v549, %v549
          %v798 = vmul.f32 %v550, %v550
          %v799 = vmul.f32 %v551, %v551
          %v800 = vmul.f32 %v552, %v552
          %v801 = vmul.f32 %v553, %v553
          %v802 = vmul.f32 %v554, %v554
          %v803 = vmul.f32 %v555, %v555
          %v804 = vmul.f32 %v556, %v556
          %v805 = vmul.f32 %v557, %v557
          %v806 = vmul.f32 %v558, %v558
          %v807 = vmul.f32 %v559, %v559
          %v808 = vmul.f32 %v560, %v560
          %v809 = vmul.f32 %v561, %v561
          %v810 = vmul.f32 %v562, %v562
          %v811 = vmul.f32 %v563, %v563
          %v812 = vmul.f32 %v564, %v564
          %v813 = vmul.f32 %v565, %v565
          %v814 = vmul.f32 %v566, %v566
          %v815 = vmul.f32 %v567, %v567
          %v816 = vmul.f32 %v568, %v568
          %v817 = vmul.f32 %v569, %v569
          %v818 = vmul.f32 %v570, %v570
          %v819 = vmul.f32 %v571, %v571
          %v820 = vmul.f32 %v572, %v572
          %v821 = vmul.f32 %v573, %v573
          %v822 = vmul.f32 %v574, %v574
          %v823 = vmul.f32 %v575, %v575
          %v824 = vmul.f32 %v576, %v576
          %v825 = vmul.f32 %v577, %v577
          %v826 = vmul.f32 %v578, %v578
          %v827 = vmul.f32 %v579, %v579
          %v828 = vmul.f32 %v580, %v580
          %v829 = vmul.f32 %v581, %v581
          %v830 = vmul.f32 %v582, %v582
          %v831 = vmul.f32 %v583, %v583
          %v832 = vmul.f32 %v584, %v584
          %v833 = vmul.f32 %v585, %v585
          %v834 = vmul.f32 %v586, %v586
          %v835 = vmul.f32 %v587, %v587
          %v836 = vmul.f32 %v588, %v588
          %v837 = vmul.f32 %v589, %v589
          %v838 = vmul.f32 %v590, %v590
          %v839 = vmul.f32 %v591, %v591
          %v840 = vmul.f32 %v592, %v592
          %v841 = vmul.f32 %v593, %v593
          %v842 = vmul.f32 %v594, %v594
          %v843 = vmul.f32 %v595, %v595
          %v844 = vmul.f32 %v596, %v596
          %v845 = vmul.f32 %v597, %v597
          %v846 = vmul.f32 %v598, %v598
          %v847 = vmul.f32 %v599, %v599
          %v848 = vmul.f32 %v600, %v600
          %v849 = vmul.f32 %v601, %v601
          %v850 = vmul.f32 %v602, %v602
          %v851 = vmul.f32 %v603, %v603
          %v852 = vmul.f32 %v604, %v604
          %v853 = vmul.f32 %v605, %v605
          %v854 = vmul.f32 %v606, %v606
          %v855 = vadd.f32 %v779, %v780
          %v856 = vadd.f32 %v855, %v781
          %v857 = vadd.f32 %v856, %v782
          %858 = vadd.xlane.f32.xlu0 %v857
          %v859 = vpop.xlane.xlu0 %858
          %v860 = vadd.f32 %v783, %v784
          %v861 = vadd.f32 %v860, %v785
          %v862 = vadd.f32 %v861, %v786
          %863 = vadd.xlane.f32.xlu0 %v862
          %v864 = vpop.xlane.xlu0 %863
          %v865 = vadd.f32 %v787, %v788
          %v866 = vadd.f32 %v865, %v789
          %v867 = vadd.f32 %v866, %v790
          %868 = vadd.xlane.f32.xlu0 %v867
          %v869 = vpop.xlane.xlu0 %868
          %v870 = vadd.f32 %v791, %v792
          %v871 = vadd.f32 %v870, %v793
          %v872 = vadd.f32 %v871, %v794
          %873 = vadd.xlane.f32.xlu0 %v872
          %v874 = vpop.xlane.xlu0 %873
          %v875 = vadd.f32 %v795, %v796
          %v876 = vadd.f32 %v875, %v797
          %v877 = vadd.f32 %v876, %v798
          %878 = vadd.xlane.f32.xlu0 %v877
          %v879 = vpop.xlane.xlu0 %878
          %v880 = vadd.f32 %v799, %v800
          %v881 = vadd.f32 %v880, %v801
          %v882 = vadd.f32 %v881, %v802
          %883 = vadd.xlane.f32.xlu0 %v882
          %v884 = vpop.xlane.xlu0 %883
          %v885 = vadd.f32 %v803, %v804
          %v886 = vadd.f32 %v885, %v805
          %v887 = vadd.f32 %v886, %v806
          %888 = vadd.xlane.f32.xlu0 %v887
          %v889 = vpop.xlane.xlu0 %888
          %v890 = vadd.f32 %v807, %v808
          %v891 = vadd.f32 %v890, %v809
          %v892 = vadd.f32 %v891, %v810
          %893 = vadd.xlane.f32.xlu0 %v892
          %v894 = vpop.xlane.xlu0 %893
          %v895 = vadd.f32 %v811, %v812
          %v896 = vadd.f32 %v895, %v813
          %v897 = vadd.f32 %v896, %v814
          %898 = vadd.xlane.f32.xlu0 %v897
          %v899 = vpop.xlane.xlu0 %898
          %v900 = vadd.f32 %v815, %v816
          %v901 = vadd.f32 %v900, %v817
          %v902 = vadd.f32 %v901, %v818
          %903 = vadd.xlane.f32.xlu0 %v902
          %v904 = vpop.xlane.xlu0 %903
          %v905 = vadd.f32 %v819, %v820
          %v906 = vadd.f32 %v905, %v821
          %v907 = vadd.f32 %v906, %v822
          %908 = vadd.xlane.f32.xlu0 %v907
          %v909 = vpop.xlane.xlu0 %908
          %v910 = vadd.f32 %v823, %v824
          %v911 = vadd.f32 %v910, %v825
          %v912 = vadd.f32 %v911, %v826
          %913 = vadd.xlane.f32.xlu0 %v912
          %v914 = vpop.xlane.xlu0 %913
          %v915 = vadd.f32 %v827, %v828
          %v916 = vadd.f32 %v915, %v829
          %v917 = vadd.f32 %v916, %v830
          %918 = vadd.xlane.f32.xlu0 %v917
          %v919 = vpop.xlane.xlu0 %918
          %v920 = vadd.f32 %v831, %v832
          %v921 = vadd.f32 %v920, %v833
          %v922 = vadd.f32 %v921, %v834
          %923 = vadd.xlane.f32.xlu0 %v922
          %v924 = vpop.xlane.xlu0 %923
          %v925 = vadd.f32 %v835, %v836
          %v926 = vadd.f32 %v925, %v837
          %v927 = vadd.f32 %v926, %v838
          %928 = vadd.xlane.f32.xlu0 %v927
          %v929 = vpop.xlane.xlu0 %928
          %v930 = vadd.f32 %v839, %v840
          %v931 = vadd.f32 %v930, %v841
          %v932 = vadd.f32 %v931, %v842
          %933 = vadd.xlane.f32.xlu0 %v932
          %v934 = vpop.xlane.xlu0 %933
          %v935 = vadd.f32 %v843, %v844
          %v936 = vadd.f32 %v935, %v845
          %v937 = vadd.f32 %v936, %v846
          %938 = vadd.xlane.f32.xlu0 %v937
          %v939 = vpop.xlane.xlu0 %938
          %v940 = vadd.f32 %v847, %v848
          %v941 = vadd.f32 %v940, %v849
          %v942 = vadd.f32 %v941, %v850
          %943 = vadd.xlane.f32.xlu0 %v942
          %v944 = vpop.xlane.xlu0 %943
          %v945 = vadd.f32 %v851, %v852
          %v946 = vadd.f32 %v945, %v853
          %v947 = vadd.f32 %v946, %v854
          %948 = vadd.xlane.f32.xlu0 %v947
          %v949 = vpop.xlane.xlu0 %948
          %v950 = vadd.f32 %v760, %v859
          %v951 = vadd.f32 %v761, %v864
          %v952 = vadd.f32 %v762, %v869
          %v953 = vadd.f32 %v763, %v874
          %v954 = vadd.f32 %v764, %v879
          %v955 = vadd.f32 %v765, %v884
          %v956 = vadd.f32 %v766, %v889
          %v957 = vadd.f32 %v767, %v894
          %v958 = vadd.f32 %v768, %v899
          %v959 = vadd.f32 %v769, %v904
          %v960 = vadd.f32 %v770, %v909
          %v961 = vadd.f32 %v771, %v914
          %v962 = vadd.f32 %v772, %v919
          %v963 = vadd.f32 %v773, %v924
          %v964 = vadd.f32 %v774, %v929
          %v965 = vadd.f32 %v775, %v934
          %v966 = vadd.f32 %v776, %v939
          %v967 = vadd.f32 %v777, %v944
          %v968 = vadd.f32 %v778, %v949
          %969 = vst.msk [vmem:[#allocation4] sm:$0xff] %vm740, %v950
          %970 = vst.msk [vmem:[#allocation4 + $0x8] sm:$0xff] %vm740, %v951
          %971 = vst.msk [vmem:[#allocation4 + $0x10] sm:$0xff] %vm740, %v952
          %972 = vst.msk [vmem:[#allocation4 + $0x18] sm:$0xff] %vm740, %v953
          %973 = vst.msk [vmem:[#allocation4 + $0x20] sm:$0xff] %vm740, %v954
          %974 = vst.msk [vmem:[#allocation4 + $0x28] sm:$0xff] %vm740, %v955
          %975 = vst.msk [vmem:[#allocation4 + $0x30] sm:$0xff] %vm740, %v956
          %976 = vst.msk [vmem:[#allocation4 + $0x38] sm:$0xff] %vm740, %v957
          %977 = vst.msk [vmem:[#allocation4 + $0x40] sm:$0xff] %vm740, %v958
          %978 = vst.msk [vmem:[#allocation4 + $0x48] sm:$0xff] %vm740, %v959
          %979 = vst.msk [vmem:[#allocation4 + $0x50] sm:$0xff] %vm740, %v960
          %980 = vst.msk [vmem:[#allocation4 + $0x58] sm:$0xff] %vm740, %v961
          %981 = vst.msk [vmem:[#allocation4 + $0x60] sm:$0xff] %vm740, %v962
          %982 = vst.msk [vmem:[#allocation4 + $0x68] sm:$0xff] %vm740, %v963
          %983 = vst.msk [vmem:[#allocation4 + $0x70] sm:$0xff] %vm740, %v964
          %984 = vst.msk [vmem:[#allocation4 + $0x78] sm:$0xff] %vm740, %v965
          %985 = vst.msk [vmem:[#allocation4 + $0x80] sm:$0xff] %vm740, %v966
          %986 = vst.msk [vmem:[#allocation4 + $0x88] sm:$0xff] %vm740, %v967
          %987 = vst.msk [vmem:[#allocation4 + $0x90] sm:$0xff] %vm740, %v968
        $region60: #{tpu_custom_call.1} parent=35 // pred_fallthru
          _
        %p988 = scmp.eq.s32.totalorder %s34, 2
        // Predicated region
        $region61: #{tpu_custom_call.1} parent=35 // pred_check
          %p989 = pneg %p988
        $region62: #{tpu_custom_call.1} parent=35 // pred_check_branch
          %991 = sbr.rel (%p989) target = $region64
        $region63: #{tpu_custom_call.1} parent=35 // pred_region
          %v992 = vld [vmem:[#allocation3] sm:$0xff]
          %v993 = vld [vmem:[#allocation3 + $0x8] sm:$0xff]
          %v994 = vld [vmem:[#allocation3 + $0x10] sm:$0xff]
          %v995 = vld [vmem:[#allocation3 + $0x18] sm:$0xff]
          %v996 = vld [vmem:[#allocation3 + $0x20] sm:$0xff]
          %v997 = vld [vmem:[#allocation3 + $0x28] sm:$0xff]
          %v998 = vld [vmem:[#allocation3 + $0x30] sm:$0xff]
          %v999 = vld [vmem:[#allocation3 + $0x38] sm:$0xff]
          %v1000 = vld [vmem:[#allocation3 + $0x40] sm:$0xff]
          %v1001 = vld [vmem:[#allocation3 + $0x48] sm:$0xff]
          %v1002 = vld [vmem:[#allocation3 + $0x50] sm:$0xff]
          %v1003 = vld [vmem:[#allocation3 + $0x58] sm:$0xff]
          %v1004 = vld [vmem:[#allocation3 + $0x60] sm:$0xff]
          %v1005 = vld [vmem:[#allocation3 + $0x68] sm:$0xff]
          %v1006 = vld [vmem:[#allocation3 + $0x70] sm:$0xff]
          %v1007 = vld [vmem:[#allocation3 + $0x78] sm:$0xff]
          %v1008 = vld [vmem:[#allocation3 + $0x80] sm:$0xff]
          %v1009 = vld [vmem:[#allocation3 + $0x88] sm:$0xff]
          %v1010 = vld [vmem:[#allocation3 + $0x90] sm:$0xff]
          %v1011 = vmul.f32 %v992, 0.00078125
          %v1012 = vmul.f32 %v993, 0.00078125
          %v1013 = vmul.f32 %v994, 0.00078125
          %v1014 = vmul.f32 %v995, 0.00078125
          %v1015 = vmul.f32 %v996, 0.00078125
          %v1016 = vmul.f32 %v997, 0.00078125
          %v1017 = vmul.f32 %v998, 0.00078125
          %v1018 = vmul.f32 %v999, 0.00078125
          %v1019 = vmul.f32 %v1000, 0.00078125
          %v1020 = vmul.f32 %v1001, 0.00078125
          %v1021 = vmul.f32 %v1002, 0.00078125
          %v1022 = vmul.f32 %v1003, 0.00078125
          %v1023 = vmul.f32 %v1004, 0.00078125
          %v1024 = vmul.f32 %v1005, 0.00078125
          %v1025 = vmul.f32 %v1006, 0.00078125
          %v1026 = vmul.f32 %v1007, 0.00078125
          %v1027 = vmul.f32 %v1008, 0.00078125
          %v1028 = vmul.f32 %v1009, 0.00078125
          %v1029 = vmul.f32 %v1010, 0.00078125
          %v1030 = vld [vmem:[#allocation4] sm:$0xff]
          %v1031 = vld [vmem:[#allocation4 + $0x8] sm:$0xff]
          %v1032 = vld [vmem:[#allocation4 + $0x10] sm:$0xff]
          %v1033 = vld [vmem:[#allocation4 + $0x18] sm:$0xff]
          %v1034 = vld [vmem:[#allocation4 + $0x20] sm:$0xff]
          %v1035 = vld [vmem:[#allocation4 + $0x28] sm:$0xff]
          %v1036 = vld [vmem:[#allocation4 + $0x30] sm:$0xff]
          %v1037 = vld [vmem:[#allocation4 + $0x38] sm:$0xff]
          %v1038 = vld [vmem:[#allocation4 + $0x40] sm:$0xff]
          %v1039 = vld [vmem:[#allocation4 + $0x48] sm:$0xff]
          %v1040 = vld [vmem:[#allocation4 + $0x50] sm:$0xff]
          %v1041 = vld [vmem:[#allocation4 + $0x58] sm:$0xff]
          %v1042 = vld [vmem:[#allocation4 + $0x60] sm:$0xff]
          %v1043 = vld [vmem:[#allocation4 + $0x68] sm:$0xff]
          %v1044 = vld [vmem:[#allocation4 + $0x70] sm:$0xff]
          %v1045 = vld [vmem:[#allocation4 + $0x78] sm:$0xff]
          %v1046 = vld [vmem:[#allocation4 + $0x80] sm:$0xff]
          %v1047 = vld [vmem:[#allocation4 + $0x88] sm:$0xff]
          %v1048 = vld [vmem:[#allocation4 + $0x90] sm:$0xff]
          %v1049 = vmul.f32 %v1030, 0.00078125
          %v1050 = vmul.f32 %v1031, 0.00078125
          %v1051 = vmul.f32 %v1032, 0.00078125
          %v1052 = vmul.f32 %v1033, 0.00078125
          %v1053 = vmul.f32 %v1034, 0.00078125
          %v1054 = vmul.f32 %v1035, 0.00078125
          %v1055 = vmul.f32 %v1036, 0.00078125
          %v1056 = vmul.f32 %v1037, 0.00078125
          %v1057 = vmul.f32 %v1038, 0.00078125
          %v1058 = vmul.f32 %v1039, 0.00078125
          %v1059 = vmul.f32 %v1040, 0.00078125
          %v1060 = vmul.f32 %v1041, 0.00078125
          %v1061 = vmul.f32 %v1042, 0.00078125
          %v1062 = vmul.f32 %v1043, 0.00078125
          %v1063 = vmul.f32 %v1044, 0.00078125
          %v1064 = vmul.f32 %v1045, 0.00078125
          %v1065 = vmul.f32 %v1046, 0.00078125
          %v1066 = vmul.f32 %v1047, 0.00078125
          %v1067 = vmul.f32 %v1048, 0.00078125
          %v1068 = vmul.f32 %v1011, %v1011
          %v1069 = vmul.f32 %v1012, %v1012
          %v1070 = vmul.f32 %v1013, %v1013
          %v1071 = vmul.f32 %v1014, %v1014
          %v1072 = vmul.f32 %v1015, %v1015
          %v1073 = vmul.f32 %v1016, %v1016
          %v1074 = vmul.f32 %v1017, %v1017
          %v1075 = vmul.f32 %v1018, %v1018
          %v1076 = vmul.f32 %v1019, %v1019
          %v1077 = vmul.f32 %v1020, %v1020
          %v1078 = vmul.f32 %v1021, %v1021
          %v1079 = vmul.f32 %v1022, %v1022
          %v1080 = vmul.f32 %v1023, %v1023
          %v1081 = vmul.f32 %v1024, %v1024
          %v1082 = vmul.f32 %v1025, %v1025
          %v1083 = vmul.f32 %v1026, %v1026
          %v1084 = vmul.f32 %v1027, %v1027
          %v1085 = vmul.f32 %v1028, %v1028
          %v1086 = vmul.f32 %v1029, %v1029
          %v1087 = vsub.f32 %v1049, %v1068
          %v1088 = vsub.f32 %v1050, %v1069
          %v1089 = vsub.f32 %v1051, %v1070
          %v1090 = vsub.f32 %v1052, %v1071
          %v1091 = vsub.f32 %v1053, %v1072
          %v1092 = vsub.f32 %v1054, %v1073
          %v1093 = vsub.f32 %v1055, %v1074
          %v1094 = vsub.f32 %v1056, %v1075
          %v1095 = vsub.f32 %v1057, %v1076
          %v1096 = vsub.f32 %v1058, %v1077
          %v1097 = vsub.f32 %v1059, %v1078
          %v1098 = vsub.f32 %v1060, %v1079
          %v1099 = vsub.f32 %v1061, %v1080
          %v1100 = vsub.f32 %v1062, %v1081
          %v1101 = vsub.f32 %v1063, %v1082
          %v1102 = vsub.f32 %v1064, %v1083
          %v1103 = vsub.f32 %v1065, %v1084
          %v1104 = vsub.f32 %v1066, %v1085
          %v1105 = vsub.f32 %v1067, %v1086
          %vm1106 = vcmask 7168
          %1107 = vst.msk [vmem:[#allocation3] sm:$0xff] %vm1106, %v1011
          %1108 = vst.msk [vmem:[#allocation3 + $0x8] sm:$0xff] %vm1106, %v1012
          %1109 = vst.msk [vmem:[#allocation3 + $0x10] sm:$0xff] %vm1106, %v1013
          %1110 = vst.msk [vmem:[#allocation3 + $0x18] sm:$0xff] %vm1106, %v1014
          %1111 = vst.msk [vmem:[#allocation3 + $0x20] sm:$0xff] %vm1106, %v1015
          %1112 = vst.msk [vmem:[#allocation3 + $0x28] sm:$0xff] %vm1106, %v1016
          %1113 = vst.msk [vmem:[#allocation3 + $0x30] sm:$0xff] %vm1106, %v1017
          %1114 = vst.msk [vmem:[#allocation3 + $0x38] sm:$0xff] %vm1106, %v1018
          %1115 = vst.msk [vmem:[#allocation3 + $0x40] sm:$0xff] %vm1106, %v1019
          %1116 = vst.msk [vmem:[#allocation3 + $0x48] sm:$0xff] %vm1106, %v1020
          %1117 = vst.msk [vmem:[#allocation3 + $0x50] sm:$0xff] %vm1106, %v1021
          %1118 = vst.msk [vmem:[#allocation3 + $0x58] sm:$0xff] %vm1106, %v1022
          %1119 = vst.msk [vmem:[#allocation3 + $0x60] sm:$0xff] %vm1106, %v1023
          %1120 = vst.msk [vmem:[#allocation3 + $0x68] sm:$0xff] %vm1106, %v1024
          %1121 = vst.msk [vmem:[#allocation3 + $0x70] sm:$0xff] %vm1106, %v1025
          %1122 = vst.msk [vmem:[#allocation3 + $0x78] sm:$0xff] %vm1106, %v1026
          %1123 = vst.msk [vmem:[#allocation3 + $0x80] sm:$0xff] %vm1106, %v1027
          %1124 = vst.msk [vmem:[#allocation3 + $0x88] sm:$0xff] %vm1106, %v1028
          %1125 = vst.msk [vmem:[#allocation3 + $0x90] sm:$0xff] %vm1106, %v1029
          %v1126 = vadd.f32 %v1087, 1e-05
          %v1127 = vadd.f32 %v1088, 1e-05
          %v1128 = vadd.f32 %v1089, 1e-05
          %v1129 = vadd.f32 %v1090, 1e-05
          %v1130 = vadd.f32 %v1091, 1e-05
          %v1131 = vadd.f32 %v1092, 1e-05
          %v1132 = vadd.f32 %v1093, 1e-05
          %v1133 = vadd.f32 %v1094, 1e-05
          %v1134 = vadd.f32 %v1095, 1e-05
          %v1135 = vadd.f32 %v1096, 1e-05
          %v1136 = vadd.f32 %v1097, 1e-05
          %v1137 = vadd.f32 %v1098, 1e-05
          %v1138 = vadd.f32 %v1099, 1e-05
          %v1139 = vadd.f32 %v1100, 1e-05
          %v1140 = vadd.f32 %v1101, 1e-05
          %v1141 = vadd.f32 %v1102, 1e-05
          %v1142 = vadd.f32 %v1103, 1e-05
          %v1143 = vadd.f32 %v1104, 1e-05
          %v1144 = vadd.f32 %v1105, 1e-05
          %v1145 = vrsqrt.pop %v1126
          %v1146 = vrsqrt.pop %v1127
          %v1147 = vrsqrt.pop %v1128
          %v1148 = vrsqrt.pop %v1129
          %v1149 = vrsqrt.pop %v1130
          %v1150 = vrsqrt.pop %v1131
          %v1151 = vrsqrt.pop %v1132
          %v1152 = vrsqrt.pop %v1133
          %v1153 = vrsqrt.pop %v1134
          %v1154 = vrsqrt.pop %v1135
          %v1155 = vrsqrt.pop %v1136
          %v1156 = vrsqrt.pop %v1137
          %v1157 = vrsqrt.pop %v1138
          %v1158 = vrsqrt.pop %v1139
          %v1159 = vrsqrt.pop %v1140
          %v1160 = vrsqrt.pop %v1141
          %v1161 = vrsqrt.pop %v1142
          %v1162 = vrsqrt.pop %v1143
          %v1163 = vrsqrt.pop %v1144
          %1164 = vst.msk [vmem:[#allocation4] sm:$0xff] %vm1106, %v1145
          %1165 = vst.msk [vmem:[#allocation4 + $0x8] sm:$0xff] %vm1106, %v1146
          %1166 = vst.msk [vmem:[#allocation4 + $0x10] sm:$0xff] %vm1106, %v1147
          %1167 = vst.msk [vmem:[#allocation4 + $0x18] sm:$0xff] %vm1106, %v1148
          %1168 = vst.msk [vmem:[#allocation4 + $0x20] sm:$0xff] %vm1106, %v1149
          %1169 = vst.msk [vmem:[#allocation4 + $0x28] sm:$0xff] %vm1106, %v1150
          %1170 = vst.msk [vmem:[#allocation4 + $0x30] sm:$0xff] %vm1106, %v1151
          %1171 = vst.msk [vmem:[#allocation4 + $0x38] sm:$0xff] %vm1106, %v1152
          %1172 = vst.msk [vmem:[#allocation4 + $0x40] sm:$0xff] %vm1106, %v1153
          %1173 = vst.msk [vmem:[#allocation4 + $0x48] sm:$0xff] %vm1106, %v1154
          %1174 = vst.msk [vmem:[#allocation4 + $0x50] sm:$0xff] %vm1106, %v1155
          %1175 = vst.msk [vmem:[#allocation4 + $0x58] sm:$0xff] %vm1106, %v1156
          %1176 = vst.msk [vmem:[#allocation4 + $0x60] sm:$0xff] %vm1106, %v1157
          %1177 = vst.msk [vmem:[#allocation4 + $0x68] sm:$0xff] %vm1106, %v1158
          %1178 = vst.msk [vmem:[#allocation4 + $0x70] sm:$0xff] %vm1106, %v1159
          %1179 = vst.msk [vmem:[#allocation4 + $0x78] sm:$0xff] %vm1106, %v1160
          %1180 = vst.msk [vmem:[#allocation4 + $0x80] sm:$0xff] %vm1106, %v1161
          %1181 = vst.msk [vmem:[#allocation4 + $0x88] sm:$0xff] %vm1106, %v1162
          %1182 = vst.msk [vmem:[#allocation4 + $0x90] sm:$0xff] %vm1106, %v1163
        $region64: #{tpu_custom_call.1} parent=35 // pred_fallthru
          _
        %p1183 = scmp.eq.s32.totalorder %s34, 3
        // Predicated region
        $region65: #{tpu_custom_call.1} parent=35 // pred_check
          %p1184 = pneg %p1183
        $region66: #{tpu_custom_call.1} parent=35 // pred_check_branch
          %1186 = sbr.rel (%p1184) target = $region68
        $region67: #{tpu_custom_call.1} parent=35 // pred_region
          %1187 = vst [vmem:[#allocation2] sm:$0xff] 0.0
          %1188 = vst [vmem:[#allocation2 + $0x8] sm:$0xff] 0.0
          %1189 = vst [vmem:[#allocation2 + $0x10] sm:$0xff] 0.0
          %1190 = vst [vmem:[#allocation2 + $0x18] sm:$0xff] 0.0
          %1191 = vst [vmem:[#allocation2 + $0x20] sm:$0xff] 0.0
          %1192 = vst [vmem:[#allocation2 + $0x28] sm:$0xff] 0.0
          %1193 = vst [vmem:[#allocation2 + $0x30] sm:$0xff] 0.0
          %1194 = vst [vmem:[#allocation2 + $0x38] sm:$0xff] 0.0
          %1195 = vst [vmem:[#allocation2 + $0x40] sm:$0xff] 0.0
          %1196 = vst [vmem:[#allocation2 + $0x48] sm:$0xff] 0.0
          %1197 = vst [vmem:[#allocation2 + $0x50] sm:$0xff] 0.0
          %1198 = vst [vmem:[#allocation2 + $0x58] sm:$0xff] 0.0
          %1199 = vst [vmem:[#allocation2 + $0x60] sm:$0xff] 0.0
          %1200 = vst [vmem:[#allocation2 + $0x68] sm:$0xff] 0.0
          %1201 = vst [vmem:[#allocation2 + $0x70] sm:$0xff] 0.0
          %1202 = vst [vmem:[#allocation2 + $0x78] sm:$0xff] 0.0
          %1203 = vst [vmem:[#allocation2 + $0x80] sm:$0xff] 0.0
          %1204 = vst [vmem:[#allocation2 + $0x88] sm:$0xff] 0.0
          %1205 = vst [vmem:[#allocation2 + $0x90] sm:$0xff] 0.0
          %1206 = vst [vmem:[#allocation2 + $0x98] sm:$0xff] 0.0
          %1207 = vst [vmem:[#allocation2 + $0xa0] sm:$0xff] 0.0
          %1208 = vst [vmem:[#allocation2 + $0xa8] sm:$0xff] 0.0
          %1209 = vst [vmem:[#allocation2 + $0xb0] sm:$0xff] 0.0
          %1210 = vst [vmem:[#allocation2 + $0xb8] sm:$0xff] 0.0
          %1211 = vst [vmem:[#allocation2 + $0xc0] sm:$0xff] 0.0
          %1212 = vst [vmem:[#allocation2 + $0xc8] sm:$0xff] 0.0
          %1213 = vst [vmem:[#allocation2 + $0xd0] sm:$0xff] 0.0
          %1214 = vst [vmem:[#allocation2 + $0xd8] sm:$0xff] 0.0
          %1215 = vst [vmem:[#allocation2 + $0xe0] sm:$0xff] 0.0
          %1216 = vst [vmem:[#allocation2 + $0xe8] sm:$0xff] 0.0
          %1217 = vst [vmem:[#allocation2 + $0xf0] sm:$0xff] 0.0
          %1218 = vst [vmem:[#allocation2 + $0xf8] sm:$0xff] 0.0
          %1219 = vst [vmem:[#allocation2 + $0x100] sm:$0xff] 0.0
          %1220 = vst [vmem:[#allocation2 + $0x108] sm:$0xff] 0.0
          %1221 = vst [vmem:[#allocation2 + $0x110] sm:$0xff] 0.0
          %1222 = vst [vmem:[#allocation2 + $0x118] sm:$0xff] 0.0
          %1223 = vst [vmem:[#allocation2 + $0x120] sm:$0xff] 0.0
          %1224 = vst [vmem:[#allocation2 + $0x128] sm:$0xff] 0.0
        $region68: #{tpu_custom_call.1} parent=35 // pred_fallthru
          _
        %p1225 = scmp.ge.s32.totalorder %s34, 3
        // Predicated region
        $region69: #{tpu_custom_call.1} parent=35 // pred_check
          %p1226 = pneg %p1225
        $region70: #{tpu_custom_call.1} parent=35 // pred_check_branch
          %1228 = sbr.rel (%p1226) target = $region72
        $region71: #{tpu_custom_call.1} parent=35 // pred_region
          %v1229 = vld [vmem:[%s380] sm:$0xff]
          %v1230 = vld [vmem:[%s380 + $0x8] sm:$0xff]
          %v1231 = vld [vmem:[%s380 + $0x10] sm:$0xff]
          %v1232 = vld [vmem:[%s380 + $0x18] sm:$0xff]
          %v1233 = vld [vmem:[%s380 + $0x20] sm:$0xff]
          %v1234 = vld [vmem:[%s380 + $0x28] sm:$0xff]
          %v1235 = vld [vmem:[%s380 + $0x30] sm:$0xff]
          %v1236 = vld [vmem:[%s380 + $0x38] sm:$0xff]
          %v1237 = vld [vmem:[%s380 + $0x40] sm:$0xff]
          %v1238 = vld [vmem:[%s380 + $0x48] sm:$0xff]
          %v1239 = vld [vmem:[%s380 + $0x50] sm:$0xff]
          %v1240 = vld [vmem:[%s380 + $0x58] sm:$0xff]
          %v1241 = vld [vmem:[%s380 + $0x60] sm:$0xff]
          %v1242 = vld [vmem:[%s380 + $0x68] sm:$0xff]
          %v1243 = vld [vmem:[%s380 + $0x70] sm:$0xff]
          %v1244 = vld [vmem:[%s380 + $0x78] sm:$0xff]
          %v1245 = vld [vmem:[%s380 + $0x80] sm:$0xff]
          %v1246 = vld [vmem:[%s380 + $0x88] sm:$0xff]
          %v1247 = vld [vmem:[%s380 + $0x90] sm:$0xff]
          %v1248 = vld [vmem:[%s380 + $0x98] sm:$0xff]
          %v1249 = vld [vmem:[%s380 + $0xa0] sm:$0xff]
          %v1250 = vld [vmem:[%s380 + $0xa8] sm:$0xff]
          %v1251 = vld [vmem:[%s380 + $0xb0] sm:$0xff]
          %v1252 = vld [vmem:[%s380 + $0xb8] sm:$0xff]
          %v1253 = vld [vmem:[%s380 + $0xc0] sm:$0xff]
          %v1254 = vld [vmem:[%s380 + $0xc8] sm:$0xff]
          %v1255 = vld [vmem:[%s380 + $0xd0] sm:$0xff]
          %v1256 = vld [vmem:[%s380 + $0xd8] sm:$0xff]
          %v1257 = vld [vmem:[%s380 + $0xe0] sm:$0xff]
          %v1258 = vld [vmem:[%s380 + $0xe8] sm:$0xff]
          %v1259 = vld [vmem:[%s380 + $0xf0] sm:$0xff]
          %v1260 = vld [vmem:[%s380 + $0xf8] sm:$0xff]
          %v1261 = vld [vmem:[%s380 + $0x100] sm:$0xff]
          %v1262 = vld [vmem:[%s380 + $0x108] sm:$0xff]
          %v1263 = vld [vmem:[%s380 + $0x110] sm:$0xff]
          %v1264 = vld [vmem:[%s380 + $0x118] sm:$0xff]
          %v1265 = vld [vmem:[%s380 + $0x120] sm:$0xff]
          %v1266 = vld [vmem:[%s380 + $0x128] sm:$0xff]
          %v1267 = vld [vmem:[%s380 + $0x130] sm:$0xff]
          %v1268 = vld [vmem:[%s380 + $0x138] sm:$0xff]
          %v1269 = vld [vmem:[%s380 + $0x140] sm:$0xff]
          %v1270 = vld [vmem:[%s380 + $0x148] sm:$0xff]
          %v1271 = vld [vmem:[%s380 + $0x150] sm:$0xff]
          %v1272 = vld [vmem:[%s380 + $0x158] sm:$0xff]
          %v1273 = vld [vmem:[%s380 + $0x160] sm:$0xff]
          %v1274 = vld [vmem:[%s380 + $0x168] sm:$0xff]
          %v1275 = vld [vmem:[%s380 + $0x170] sm:$0xff]
          %v1276 = vld [vmem:[%s380 + $0x178] sm:$0xff]
          %v1277 = vld [vmem:[%s380 + $0x180] sm:$0xff]
          %v1278 = vld [vmem:[%s380 + $0x188] sm:$0xff]
          %v1279 = vld [vmem:[%s380 + $0x190] sm:$0xff]
          %v1280 = vld [vmem:[%s380 + $0x198] sm:$0xff]
          %v1281 = vld [vmem:[%s380 + $0x1a0] sm:$0xff]
          %v1282 = vld [vmem:[%s380 + $0x1a8] sm:$0xff]
          %v1283 = vld [vmem:[%s380 + $0x1b0] sm:$0xff]
          %v1284 = vld [vmem:[%s380 + $0x1b8] sm:$0xff]
          %v1285 = vld [vmem:[%s380 + $0x1c0] sm:$0xff]
          %v1286 = vld [vmem:[%s380 + $0x1c8] sm:$0xff]
          %v1287 = vld [vmem:[%s380 + $0x1d0] sm:$0xff]
          %v1288 = vld [vmem:[%s380 + $0x1d8] sm:$0xff]
          %v1289 = vld [vmem:[%s380 + $0x1e0] sm:$0xff]
          %v1290 = vld [vmem:[%s380 + $0x1e8] sm:$0xff]
          %v1291 = vld [vmem:[%s380 + $0x1f0] sm:$0xff]
          %v1292 = vld [vmem:[%s380 + $0x1f8] sm:$0xff]
          %v1293 = vld [vmem:[%s380 + $0x200] sm:$0xff]
          %v1294 = vld [vmem:[%s380 + $0x208] sm:$0xff]
          %v1295 = vld [vmem:[%s380 + $0x210] sm:$0xff]
          %v1296 = vld [vmem:[%s380 + $0x218] sm:$0xff]
          %v1297 = vld [vmem:[%s380 + $0x220] sm:$0xff]
          %v1298 = vld [vmem:[%s380 + $0x228] sm:$0xff]
          %v1299 = vld [vmem:[%s380 + $0x230] sm:$0xff]
          %v1300 = vld [vmem:[%s380 + $0x238] sm:$0xff]
          %v1301 = vld [vmem:[%s380 + $0x240] sm:$0xff]
          %v1302 = vld [vmem:[%s380 + $0x248] sm:$0xff]
          %v1303 = vld [vmem:[%s380 + $0x250] sm:$0xff]
          %v1304 = vld [vmem:[%s380 + $0x258] sm:$0xff]
          %v1305 = vld [vmem:[%s398] ss:$2 sm:$0xf]
          %s1306 = scalar_lea.vmem %s398, 1 [#allocation10]
          %v1307 = vld [vmem:[%s1306] ss:$2 sm:$0xf]
          %v1308 = vld [vmem:[#allocation3] sm:$0xff]
          %v1309 = vld [vmem:[#allocation3 + $0x8] sm:$0xff]
          %v1310 = vld [vmem:[#allocation3 + $0x10] sm:$0xff]
          %v1311 = vld [vmem:[#allocation3 + $0x18] sm:$0xff]
          %v1312 = vld [vmem:[#allocation3 + $0x20] sm:$0xff]
          %v1313 = vld [vmem:[#allocation3 + $0x28] sm:$0xff]
          %v1314 = vld [vmem:[#allocation3 + $0x30] sm:$0xff]
          %v1315 = vld [vmem:[#allocation3 + $0x38] sm:$0xff]
          %v1316 = vld [vmem:[#allocation3 + $0x40] sm:$0xff]
          %v1317 = vld [vmem:[#allocation3 + $0x48] sm:$0xff]
          %v1318 = vld [vmem:[#allocation3 + $0x50] sm:$0xff]
          %v1319 = vld [vmem:[#allocation3 + $0x58] sm:$0xff]
          %v1320 = vld [vmem:[#allocation3 + $0x60] sm:$0xff]
          %v1321 = vld [vmem:[#allocation3 + $0x68] sm:$0xff]
          %v1322 = vld [vmem:[#allocation3 + $0x70] sm:$0xff]
          %v1323 = vld [vmem:[#allocation3 + $0x78] sm:$0xff]
          %v1324 = vld [vmem:[#allocation3 + $0x80] sm:$0xff]
          %v1325 = vld [vmem:[#allocation3 + $0x88] sm:$0xff]
          %v1326 = vld [vmem:[#allocation3 + $0x90] sm:$0xff]
          %1328 = vset.pattern.permute.xlu0 0
          %1329 = vperm.xlu0 %1328, %v1308
          %v1330 = vpop.permute.xlu0 %1329
          %1333 = vset.pattern.permute.xlu0 0
          %1334 = vperm.xlu0 %1333, %v1309
          %v1335 = vpop.permute.xlu0 %1334
          %1338 = vset.pattern.permute.xlu0 0
          %1339 = vperm.xlu0 %1338, %v1310
          %v1340 = vpop.permute.xlu0 %1339
          %1343 = vset.pattern.permute.xlu0 0
          %1344 = vperm.xlu0 %1343, %v1311
          %v1345 = vpop.permute.xlu0 %1344
          %1348 = vset.pattern.permute.xlu0 0
          %1349 = vperm.xlu0 %1348, %v1312
          %v1350 = vpop.permute.xlu0 %1349
          %1353 = vset.pattern.permute.xlu0 0
          %1354 = vperm.xlu0 %1353, %v1313
          %v1355 = vpop.permute.xlu0 %1354
          %1358 = vset.pattern.permute.xlu0 0
          %1359 = vperm.xlu0 %1358, %v1314
          %v1360 = vpop.permute.xlu0 %1359
          %1363 = vset.pattern.permute.xlu0 0
          %1364 = vperm.xlu0 %1363, %v1315
          %v1365 = vpop.permute.xlu0 %1364
          %1368 = vset.pattern.permute.xlu0 0
          %1369 = vperm.xlu0 %1368, %v1316
          %v1370 = vpop.permute.xlu0 %1369
          %1373 = vset.pattern.permute.xlu0 0
          %1374 = vperm.xlu0 %1373, %v1317
          %v1375 = vpop.permute.xlu0 %1374
          %1378 = vset.pattern.permute.xlu0 0
          %1379 = vperm.xlu0 %1378, %v1318
          %v1380 = vpop.permute.xlu0 %1379
          %1383 = vset.pattern.permute.xlu0 0
          %1384 = vperm.xlu0 %1383, %v1319
          %v1385 = vpop.permute.xlu0 %1384
          %1388 = vset.pattern.permute.xlu0 0
          %1389 = vperm.xlu0 %1388, %v1320
          %v1390 = vpop.permute.xlu0 %1389
          %1393 = vset.pattern.permute.xlu0 0
          %1394 = vperm.xlu0 %1393, %v1321
          %v1395 = vpop.permute.xlu0 %1394
          %1398 = vset.pattern.permute.xlu0 0
          %1399 = vperm.xlu0 %1398, %v1322
          %v1400 = vpop.permute.xlu0 %1399
          %1403 = vset.pattern.permute.xlu0 0
          %1404 = vperm.xlu0 %1403, %v1323
          %v1405 = vpop.permute.xlu0 %1404
          %1408 = vset.pattern.permute.xlu0 0
          %1409 = vperm.xlu0 %1408, %v1324
          %v1410 = vpop.permute.xlu0 %1409
          %1413 = vset.pattern.permute.xlu0 0
          %1414 = vperm.xlu0 %1413, %v1325
          %v1415 = vpop.permute.xlu0 %1414
          %1418 = vset.pattern.permute.xlu0 0
          %1419 = vperm.xlu0 %1418, %v1326
          %v1420 = vpop.permute.xlu0 %1419
          %v1422 = vsub.f32 %v1229, %v1330
          %v1423 = vsub.f32 %v1230, %v1330
          %v1424 = vsub.f32 %v1231, %v1330
          %v1425 = vsub.f32 %v1232, %v1330
          %v1426 = vsub.f32 %v1233, %v1335
          %v1427 = vsub.f32 %v1234, %v1335
          %v1428 = vsub.f32 %v1235, %v1335
          %v1429 = vsub.f32 %v1236, %v1335
          %v1430 = vsub.f32 %v1237, %v1340
          %v1431 = vsub.f32 %v1238, %v1340
          %v1432 = vsub.f32 %v1239, %v1340
          %v1433 = vsub.f32 %v1240, %v1340
          %v1434 = vsub.f32 %v1241, %v1345
          %v1435 = vsub.f32 %v1242, %v1345
          %v1436 = vsub.f32 %v1243, %v1345
          %v1437 = vsub.f32 %v1244, %v1345
          %v1438 = vsub.f32 %v1245, %v1350
          %v1439 = vsub.f32 %v1246, %v1350
          %v1440 = vsub.f32 %v1247, %v1350
          %v1441 = vsub.f32 %v1248, %v1350
          %v1442 = vsub.f32 %v1249, %v1355
          %v1443 = vsub.f32 %v1250, %v1355
          %v1444 = vsub.f32 %v1251, %v1355
          %v1445 = vsub.f32 %v1252, %v1355
          %v1446 = vsub.f32 %v1253, %v1360
          %v1447 = vsub.f32 %v1254, %v1360
          %v1448 = vsub.f32 %v1255, %v1360
          %v1449 = vsub.f32 %v1256, %v1360
          %v1450 = vsub.f32 %v1257, %v1365
          %v1451 = vsub.f32 %v1258, %v1365
          %v1452 = vsub.f32 %v1259, %v1365
          %v1453 = vsub.f32 %v1260, %v1365
          %v1454 = vsub.f32 %v1261, %v1370
          %v1455 = vsub.f32 %v1262, %v1370
          %v1456 = vsub.f32 %v1263, %v1370
          %v1457 = vsub.f32 %v1264, %v1370
          %v1458 = vsub.f32 %v1265, %v1375
          %v1459 = vsub.f32 %v1266, %v1375
          %v1460 = vsub.f32 %v1267, %v1375
          %v1461 = vsub.f32 %v1268, %v1375
          %v1462 = vsub.f32 %v1269, %v1380
          %v1463 = vsub.f32 %v1270, %v1380
          %v1464 = vsub.f32 %v1271, %v1380
          %v1465 = vsub.f32 %v1272, %v1380
          %v1466 = vsub.f32 %v1273, %v1385
          %v1467 = vsub.f32 %v1274, %v1385
          %v1468 = vsub.f32 %v1275, %v1385
          %v1469 = vsub.f32 %v1276, %v1385
          %v1470 = vsub.f32 %v1277, %v1390
          %v1471 = vsub.f32 %v1278, %v1390
          %v1472 = vsub.f32 %v1279, %v1390
          %v1473 = vsub.f32 %v1280, %v1390
          %v1474 = vsub.f32 %v1281, %v1395
          %v1475 = vsub.f32 %v1282, %v1395
          %v1476 = vsub.f32 %v1283, %v1395
          %v1477 = vsub.f32 %v1284, %v1395
          %v1478 = vsub.f32 %v1285, %v1400
          %v1479 = vsub.f32 %v1286, %v1400
          %v1480 = vsub.f32 %v1287, %v1400
          %v1481 = vsub.f32 %v1288, %v1400
          %v1482 = vsub.f32 %v1289, %v1405
          %v1483 = vsub.f32 %v1290, %v1405
          %v1484 = vsub.f32 %v1291, %v1405
          %v1485 = vsub.f32 %v1292, %v1405
          %v1486 = vsub.f32 %v1293, %v1410
          %v1487 = vsub.f32 %v1294, %v1410
          %v1488 = vsub.f32 %v1295, %v1410
          %v1489 = vsub.f32 %v1296, %v1410
          %v1490 = vsub.f32 %v1297, %v1415
          %v1491 = vsub.f32 %v1298, %v1415
          %v1492 = vsub.f32 %v1299, %v1415
          %v1493 = vsub.f32 %v1300, %v1415
          %v1494 = vsub.f32 %v1301, %v1420
          %v1495 = vsub.f32 %v1302, %v1420
          %v1496 = vsub.f32 %v1303, %v1420
          %v1497 = vsub.f32 %v1304, %v1420
          %v1498 = vld [vmem:[#allocation4] sm:$0xff]
          %v1499 = vld [vmem:[#allocation4 + $0x8] sm:$0xff]
          %v1500 = vld [vmem:[#allocation4 + $0x10] sm:$0xff]
          %v1501 = vld [vmem:[#allocation4 + $0x18] sm:$0xff]
          %v1502 = vld [vmem:[#allocation4 + $0x20] sm:$0xff]
          %v1503 = vld [vmem:[#allocation4 + $0x28] sm:$0xff]
          %v1504 = vld [vmem:[#allocation4 + $0x30] sm:$0xff]
          %v1505 = vld [vmem:[#allocation4 + $0x38] sm:$0xff]
          %v1506 = vld [vmem:[#allocation4 + $0x40] sm:$0xff]
          %v1507 = vld [vmem:[#allocation4 + $0x48] sm:$0xff]
          %v1508 = vld [vmem:[#allocation4 + $0x50] sm:$0xff]
          %v1509 = vld [vmem:[#allocation4 + $0x58] sm:$0xff]
          %v1510 = vld [vmem:[#allocation4 + $0x60] sm:$0xff]
          %v1511 = vld [vmem:[#allocation4 + $0x68] sm:$0xff]
          %v1512 = vld [vmem:[#allocation4 + $0x70] sm:$0xff]
          %v1513 = vld [vmem:[#allocation4 + $0x78] sm:$0xff]
          %v1514 = vld [vmem:[#allocation4 + $0x80] sm:$0xff]
          %v1515 = vld [vmem:[#allocation4 + $0x88] sm:$0xff]
          %v1516 = vld [vmem:[#allocation4 + $0x90] sm:$0xff]
          %1518 = vset.pattern.permute.xlu0 0
          %1519 = vperm.xlu0 %1518, %v1498
          %v1520 = vpop.permute.xlu0 %1519
          %1523 = vset.pattern.permute.xlu0 0
          %1524 = vperm.xlu0 %1523, %v1499
          %v1525 = vpop.permute.xlu0 %1524
          %1528 = vset.pattern.permute.xlu0 0
          %1529 = vperm.xlu0 %1528, %v1500
          %v1530 = vpop.permute.xlu0 %1529
          %1533 = vset.pattern.permute.xlu0 0
          %1534 = vperm.xlu0 %1533, %v1501
          %v1535 = vpop.permute.xlu0 %1534
          %1538 = vset.pattern.permute.xlu0 0
          %1539 = vperm.xlu0 %1538, %v1502
          %v1540 = vpop.permute.xlu0 %1539
          %1543 = vset.pattern.permute.xlu0 0
          %1544 = vperm.xlu0 %1543, %v1503
          %v1545 = vpop.permute.xlu0 %1544
          %1548 = vset.pattern.permute.xlu0 0
          %1549 = vperm.xlu0 %1548, %v1504
          %v1550 = vpop.permute.xlu0 %1549
          %1553 = vset.pattern.permute.xlu0 0
          %1554 = vperm.xlu0 %1553, %v1505
          %v1555 = vpop.permute.xlu0 %1554
          %1558 = vset.pattern.permute.xlu0 0
          %1559 = vperm.xlu0 %1558, %v1506
          %v1560 = vpop.permute.xlu0 %1559
          %1563 = vset.pattern.permute.xlu0 0
          %1564 = vperm.xlu0 %1563, %v1507
          %v1565 = vpop.permute.xlu0 %1564
          %1568 = vset.pattern.permute.xlu0 0
          %1569 = vperm.xlu0 %1568, %v1508
          %v1570 = vpop.permute.xlu0 %1569
          %1573 = vset.pattern.permute.xlu0 0
          %1574 = vperm.xlu0 %1573, %v1509
          %v1575 = vpop.permute.xlu0 %1574
          %1578 = vset.pattern.permute.xlu0 0
          %1579 = vperm.xlu0 %1578, %v1510
          %v1580 = vpop.permute.xlu0 %1579
          %1583 = vset.pattern.permute.xlu0 0
          %1584 = vperm.xlu0 %1583, %v1511
          %v1585 = vpop.permute.xlu0 %1584
          %1588 = vset.pattern.permute.xlu0 0
          %1589 = vperm.xlu0 %1588, %v1512
          %v1590 = vpop.permute.xlu0 %1589
          %1593 = vset.pattern.permute.xlu0 0
          %1594 = vperm.xlu0 %1593, %v1513
          %v1595 = vpop.permute.xlu0 %1594
          %1598 = vset.pattern.permute.xlu0 0
          %1599 = vperm.xlu0 %1598, %v1514
          %v1600 = vpop.permute.xlu0 %1599
          %1603 = vset.pattern.permute.xlu0 0
          %1604 = vperm.xlu0 %1603, %v1515
          %v1605 = vpop.permute.xlu0 %1604
          %1608 = vset.pattern.permute.xlu0 0
          %1609 = vperm.xlu0 %1608, %v1516
          %v1610 = vpop.permute.xlu0 %1609
          %v1612 = vmul.f32 %v1422, %v1520
          %v1613 = vmul.f32 %v1423, %v1520
          %v1614 = vmul.f32 %v1424, %v1520
          %v1615 = vmul.f32 %v1425, %v1520
          %v1616 = vmul.f32 %v1426, %v1525
          %v1617 = vmul.f32 %v1427, %v1525
          %v1618 = vmul.f32 %v1428, %v1525
          %v1619 = vmul.f32 %v1429, %v1525
          %v1620 = vmul.f32 %v1430, %v1530
          %v1621 = vmul.f32 %v1431, %v1530
          %v1622 = vmul.f32 %v1432, %v1530
          %v1623 = vmul.f32 %v1433, %v1530
          %v1624 = vmul.f32 %v1434, %v1535
          %v1625 = vmul.f32 %v1435, %v1535
          %v1626 = vmul.f32 %v1436, %v1535
          %v1627 = vmul.f32 %v1437, %v1535
          %v1628 = vmul.f32 %v1438, %v1540
          %v1629 = vmul.f32 %v1439, %v1540
          %v1630 = vmul.f32 %v1440, %v1540
          %v1631 = vmul.f32 %v1441, %v1540
          %v1632 = vmul.f32 %v1442, %v1545
          %v1633 = vmul.f32 %v1443, %v1545
          %v1634 = vmul.f32 %v1444, %v1545
          %v1635 = vmul.f32 %v1445, %v1545
          %v1636 = vmul.f32 %v1446, %v1550
          %v1637 = vmul.f32 %v1447, %v1550
          %v1638 = vmul.f32 %v1448, %v1550
          %v1639 = vmul.f32 %v1449, %v1550
          %v1640 = vmul.f32 %v1450, %v1555
          %v1641 = vmul.f32 %v1451, %v1555
          %v1642 = vmul.f32 %v1452, %v1555
          %v1643 = vmul.f32 %v1453, %v1555
          %v1644 = vmul.f32 %v1454, %v1560
          %v1645 = vmul.f32 %v1455, %v1560
          %v1646 = vmul.f32 %v1456, %v1560
          %v1647 = vmul.f32 %v1457, %v1560
          %v1648 = vmul.f32 %v1458, %v1565
          %v1649 = vmul.f32 %v1459, %v1565
          %v1650 = vmul.f32 %v1460, %v1565
          %v1651 = vmul.f32 %v1461, %v1565
          %v1652 = vmul.f32 %v1462, %v1570
          %v1653 = vmul.f32 %v1463, %v1570
          %v1654 = vmul.f32 %v1464, %v1570
          %v1655 = vmul.f32 %v1465, %v1570
          %v1656 = vmul.f32 %v1466, %v1575
          %v1657 = vmul.f32 %v1467, %v1575
          %v1658 = vmul.f32 %v1468, %v1575
          %v1659 = vmul.f32 %v1469, %v1575
          %v1660 = vmul.f32 %v1470, %v1580
          %v1661 = vmul.f32 %v1471, %v1580
          %v1662 = vmul.f32 %v1472, %v1580
          %v1663 = vmul.f32 %v1473, %v1580
          %v1664 = vmul.f32 %v1474, %v1585
          %v1665 = vmul.f32 %v1475, %v1585
          %v1666 = vmul.f32 %v1476, %v1585
          %v1667 = vmul.f32 %v1477, %v1585
          %v1668 = vmul.f32 %v1478, %v1590
          %v1669 = vmul.f32 %v1479, %v1590
          %v1670 = vmul.f32 %v1480, %v1590
          %v1671 = vmul.f32 %v1481, %v1590
          %v1672 = vmul.f32 %v1482, %v1595
          %v1673 = vmul.f32 %v1483, %v1595
          %v1674 = vmul.f32 %v1484, %v1595
          %v1675 = vmul.f32 %v1485, %v1595
          %v1676 = vmul.f32 %v1486, %v1600
          %v1677 = vmul.f32 %v1487, %v1600
          %v1678 = vmul.f32 %v1488, %v1600
          %v1679 = vmul.f32 %v1489, %v1600
          %v1680 = vmul.f32 %v1490, %v1605
          %v1681 = vmul.f32 %v1491, %v1605
          %v1682 = vmul.f32 %v1492, %v1605
          %v1683 = vmul.f32 %v1493, %v1605
          %v1684 = vmul.f32 %v1494, %v1610
          %v1685 = vmul.f32 %v1495, %v1610
          %v1686 = vmul.f32 %v1496, %v1610
          %v1687 = vmul.f32 %v1497, %v1610
          %v1689 = vlaneseq
          %v1690 = vshrl.u32 %v1689, 7
          %v1691 = vsub.s32 0, %v1690
          %v1692 = vrot.slane %v1305, %v1691
          %v1693 = vlaneseq
          %v1694 = vshrl.u32 %v1693, 7
          %v1695 = vsub.s32 1, %v1694
          %v1696 = vrot.slane %v1305, %v1695
          %v1697 = vlaneseq
          %v1698 = vshrl.u32 %v1697, 7
          %v1699 = vsub.s32 2, %v1698
          %v1700 = vrot.slane %v1305, %v1699
          %v1701 = vlaneseq
          %v1702 = vshrl.u32 %v1701, 7
          %v1703 = vsub.s32 3, %v1702
          %v1704 = vrot.slane %v1305, %v1703
          %v1709 = vmul.f32 %v1612, %v1692
          %v1710 = vmul.f32 %v1613, %v1696
          %v1711 = vmul.f32 %v1614, %v1700
          %v1712 = vmul.f32 %v1615, %v1704
          %v1713 = vmul.f32 %v1616, %v1692
          %v1714 = vmul.f32 %v1617, %v1696
          %v1715 = vmul.f32 %v1618, %v1700
          %v1716 = vmul.f32 %v1619, %v1704
          %v1717 = vmul.f32 %v1620, %v1692
          %v1718 = vmul.f32 %v1621, %v1696
          %v1719 = vmul.f32 %v1622, %v1700
          %v1720 = vmul.f32 %v1623, %v1704
          %v1721 = vmul.f32 %v1624, %v1692
          %v1722 = vmul.f32 %v1625, %v1696
          %v1723 = vmul.f32 %v1626, %v1700
          %v1724 = vmul.f32 %v1627, %v1704
          %v1725 = vmul.f32 %v1628, %v1692
          %v1726 = vmul.f32 %v1629, %v1696
          %v1727 = vmul.f32 %v1630, %v1700
          %v1728 = vmul.f32 %v1631, %v1704
          %v1729 = vmul.f32 %v1632, %v1692
          %v1730 = vmul.f32 %v1633, %v1696
          %v1731 = vmul.f32 %v1634, %v1700
          %v1732 = vmul.f32 %v1635, %v1704
          %v1733 = vmul.f32 %v1636, %v1692
          %v1734 = vmul.f32 %v1637, %v1696
          %v1735 = vmul.f32 %v1638, %v1700
          %v1736 = vmul.f32 %v1639, %v1704
          %v1737 = vmul.f32 %v1640, %v1692
          %v1738 = vmul.f32 %v1641, %v1696
          %v1739 = vmul.f32 %v1642, %v1700
          %v1740 = vmul.f32 %v1643, %v1704
          %v1741 = vmul.f32 %v1644, %v1692
          %v1742 = vmul.f32 %v1645, %v1696
          %v1743 = vmul.f32 %v1646, %v1700
          %v1744 = vmul.f32 %v1647, %v1704
          %v1745 = vmul.f32 %v1648, %v1692
          %v1746 = vmul.f32 %v1649, %v1696
          %v1747 = vmul.f32 %v1650, %v1700
          %v1748 = vmul.f32 %v1651, %v1704
          %v1749 = vmul.f32 %v1652, %v1692
          %v1750 = vmul.f32 %v1653, %v1696
          %v1751 = vmul.f32 %v1654, %v1700
          %v1752 = vmul.f32 %v1655, %v1704
          %v1753 = vmul.f32 %v1656, %v1692
          %v1754 = vmul.f32 %v1657, %v1696
          %v1755 = vmul.f32 %v1658, %v1700
          %v1756 = vmul.f32 %v1659, %v1704
          %v1757 = vmul.f32 %v1660, %v1692
          %v1758 = vmul.f32 %v1661, %v1696
          %v1759 = vmul.f32 %v1662, %v1700
          %v1760 = vmul.f32 %v1663, %v1704
          %v1761 = vmul.f32 %v1664, %v1692
          %v1762 = vmul.f32 %v1665, %v1696
          %v1763 = vmul.f32 %v1666, %v1700
          %v1764 = vmul.f32 %v1667, %v1704
          %v1765 = vmul.f32 %v1668, %v1692
          %v1766 = vmul.f32 %v1669, %v1696
          %v1767 = vmul.f32 %v1670, %v1700
          %v1768 = vmul.f32 %v1671, %v1704
          %v1769 = vmul.f32 %v1672, %v1692
          %v1770 = vmul.f32 %v1673, %v1696
          %v1771 = vmul.f32 %v1674, %v1700
          %v1772 = vmul.f32 %v1675, %v1704
          %v1773 = vmul.f32 %v1676, %v1692
          %v1774 = vmul.f32 %v1677, %v1696
          %v1775 = vmul.f32 %v1678, %v1700
          %v1776 = vmul.f32 %v1679, %v1704
          %v1777 = vmul.f32 %v1680, %v1692
          %v1778 = vmul.f32 %v1681, %v1696
          %v1779 = vmul.f32 %v1682, %v1700
          %v1780 = vmul.f32 %v1683, %v1704
          %v1781 = vmul.f32 %v1684, %v1692
          %v1782 = vmul.f32 %v1685, %v1696
          %v1783 = vmul.f32 %v1686, %v1700
          %v1784 = vmul.f32 %v1687, %v1704
          %v1786 = vlaneseq
          %v1787 = vshrl.u32 %v1786, 7
          %v1788 = vsub.s32 0, %v1787
          %v1789 = vrot.slane %v1307, %v1788
          %v1790 = vlaneseq
          %v1791 = vshrl.u32 %v1790, 7
          %v1792 = vsub.s32 1, %v1791
          %v1793 = vrot.slane %v1307, %v1792
          %v1794 = vlaneseq
          %v1795 = vshrl.u32 %v1794, 7
          %v1796 = vsub.s32 2, %v1795
          %v1797 = vrot.slane %v1307, %v1796
          %v1798 = vlaneseq
          %v1799 = vshrl.u32 %v1798, 7
          %v1800 = vsub.s32 3, %v1799
          %v1801 = vrot.slane %v1307, %v1800
          %v1806 = vadd.f32 %v1709, %v1789
          %v1807 = vadd.f32 %v1710, %v1793
          %v1808 = vadd.f32 %v1711, %v1797
          %v1809 = vadd.f32 %v1712, %v1801
          %v1810 = vadd.f32 %v1713, %v1789
          %v1811 = vadd.f32 %v1714, %v1793
          %v1812 = vadd.f32 %v1715, %v1797
          %v1813 = vadd.f32 %v1716, %v1801
          %v1814 = vadd.f32 %v1717, %v1789
          %v1815 = vadd.f32 %v1718, %v1793
          %v1816 = vadd.f32 %v1719, %v1797
          %v1817 = vadd.f32 %v1720, %v1801
          %v1818 = vadd.f32 %v1721, %v1789
          %v1819 = vadd.f32 %v1722, %v1793
          %v1820 = vadd.f32 %v1723, %v1797
          %v1821 = vadd.f32 %v1724, %v1801
          %v1822 = vadd.f32 %v1725, %v1789
          %v1823 = vadd.f32 %v1726, %v1793
          %v1824 = vadd.f32 %v1727, %v1797
          %v1825 = vadd.f32 %v1728, %v1801
          %v1826 = vadd.f32 %v1729, %v1789
          %v1827 = vadd.f32 %v1730, %v1793
          %v1828 = vadd.f32 %v1731, %v1797
          %v1829 = vadd.f32 %v1732, %v1801
          %v1830 = vadd.f32 %v1733, %v1789
          %v1831 = vadd.f32 %v1734, %v1793
          %v1832 = vadd.f32 %v1735, %v1797
          %v1833 = vadd.f32 %v1736, %v1801
          %v1834 = vadd.f32 %v1737, %v1789
          %v1835 = vadd.f32 %v1738, %v1793
          %v1836 = vadd.f32 %v1739, %v1797
          %v1837 = vadd.f32 %v1740, %v1801
          %v1838 = vadd.f32 %v1741, %v1789
          %v1839 = vadd.f32 %v1742, %v1793
          %v1840 = vadd.f32 %v1743, %v1797
          %v1841 = vadd.f32 %v1744, %v1801
          %v1842 = vadd.f32 %v1745, %v1789
          %v1843 = vadd.f32 %v1746, %v1793
          %v1844 = vadd.f32 %v1747, %v1797
          %v1845 = vadd.f32 %v1748, %v1801
          %v1846 = vadd.f32 %v1749, %v1789
          %v1847 = vadd.f32 %v1750, %v1793
          %v1848 = vadd.f32 %v1751, %v1797
          %v1849 = vadd.f32 %v1752, %v1801
          %v1850 = vadd.f32 %v1753, %v1789
          %v1851 = vadd.f32 %v1754, %v1793
          %v1852 = vadd.f32 %v1755, %v1797
          %v1853 = vadd.f32 %v1756, %v1801
          %v1854 = vadd.f32 %v1757, %v1789
          %v1855 = vadd.f32 %v1758, %v1793
          %v1856 = vadd.f32 %v1759, %v1797
          %v1857 = vadd.f32 %v1760, %v1801
          %v1858 = vadd.f32 %v1761, %v1789
          %v1859 = vadd.f32 %v1762, %v1793
          %v1860 = vadd.f32 %v1763, %v1797
          %v1861 = vadd.f32 %v1764, %v1801
          %v1862 = vadd.f32 %v1765, %v1789
          %v1863 = vadd.f32 %v1766, %v1793
          %v1864 = vadd.f32 %v1767, %v1797
          %v1865 = vadd.f32 %v1768, %v1801
          %v1866 = vadd.f32 %v1769, %v1789
          %v1867 = vadd.f32 %v1770, %v1793
          %v1868 = vadd.f32 %v1771, %v1797
          %v1869 = vadd.f32 %v1772, %v1801
          %v1870 = vadd.f32 %v1773, %v1789
          %v1871 = vadd.f32 %v1774, %v1793
          %v1872 = vadd.f32 %v1775, %v1797
          %v1873 = vadd.f32 %v1776, %v1801
          %v1874 = vadd.f32 %v1777, %v1789
          %v1875 = vadd.f32 %v1778, %v1793
          %v1876 = vadd.f32 %v1779, %v1797
          %v1877 = vadd.f32 %v1780, %v1801
          %v1878 = vadd.f32 %v1781, %v1789
          %v1879 = vadd.f32 %v1782, %v1793
          %v1880 = vadd.f32 %v1783, %v1797
          %v1881 = vadd.f32 %v1784, %v1801
          %v1882 = vld [vmem:[#allocation2] sm:$0xff]
          %v1883 = vld [vmem:[#allocation2 + $0x8] sm:$0xff]
          %v1884 = vld [vmem:[#allocation2 + $0x10] sm:$0xff]
          %v1885 = vld [vmem:[#allocation2 + $0x18] sm:$0xff]
          %v1886 = vld [vmem:[#allocation2 + $0x20] sm:$0xff]
          %v1887 = vld [vmem:[#allocation2 + $0x28] sm:$0xff]
          %v1888 = vld [vmem:[#allocation2 + $0x30] sm:$0xff]
          %v1889 = vld [vmem:[#allocation2 + $0x38] sm:$0xff]
          %v1890 = vld [vmem:[#allocation2 + $0x40] sm:$0xff]
          %v1891 = vld [vmem:[#allocation2 + $0x48] sm:$0xff]
          %v1892 = vld [vmem:[#allocation2 + $0x50] sm:$0xff]
          %v1893 = vld [vmem:[#allocation2 + $0x58] sm:$0xff]
          %v1894 = vld [vmem:[#allocation2 + $0x60] sm:$0xff]
          %v1895 = vld [vmem:[#allocation2 + $0x68] sm:$0xff]
          %v1896 = vld [vmem:[#allocation2 + $0x70] sm:$0xff]
          %v1897 = vld [vmem:[#allocation2 + $0x78] sm:$0xff]
          %v1898 = vld [vmem:[#allocation2 + $0x80] sm:$0xff]
          %v1899 = vld [vmem:[#allocation2 + $0x88] sm:$0xff]
          %v1900 = vld [vmem:[#allocation2 + $0x90] sm:$0xff]
          %v1901 = vld [vmem:[#allocation2 + $0x98] sm:$0xff]
          %v1902 = vld [vmem:[#allocation2 + $0xa0] sm:$0xff]
          %v1903 = vld [vmem:[#allocation2 + $0xa8] sm:$0xff]
          %v1904 = vld [vmem:[#allocation2 + $0xb0] sm:$0xff]
          %v1905 = vld [vmem:[#allocation2 + $0xb8] sm:$0xff]
          %v1906 = vld [vmem:[#allocation2 + $0xc0] sm:$0xff]
          %v1907 = vld [vmem:[#allocation2 + $0xc8] sm:$0xff]
          %v1908 = vld [vmem:[#allocation2 + $0xd0] sm:$0xff]
          %v1909 = vld [vmem:[#allocation2 + $0xd8] sm:$0xff]
          %v1910 = vld [vmem:[#allocation2 + $0xe0] sm:$0xff]
          %v1911 = vld [vmem:[#allocation2 + $0xe8] sm:$0xff]
          %v1912 = vld [vmem:[#allocation2 + $0xf0] sm:$0xff]
          %v1913 = vld [vmem:[#allocation2 + $0xf8] sm:$0xff]
          %v1914 = vld [vmem:[#allocation2 + $0x100] sm:$0xff]
          %v1915 = vld [vmem:[#allocation2 + $0x108] sm:$0xff]
          %v1916 = vld [vmem:[#allocation2 + $0x110] sm:$0xff]
          %v1917 = vld [vmem:[#allocation2 + $0x118] sm:$0xff]
          %v1918 = vld [vmem:[#allocation2 + $0x120] sm:$0xff]
          %v1919 = vld [vmem:[#allocation2 + $0x128] sm:$0xff]
          %v1920 = vld [vmem:[%s389] sm:$0xff]
          %v1921 = vld [vmem:[%s389 + $0x8] sm:$0xff]
          %v1922 = vld [vmem:[%s389 + $0x10] sm:$0xff]
          %v1923 = vld [vmem:[%s389 + $0x18] sm:$0xff]
          %v1924 = vld [vmem:[%s389 + $0x20] sm:$0xff]
          %v1925 = vld [vmem:[%s389 + $0x28] sm:$0xff]
          %v1926 = vld [vmem:[%s389 + $0x30] sm:$0xff]
          %v1927 = vld [vmem:[%s389 + $0x38] sm:$0xff]
          %v1928 = vld [vmem:[%s389 + $0x40] sm:$0xff]
          %v1929 = vld [vmem:[%s389 + $0x48] sm:$0xff]
          %v1930 = vld [vmem:[%s389 + $0x50] sm:$0xff]
          %v1931 = vld [vmem:[%s389 + $0x58] sm:$0xff]
          %v1932 = vld [vmem:[%s389 + $0x60] sm:$0xff]
          %v1933 = vld [vmem:[%s389 + $0x68] sm:$0xff]
          %v1934 = vld [vmem:[%s389 + $0x70] sm:$0xff]
          %v1935 = vld [vmem:[%s389 + $0x78] sm:$0xff]
          %v1936 = vld [vmem:[%s389 + $0x80] sm:$0xff]
          %v1937 = vld [vmem:[%s389 + $0x88] sm:$0xff]
          %v1938 = vld [vmem:[%s389 + $0x90] sm:$0xff]
          %v1939 = vld [vmem:[%s389 + $0x98] sm:$0xff]
          %v1940 = vld [vmem:[%s389 + $0xa0] sm:$0xff]
          %v1941 = vld [vmem:[%s389 + $0xa8] sm:$0xff]
          %v1942 = vld [vmem:[%s389 + $0xb0] sm:$0xff]
          %v1943 = vld [vmem:[%s389 + $0xb8] sm:$0xff]
          %v1944 = vld [vmem:[%s389 + $0xc0] sm:$0xff]
          %v1945 = vld [vmem:[%s389 + $0xc8] sm:$0xff]
          %v1946 = vld [vmem:[%s389 + $0xd0] sm:$0xff]
          %v1947 = vld [vmem:[%s389 + $0xd8] sm:$0xff]
          %v1948 = vld [vmem:[%s389 + $0xe0] sm:$0xff]
          %v1949 = vld [vmem:[%s389 + $0xe8] sm:$0xff]
          %v1950 = vld [vmem:[%s389 + $0xf0] sm:$0xff]
          %v1951 = vld [vmem:[%s389 + $0xf8] sm:$0xff]
          %v1952 = vld [vmem:[%s389 + $0x100] sm:$0xff]
          %v1953 = vld [vmem:[%s389 + $0x108] sm:$0xff]
          %v1954 = vld [vmem:[%s389 + $0x110] sm:$0xff]
          %v1955 = vld [vmem:[%s389 + $0x118] sm:$0xff]
          %v1956 = vld [vmem:[%s389 + $0x120] sm:$0xff]
          %v1957 = vld [vmem:[%s389 + $0x128] sm:$0xff]
          %v1958 = vld [vmem:[%s389 + $0x130] sm:$0xff]
          %v1959 = vld [vmem:[%s389 + $0x138] sm:$0xff]
          %v1960 = vld [vmem:[%s389 + $0x140] sm:$0xff]
          %v1961 = vld [vmem:[%s389 + $0x148] sm:$0xff]
          %v1962 = vld [vmem:[%s389 + $0x150] sm:$0xff]
          %v1963 = vld [vmem:[%s389 + $0x158] sm:$0xff]
          %v1964 = vld [vmem:[%s389 + $0x160] sm:$0xff]
          %v1965 = vld [vmem:[%s389 + $0x168] sm:$0xff]
          %v1966 = vld [vmem:[%s389 + $0x170] sm:$0xff]
          %v1967 = vld [vmem:[%s389 + $0x178] sm:$0xff]
          %v1968 = vld [vmem:[%s389 + $0x180] sm:$0xff]
          %v1969 = vld [vmem:[%s389 + $0x188] sm:$0xff]
          %v1970 = vld [vmem:[%s389 + $0x190] sm:$0xff]
          %v1971 = vld [vmem:[%s389 + $0x198] sm:$0xff]
          %v1972 = vld [vmem:[%s389 + $0x1a0] sm:$0xff]
          %v1973 = vld [vmem:[%s389 + $0x1a8] sm:$0xff]
          %v1974 = vld [vmem:[%s389 + $0x1b0] sm:$0xff]
          %v1975 = vld [vmem:[%s389 + $0x1b8] sm:$0xff]
          %v1976 = vld [vmem:[%s389 + $0x1c0] sm:$0xff]
          %v1977 = vld [vmem:[%s389 + $0x1c8] sm:$0xff]
          %v1978 = vld [vmem:[%s389 + $0x1d0] sm:$0xff]
          %v1979 = vld [vmem:[%s389 + $0x1d8] sm:$0xff]
          %v1980 = vld [vmem:[%s389 + $0x1e0] sm:$0xff]
          %v1981 = vld [vmem:[%s389 + $0x1e8] sm:$0xff]
          %v1982 = vld [vmem:[%s389 + $0x1f0] sm:$0xff]
          %v1983 = vld [vmem:[%s389 + $0x1f8] sm:$0xff]
          %v1984 = vld [vmem:[%s389 + $0x200] sm:$0xff]
          %v1985 = vld [vmem:[%s389 + $0x208] sm:$0xff]
          %v1986 = vld [vmem:[%s389 + $0x210] sm:$0xff]
          %v1987 = vld [vmem:[%s389 + $0x218] sm:$0xff]
          %v1988 = vld [vmem:[%s389 + $0x220] sm:$0xff]
          %v1989 = vld [vmem:[%s389 + $0x228] sm:$0xff]
          %v1990 = vld [vmem:[%s389 + $0x230] sm:$0xff]
          %v1991 = vld [vmem:[%s389 + $0x238] sm:$0xff]
          %v1992 = vld [vmem:[%s389 + $0x240] sm:$0xff]
          %v1993 = vld [vmem:[%s389 + $0x248] sm:$0xff]
          %v1994 = vld [vmem:[%s389 + $0x250] sm:$0xff]
          %v1995 = vld [vmem:[%s389 + $0x258] sm:$0xff]
          %v1996 = vld [vmem:[%s389 + $0x260] sm:$0xff]
          %v1997 = vld [vmem:[%s389 + $0x268] sm:$0xff]
          %v1998 = vld [vmem:[%s389 + $0x270] sm:$0xff]
          %v1999 = vld [vmem:[%s389 + $0x278] sm:$0xff]
          %v2000 = vld [vmem:[%s389 + $0x280] sm:$0xff]
          %v2001 = vld [vmem:[%s389 + $0x288] sm:$0xff]
          %v2002 = vld [vmem:[%s389 + $0x290] sm:$0xff]
          %v2003 = vld [vmem:[%s389 + $0x298] sm:$0xff]
          %v2004 = vld [vmem:[%s389 + $0x2a0] sm:$0xff]
          %v2005 = vld [vmem:[%s389 + $0x2a8] sm:$0xff]
          %v2006 = vld [vmem:[%s389 + $0x2b0] sm:$0xff]
          %v2007 = vld [vmem:[%s389 + $0x2b8] sm:$0xff]
          %v2008 = vld [vmem:[%s389 + $0x2c0] sm:$0xff]
          %v2009 = vld [vmem:[%s389 + $0x2c8] sm:$0xff]
          %v2010 = vld [vmem:[%s389 + $0x2d0] sm:$0xff]
          %v2011 = vld [vmem:[%s389 + $0x2d8] sm:$0xff]
          %v2012 = vld [vmem:[%s389 + $0x2e0] sm:$0xff]
          %v2013 = vld [vmem:[%s389 + $0x2e8] sm:$0xff]
          %v2014 = vld [vmem:[%s389 + $0x2f0] sm:$0xff]
          %v2015 = vld [vmem:[%s389 + $0x2f8] sm:$0xff]
          %v2016 = vld [vmem:[%s389 + $0x300] sm:$0xff]
          %v2017 = vld [vmem:[%s389 + $0x308] sm:$0xff]
          %v2018 = vld [vmem:[%s389 + $0x310] sm:$0xff]
          %v2019 = vld [vmem:[%s389 + $0x318] sm:$0xff]
          %v2020 = vld [vmem:[%s389 + $0x320] sm:$0xff]
          %v2021 = vld [vmem:[%s389 + $0x328] sm:$0xff]
          %v2022 = vld [vmem:[%s389 + $0x330] sm:$0xff]
          %v2023 = vld [vmem:[%s389 + $0x338] sm:$0xff]
          %v2024 = vld [vmem:[%s389 + $0x340] sm:$0xff]
          %v2025 = vld [vmem:[%s389 + $0x348] sm:$0xff]
          %v2026 = vld [vmem:[%s389 + $0x350] sm:$0xff]
          %v2027 = vld [vmem:[%s389 + $0x358] sm:$0xff]
          %v2028 = vld [vmem:[%s389 + $0x360] sm:$0xff]
          %v2029 = vld [vmem:[%s389 + $0x368] sm:$0xff]
          %v2030 = vld [vmem:[%s389 + $0x370] sm:$0xff]
          %v2031 = vld [vmem:[%s389 + $0x378] sm:$0xff]
          %v2032 = vld [vmem:[%s389 + $0x380] sm:$0xff]
          %v2033 = vld [vmem:[%s389 + $0x388] sm:$0xff]
          %v2034 = vld [vmem:[%s389 + $0x390] sm:$0xff]
          %v2035 = vld [vmem:[%s389 + $0x398] sm:$0xff]
          %v2036 = vld [vmem:[%s389 + $0x3a0] sm:$0xff]
          %v2037 = vld [vmem:[%s389 + $0x3a8] sm:$0xff]
          %v2038 = vld [vmem:[%s389 + $0x3b0] sm:$0xff]
          %v2039 = vld [vmem:[%s389 + $0x3b8] sm:$0xff]
          %v2040 = vld [vmem:[%s389 + $0x3c0] sm:$0xff]
          %v2041 = vld [vmem:[%s389 + $0x3c8] sm:$0xff]
          %v2042 = vld [vmem:[%s389 + $0x3d0] sm:$0xff]
          %v2043 = vld [vmem:[%s389 + $0x3d8] sm:$0xff]
          %v2044 = vld [vmem:[%s389 + $0x3e0] sm:$0xff]
          %v2045 = vld [vmem:[%s389 + $0x3e8] sm:$0xff]
          %v2046 = vld [vmem:[%s389 + $0x3f0] sm:$0xff]
          %v2047 = vld [vmem:[%s389 + $0x3f8] sm:$0xff]
          %2048 = vmatprep.subr.mxu0 %v1921
          %2049 = vmatpush1.msra.mxu0 %v1920
          %2050 = vmatprep.subr.mxu0 %v1923
          %2051 = vmatpush1.msra.mxu0 %v1922
          %2052 = vmatprep.subr.mxu0 %v1925
          %2053 = vmatpush1.msra.mxu0 %v1924
          %2054 = vmatprep.subr.mxu0 %v1927
          %2055 = vmatpush1.msra.mxu0 %v1926
          %2056 = vmatprep.subr.mxu0 %v1929
          %2057 = vmatpush1.msra.mxu0 %v1928
          %2058 = vmatprep.subr.mxu0 %v1931
          %2059 = vmatpush1.msra.mxu0 %v1930
          %2060 = vmatprep.subr.mxu0 %v1933
          %2061 = vmatpush1.msra.mxu0 %v1932
          %2062 = vmatprep.subr.mxu0 %v1935
          %2063 = vmatpush1.msra.mxu0 %v1934
          %2064 = vmatprep.subr.mxu0 %v1937
          %2065 = vmatpush1.msra.mxu0 %v1936
          %2066 = vmatprep.subr.mxu0 %v1939
          %2067 = vmatpush1.msra.mxu0 %v1938
          %2068 = vmatprep.subr.mxu0 %v1941
          %2069 = vmatpush1.msra.mxu0 %v1940
          %2070 = vmatprep.subr.mxu0 %v1943
          %2071 = vmatpush1.msra.mxu0 %v1942
          %2072 = vmatprep.subr.mxu0 %v1945
          %2073 = vmatpush1.msra.mxu0 %v1944
          %2074 = vmatprep.subr.mxu0 %v1947
          %2075 = vmatpush1.msra.mxu0 %v1946
          %2076 = vmatprep.subr.mxu0 %v1949
          %2077 = vmatpush1.msra.mxu0 %v1948
          %2078 = vmatprep.subr.mxu0 %v1951
          %2079 = vmatpush1.msra.mxu0 %v1950
          %2080 = vmatprep.subr.mxu0 %v1953
          %2081 = vmatpush1.msra.mxu0 %v1952
          %2082 = vmatprep.subr.mxu0 %v1955
          %2083 = vmatpush1.msra.mxu0 %v1954
          %2084 = vmatprep.subr.mxu0 %v1957
          %2085 = vmatpush1.msra.mxu0 %v1956
          %2086 = vmatprep.subr.mxu0 %v1959
          %2087 = vmatpush1.msra.mxu0 %v1958
          %2088 = vmatprep.subr.mxu0 %v1961
          %2089 = vmatpush1.msra.mxu0 %v1960
          %2090 = vmatprep.subr.mxu0 %v1963
          %2091 = vmatpush1.msra.mxu0 %v1962
          %2092 = vmatprep.subr.mxu0 %v1965
          %2093 = vmatpush1.msra.mxu0 %v1964
          %2094 = vmatprep.subr.mxu0 %v1967
          %2095 = vmatpush1.msra.mxu0 %v1966
          %2096 = vmatprep.subr.mxu0 %v1969
          %2097 = vmatpush1.msra.mxu0 %v1968
          %2098 = vmatprep.subr.mxu0 %v1971
          %2099 = vmatpush1.msra.mxu0 %v1970
          %2100 = vmatprep.subr.mxu0 %v1973
          %2101 = vmatpush1.msra.mxu0 %v1972
          %2102 = vmatprep.subr.mxu0 %v1975
          %2103 = vmatpush1.msra.mxu0 %v1974
          %2104 = vmatprep.subr.mxu0 %v1977
          %2105 = vmatpush1.msra.mxu0 %v1976
          %2106 = vmatprep.subr.mxu0 %v1979
          %2107 = vmatpush1.msra.mxu0 %v1978
          %2108 = vmatprep.subr.mxu0 %v1981
          %2109 = vmatpush1.msra.mxu0 %v1980
          %2110 = vmatprep.subr.mxu0 %v1983
          %2111 = vmatpush1.msra.mxu0 %v1982
          %2112 = vmatprep.mubr.f32.mxu0 %v1807
          %2113 = vmatmul.mubr.f32.gmra.mrb[0].mxu0 %v1806
          %v2114 = vpop.f32.mrb[0].mxu0
          %v2115 = vadd.f32 0.0, %v2114
          %v2116 = vpop.f32.mrb[0].mxu0
          %v2117 = vadd.f32 0.0, %v2116
          %2118 = vmatprep.mubr.f32.mxu0 %v1811
          %2119 = vmatmul.mubr.f32.gmra.mrb[0].mxu0 %v1810
          %v2120 = vpop.f32.mrb[0].mxu0
          %v2121 = vadd.f32 0.0, %v2120
          %v2122 = vpop.f32.mrb[0].mxu0
          %v2123 = vadd.f32 0.0, %v2122
          %2124 = vmatprep.mubr.f32.mxu0 %v1815
          %2125 = vmatmul.mubr.f32.gmra.mrb[0].mxu0 %v1814
          %v2126 = vpop.f32.mrb[0].mxu0
          %v2127 = vadd.f32 0.0, %v2126
          %v2128 = vpop.f32.mrb[0].mxu0
          %v2129 = vadd.f32 0.0, %v2128
          %2130 = vmatprep.mubr.f32.mxu0 %v1819
          %2131 = vmatmul.mubr.f32.gmra.mrb[0].mxu0 %v1818
          %v2132 = vpop.f32.mrb[0].mxu0
          %v2133 = vadd.f32 0.0, %v2132
          %v2134 = vpop.f32.mrb[0].mxu0
          %v2135 = vadd.f32 0.0, %v2134
          %2136 = vmatprep.mubr.f32.mxu0 %v1823
          %2137 = vmatmul.mubr.f32.gmra.mrb[0].mxu0 %v1822
          %v2138 = vpop.f32.mrb[0].mxu0
          %v2139 = vadd.f32 0.0, %v2138
          %v2140 = vpop.f32.mrb[0].mxu0
          %v2141 = vadd.f32 0.0, %v2140
          %2142 = vmatprep.mubr.f32.mxu0 %v1827
          %2143 = vmatmul.mubr.f32.gmra.mrb[0].mxu0 %v1826
          %v2144 = vpop.f32.mrb[0].mxu0
          %v2145 = vadd.f32 0.0, %v2144
          %v2146 = vpop.f32.mrb[0].mxu0
          %v2147 = vadd.f32 0.0, %v2146
          %2148 = vmatprep.mubr.f32.mxu0 %v1831
          %2149 = vmatmul.mubr.f32.gmra.mrb[0].mxu0 %v1830
          %v2150 = vpop.f32.mrb[0].mxu0
          %v2151 = vadd.f32 0.0, %v2150
          %v2152 = vpop.f32.mrb[0].mxu0
          %v2153 = vadd.f32 0.0, %v2152
          %2154 = vmatprep.mubr.f32.mxu0 %v1835
          %2155 = vmatmul.mubr.f32.gmra.mrb[0].mxu0 %v1834
          %v2156 = vpop.f32.mrb[0].mxu0
          %v2157 = vadd.f32 0.0, %v2156
          %v2158 = vpop.f32.mrb[0].mxu0
          %v2159 = vadd.f32 0.0, %v2158
          %2160 = vmatprep.mubr.f32.mxu0 %v1839
          %2161 = vmatmul.mubr.f32.gmra.mrb[0].mxu0 %v1838
          %v2162 = vpop.f32.mrb[0].mxu0
          %v2163 = vadd.f32 0.0, %v2162
          %v2164 = vpop.f32.mrb[0].mxu0
          %v2165 = vadd.f32 0.0, %v2164
          %2166 = vmatprep.mubr.f32.mxu0 %v1843
          %2167 = vmatmul.mubr.f32.gmra.mrb[0].mxu0 %v1842
          %v2168 = vpop.f32.mrb[0].mxu0
          %v2169 = vadd.f32 0.0, %v2168
          %v2170 = vpop.f32.mrb[0].mxu0
          %v2171 = vadd.f32 0.0, %v2170
          %2172 = vmatprep.mubr.f32.mxu0 %v1847
          %2173 = vmatmul.mubr.f32.gmra.mrb[0].mxu0 %v1846
          %v2174 = vpop.f32.mrb[0].mxu0
          %v2175 = vadd.f32 0.0, %v2174
          %v2176 = vpop.f32.mrb[0].mxu0
          %v2177 = vadd.f32 0.0, %v2176
          %2178 = vmatprep.mubr.f32.mxu0 %v1851
          %2179 = vmatmul.mubr.f32.gmra.mrb[0].mxu0 %v1850
          %v2180 = vpop.f32.mrb[0].mxu0
          %v2181 = vadd.f32 0.0, %v2180
          %v2182 = vpop.f32.mrb[0].mxu0
          %v2183 = vadd.f32 0.0, %v2182
          %2184 = vmatprep.mubr.f32.mxu0 %v1855
          %2185 = vmatmul.mubr.f32.gmra.mrb[0].mxu0 %v1854
          %v2186 = vpop.f32.mrb[0].mxu0
          %v2187 = vadd.f32 0.0, %v2186
          %v2188 = vpop.f32.mrb[0].mxu0
          %v2189 = vadd.f32 0.0, %v2188
          %2190 = vmatprep.mubr.f32.mxu0 %v1859
          %2191 = vmatmul.mubr.f32.gmra.mrb[0].mxu0 %v1858
          %v2192 = vpop.f32.mrb[0].mxu0
          %v2193 = vadd.f32 0.0, %v2192
          %v2194 = vpop.f32.mrb[0].mxu0
          %v2195 = vadd.f32 0.0, %v2194
          %2196 = vmatprep.mubr.f32.mxu0 %v1863
          %2197 = vmatmul.mubr.f32.gmra.mrb[0].mxu0 %v1862
          %v2198 = vpop.f32.mrb[0].mxu0
          %v2199 = vadd.f32 0.0, %v2198
          %v2200 = vpop.f32.mrb[0].mxu0
          %v2201 = vadd.f32 0.0, %v2200
          %2202 = vmatprep.mubr.f32.mxu0 %v1867
          %2203 = vmatmul.mubr.f32.gmra.mrb[0].mxu0 %v1866
          %v2204 = vpop.f32.mrb[0].mxu0
          %v2205 = vadd.f32 0.0, %v2204
          %v2206 = vpop.f32.mrb[0].mxu0
          %v2207 = vadd.f32 0.0, %v2206
          %2208 = vmatprep.mubr.f32.mxu0 %v1871
          %2209 = vmatmul.mubr.f32.gmra.mrb[0].mxu0 %v1870
          %v2210 = vpop.f32.mrb[0].mxu0
          %v2211 = vadd.f32 0.0, %v2210
          %v2212 = vpop.f32.mrb[0].mxu0
          %v2213 = vadd.f32 0.0, %v2212
          %2214 = vmatprep.mubr.f32.mxu0 %v1875
          %2215 = vmatmul.mubr.f32.gmra.mrb[0].mxu0 %v1874
          %v2216 = vpop.f32.mrb[0].mxu0
          %v2217 = vadd.f32 0.0, %v2216
          %v2218 = vpop.f32.mrb[0].mxu0
          %v2219 = vadd.f32 0.0, %v2218
          %2220 = vmatprep.mubr.f32.mxu0 %v1879
          %2221 = vmatmul.mubr.f32.gmra.mrb[0].mxu0 %v1878
          %v2222 = vpop.f32.mrb[0].mxu0
          %v2223 = vadd.f32 0.0, %v2222
          %v2224 = vpop.f32.mrb[0].mxu0
          %v2225 = vadd.f32 0.0, %v2224
          %2226 = vdwg.mxu0
          %2227 = vmatprep.subr.mxu0 %v1985
          %2228 = vmatpush1.msra.mxu0 %v1984
          %2229 = vmatprep.subr.mxu0 %v1987
          %2230 = vmatpush1.msra.mxu0 %v1986
          %2231 = vmatprep.subr.mxu0 %v1989
          %2232 = vmatpush1.msra.mxu0 %v1988
          %2233 = vmatprep.subr.mxu0 %v1991
          %2234 = vmatpush1.msra.mxu0 %v1990
          %2235 = vmatprep.subr.mxu0 %v1993
          %2236 = vmatpush1.msra.mxu0 %v1992
          %2237 = vmatprep.subr.mxu0 %v1995
          %2238 = vmatpush1.msra.mxu0 %v1994
          %2239 = vmatprep.subr.mxu0 %v1997
          %2240 = vmatpush1.msra.mxu0 %v1996
          %2241 = vmatprep.subr.mxu0 %v1999
          %2242 = vmatpush1.msra.mxu0 %v1998
          %2243 = vmatprep.subr.mxu0 %v2001
          %2244 = vmatpush1.msra.mxu0 %v2000
          %2245 = vmatprep.subr.mxu0 %v2003
          %2246 = vmatpush1.msra.mxu0 %v2002
          %2247 = vmatprep.subr.mxu0 %v2005
          %2248 = vmatpush1.msra.mxu0 %v2004
          %2249 = vmatprep.subr.mxu0 %v2007
          %2250 = vmatpush1.msra.mxu0 %v2006
          %2251 = vmatprep.subr.mxu0 %v2009
          %2252 = vmatpush1.msra.mxu0 %v2008
          %2253 = vmatprep.subr.mxu0 %v2011
          %2254 = vmatpush1.msra.mxu0 %v2010
          %2255 = vmatprep.subr.mxu0 %v2013
          %2256 = vmatpush1.msra.mxu0 %v2012
          %2257 = vmatprep.subr.mxu0 %v2015
          %2258 = vmatpush1.msra.mxu0 %v2014
          %2259 = vmatprep.subr.mxu0 %v2017
          %2260 = vmatpush1.msra.mxu0 %v2016
          %2261 = vmatprep.subr.mxu0 %v2019
          %2262 = vmatpush1.msra.mxu0 %v2018
          %2263 = vmatprep.subr.mxu0 %v2021
          %2264 = vmatpush1.msra.mxu0 %v2020
          %2265 = vmatprep.subr.mxu0 %v2023
          %2266 = vmatpush1.msra.mxu0 %v2022
          %2267 = vmatprep.subr.mxu0 %v2025
          %2268 = vmatpush1.msra.mxu0 %v2024
          %2269 = vmatprep.subr.mxu0 %v2027
          %2270 = vmatpush1.msra.mxu0 %v2026
          %2271 = vmatprep.subr.mxu0 %v2029
          %2272 = vmatpush1.msra.mxu0 %v2028
          %2273 = vmatprep.subr.mxu0 %v2031
          %2274 = vmatpush1.msra.mxu0 %v2030
          %2275 = vmatprep.subr.mxu0 %v2033
          %2276 = vmatpush1.msra.mxu0 %v2032
          %2277 = vmatprep.subr.mxu0 %v2035
          %2278 = vmatpush1.msra.mxu0 %v2034
          %2279 = vmatprep.subr.mxu0 %v2037
          %2280 = vmatpush1.msra.mxu0 %v2036
          %2281 = vmatprep.subr.mxu0 %v2039
          %2282 = vmatpush1.msra.mxu0 %v2038
          %2283 = vmatprep.subr.mxu0 %v2041
          %2284 = vmatpush1.msra.mxu0 %v2040
          %2285 = vmatprep.subr.mxu0 %v2043
          %2286 = vmatpush1.msra.mxu0 %v2042
          %2287 = vmatprep.subr.mxu0 %v2045
          %2288 = vmatpush1.msra.mxu0 %v2044
          %2289 = vmatprep.subr.mxu0 %v2047
          %2290 = vmatpush1.msra.mxu0 %v2046
          %2291 = vmatprep.mubr.f32.mxu0 %v1809
          %2292 = vmatmul.mubr.f32.gmra.mrb[0].mxu0 %v1808
          %v2293 = vpop.f32.mrb[0].mxu0
          %v2294 = vadd.f32 %v2115, %v2293
          %v2295 = vpop.f32.mrb[0].mxu0
          %v2296 = vadd.f32 %v2117, %v2295
          %2297 = vmatprep.mubr.f32.mxu0 %v1813
          %2298 = vmatmul.mubr.f32.gmra.mrb[0].mxu0 %v1812
          %v2299 = vpop.f32.mrb[0].mxu0
          %v2300 = vadd.f32 %v2121, %v2299
          %v2301 = vpop.f32.mrb[0].mxu0
          %v2302 = vadd.f32 %v2123, %v2301
          %2303 = vmatprep.mubr.f32.mxu0 %v1817
          %2304 = vmatmul.mubr.f32.gmra.mrb[0].mxu0 %v1816
          %v2305 = vpop.f32.mrb[0].mxu0
          %v2306 = vadd.f32 %v2127, %v2305
          %v2307 = vpop.f32.mrb[0].mxu0
          %v2308 = vadd.f32 %v2129, %v2307
          %2309 = vmatprep.mubr.f32.mxu0 %v1821
          %2310 = vmatmul.mubr.f32.gmra.mrb[0].mxu0 %v1820
          %v2311 = vpop.f32.mrb[0].mxu0
          %v2312 = vadd.f32 %v2133, %v2311
          %v2313 = vpop.f32.mrb[0].mxu0
          %v2314 = vadd.f32 %v2135, %v2313
          %2315 = vmatprep.mubr.f32.mxu0 %v1825
          %2316 = vmatmul.mubr.f32.gmra.mrb[0].mxu0 %v1824
          %v2317 = vpop.f32.mrb[0].mxu0
          %v2318 = vadd.f32 %v2139, %v2317
          %v2319 = vpop.f32.mrb[0].mxu0
          %v2320 = vadd.f32 %v2141, %v2319
          %2321 = vmatprep.mubr.f32.mxu0 %v1829
          %2322 = vmatmul.mubr.f32.gmra.mrb[0].mxu0 %v1828
          %v2323 = vpop.f32.mrb[0].mxu0
          %v2324 = vadd.f32 %v2145, %v2323
          %v2325 = vpop.f32.mrb[0].mxu0
          %v2326 = vadd.f32 %v2147, %v2325
          %2327 = vmatprep.mubr.f32.mxu0 %v1833
          %2328 = vmatmul.mubr.f32.gmra.mrb[0].mxu0 %v1832
          %v2329 = vpop.f32.mrb[0].mxu0
          %v2330 = vadd.f32 %v2151, %v2329
          %v2331 = vpop.f32.mrb[0].mxu0
          %v2332 = vadd.f32 %v2153, %v2331
          %2333 = vmatprep.mubr.f32.mxu0 %v1837
          %2334 = vmatmul.mubr.f32.gmra.mrb[0].mxu0 %v1836
          %v2335 = vpop.f32.mrb[0].mxu0
          %v2336 = vadd.f32 %v2157, %v2335
          %v2337 = vpop.f32.mrb[0].mxu0
          %v2338 = vadd.f32 %v2159, %v2337
          %2339 = vmatprep.mubr.f32.mxu0 %v1841
          %2340 = vmatmul.mubr.f32.gmra.mrb[0].mxu0 %v1840
          %v2341 = vpop.f32.mrb[0].mxu0
          %v2342 = vadd.f32 %v2163, %v2341
          %v2343 = vpop.f32.mrb[0].mxu0
          %v2344 = vadd.f32 %v2165, %v2343
          %2345 = vmatprep.mubr.f32.mxu0 %v1845
          %2346 = vmatmul.mubr.f32.gmra.mrb[0].mxu0 %v1844
          %v2347 = vpop.f32.mrb[0].mxu0
          %v2348 = vadd.f32 %v2169, %v2347
          %v2349 = vpop.f32.mrb[0].mxu0
          %v2350 = vadd.f32 %v2171, %v2349
          %2351 = vmatprep.mubr.f32.mxu0 %v1849
          %2352 = vmatmul.mubr.f32.gmra.mrb[0].mxu0 %v1848
          %v2353 = vpop.f32.mrb[0].mxu0
          %v2354 = vadd.f32 %v2175, %v2353
          %v2355 = vpop.f32.mrb[0].mxu0
          %v2356 = vadd.f32 %v2177, %v2355
          %2357 = vmatprep.mubr.f32.mxu0 %v1853
          %2358 = vmatmul.mubr.f32.gmra.mrb[0].mxu0 %v1852
          %v2359 = vpop.f32.mrb[0].mxu0
          %v2360 = vadd.f32 %v2181, %v2359
          %v2361 = vpop.f32.mrb[0].mxu0
          %v2362 = vadd.f32 %v2183, %v2361
          %2363 = vmatprep.mubr.f32.mxu0 %v1857
          %2364 = vmatmul.mubr.f32.gmra.mrb[0].mxu0 %v1856
          %v2365 = vpop.f32.mrb[0].mxu0
          %v2366 = vadd.f32 %v2187, %v2365
          %v2367 = vpop.f32.mrb[0].mxu0
          %v2368 = vadd.f32 %v2189, %v2367
          %2369 = vmatprep.mubr.f32.mxu0 %v1861
          %2370 = vmatmul.mubr.f32.gmra.mrb[0].mxu0 %v1860
          %v2371 = vpop.f32.mrb[0].mxu0
          %v2372 = vadd.f32 %v2193, %v2371
          %v2373 = vpop.f32.mrb[0].mxu0
          %v2374 = vadd.f32 %v2195, %v2373
          %2375 = vmatprep.mubr.f32.mxu0 %v1865
          %2376 = vmatmul.mubr.f32.gmra.mrb[0].mxu0 %v1864
          %v2377 = vpop.f32.mrb[0].mxu0
          %v2378 = vadd.f32 %v2199, %v2377
          %v2379 = vpop.f32.mrb[0].mxu0
          %v2380 = vadd.f32 %v2201, %v2379
          %2381 = vmatprep.mubr.f32.mxu0 %v1869
          %2382 = vmatmul.mubr.f32.gmra.mrb[0].mxu0 %v1868
          %v2383 = vpop.f32.mrb[0].mxu0
          %v2384 = vadd.f32 %v2205, %v2383
          %v2385 = vpop.f32.mrb[0].mxu0
          %v2386 = vadd.f32 %v2207, %v2385
          %2387 = vmatprep.mubr.f32.mxu0 %v1873
          %2388 = vmatmul.mubr.f32.gmra.mrb[0].mxu0 %v1872
          %v2389 = vpop.f32.mrb[0].mxu0
          %v2390 = vadd.f32 %v2211, %v2389
          %v2391 = vpop.f32.mrb[0].mxu0
          %v2392 = vadd.f32 %v2213, %v2391
          %2393 = vmatprep.mubr.f32.mxu0 %v1877
          %2394 = vmatmul.mubr.f32.gmra.mrb[0].mxu0 %v1876
          %v2395 = vpop.f32.mrb[0].mxu0
          %v2396 = vadd.f32 %v2217, %v2395
          %v2397 = vpop.f32.mrb[0].mxu0
          %v2398 = vadd.f32 %v2219, %v2397
          %2399 = vmatprep.mubr.f32.mxu0 %v1881
          %2400 = vmatmul.mubr.f32.gmra.mrb[0].mxu0 %v1880
          %v2401 = vpop.f32.mrb[0].mxu0
          %v2402 = vadd.f32 %v2223, %v2401
          %v2403 = vpop.f32.mrb[0].mxu0
          %v2404 = vadd.f32 %v2225, %v2403
          %2405 = vdwg.mxu0
          %v2406 = vadd.f32 %v1882, %v2294
          %v2407 = vadd.f32 %v1883, %v2296
          %v2408 = vadd.f32 %v1884, %v2300
          %v2409 = vadd.f32 %v1885, %v2302
          %v2410 = vadd.f32 %v1886, %v2306
          %v2411 = vadd.f32 %v1887, %v2308
          %v2412 = vadd.f32 %v1888, %v2312
          %v2413 = vadd.f32 %v1889, %v2314
          %v2414 = vadd.f32 %v1890, %v2318
          %v2415 = vadd.f32 %v1891, %v2320
          %v2416 = vadd.f32 %v1892, %v2324
          %v2417 = vadd.f32 %v1893, %v2326
          %v2418 = vadd.f32 %v1894, %v2330
          %v2419 = vadd.f32 %v1895, %v2332
          %v2420 = vadd.f32 %v1896, %v2336
          %v2421 = vadd.f32 %v1897, %v2338
          %v2422 = vadd.f32 %v1898, %v2342
          %v2423 = vadd.f32 %v1899, %v2344
          %v2424 = vadd.f32 %v1900, %v2348
          %v2425 = vadd.f32 %v1901, %v2350
          %v2426 = vadd.f32 %v1902, %v2354
          %v2427 = vadd.f32 %v1903, %v2356
          %v2428 = vadd.f32 %v1904, %v2360
          %v2429 = vadd.f32 %v1905, %v2362
          %v2430 = vadd.f32 %v1906, %v2366
          %v2431 = vadd.f32 %v1907, %v2368
          %v2432 = vadd.f32 %v1908, %v2372
          %v2433 = vadd.f32 %v1909, %v2374
          %v2434 = vadd.f32 %v1910, %v2378
          %v2435 = vadd.f32 %v1911, %v2380
          %v2436 = vadd.f32 %v1912, %v2384
          %v2437 = vadd.f32 %v1913, %v2386
          %v2438 = vadd.f32 %v1914, %v2390
          %v2439 = vadd.f32 %v1915, %v2392
          %v2440 = vadd.f32 %v1916, %v2396
          %v2441 = vadd.f32 %v1917, %v2398
          %v2442 = vadd.f32 %v1918, %v2402
          %v2443 = vadd.f32 %v1919, %v2404
          %2444 = vst [vmem:[#allocation2] sm:$0xff] %v2406
          %2445 = vst [vmem:[#allocation2 + $0x8] sm:$0xff] %v2407
          %2446 = vst [vmem:[#allocation2 + $0x10] sm:$0xff] %v2408
          %2447 = vst [vmem:[#allocation2 + $0x18] sm:$0xff] %v2409
          %2448 = vst [vmem:[#allocation2 + $0x20] sm:$0xff] %v2410
          %2449 = vst [vmem:[#allocation2 + $0x28] sm:$0xff] %v2411
          %2450 = vst [vmem:[#allocation2 + $0x30] sm:$0xff] %v2412
          %2451 = vst [vmem:[#allocation2 + $0x38] sm:$0xff] %v2413
          %2452 = vst [vmem:[#allocation2 + $0x40] sm:$0xff] %v2414
          %2453 = vst [vmem:[#allocation2 + $0x48] sm:$0xff] %v2415
          %2454 = vst [vmem:[#allocation2 + $0x50] sm:$0xff] %v2416
          %2455 = vst [vmem:[#allocation2 + $0x58] sm:$0xff] %v2417
          %2456 = vst [vmem:[#allocation2 + $0x60] sm:$0xff] %v2418
          %2457 = vst [vmem:[#allocation2 + $0x68] sm:$0xff] %v2419
          %2458 = vst [vmem:[#allocation2 + $0x70] sm:$0xff] %v2420
          %2459 = vst [vmem:[#allocation2 + $0x78] sm:$0xff] %v2421
          %2460 = vst [vmem:[#allocation2 + $0x80] sm:$0xff] %v2422
          %2461 = vst [vmem:[#allocation2 + $0x88] sm:$0xff] %v2423
          %2462 = vst [vmem:[#allocation2 + $0x90] sm:$0xff] %v2424
          %2463 = vst [vmem:[#allocation2 + $0x98] sm:$0xff] %v2425
          %2464 = vst [vmem:[#allocation2 + $0xa0] sm:$0xff] %v2426
          %2465 = vst [vmem:[#allocation2 + $0xa8] sm:$0xff] %v2427
          %2466 = vst [vmem:[#allocation2 + $0xb0] sm:$0xff] %v2428
          %2467 = vst [vmem:[#allocation2 + $0xb8] sm:$0xff] %v2429
          %2468 = vst [vmem:[#allocation2 + $0xc0] sm:$0xff] %v2430
          %2469 = vst [vmem:[#allocation2 + $0xc8] sm:$0xff] %v2431
          %2470 = vst [vmem:[#allocation2 + $0xd0] sm:$0xff] %v2432
          %2471 = vst [vmem:[#allocation2 + $0xd8] sm:$0xff] %v2433
          %2472 = vst [vmem:[#allocation2 + $0xe0] sm:$0xff] %v2434
          %2473 = vst [vmem:[#allocation2 + $0xe8] sm:$0xff] %v2435
          %2474 = vst [vmem:[#allocation2 + $0xf0] sm:$0xff] %v2436
          %2475 = vst [vmem:[#allocation2 + $0xf8] sm:$0xff] %v2437
          %2476 = vst [vmem:[#allocation2 + $0x100] sm:$0xff] %v2438
          %2477 = vst [vmem:[#allocation2 + $0x108] sm:$0xff] %v2439
          %2478 = vst [vmem:[#allocation2 + $0x110] sm:$0xff] %v2440
          %2479 = vst [vmem:[#allocation2 + $0x118] sm:$0xff] %v2441
          %2480 = vst [vmem:[#allocation2 + $0x120] sm:$0xff] %v2442
          %2481 = vst [vmem:[#allocation2 + $0x128] sm:$0xff] %v2443
        $region72: #{tpu_custom_call.1} parent=35 // pred_fallthru
          _
        %p2482 = scmp.eq.s32.totalorder %s34, 5
        // Predicated region
        $region73: #{tpu_custom_call.1} parent=35 // pred_check
          %p2483 = pneg %p2482
        $region74: #{tpu_custom_call.1} parent=35 // pred_check_branch
          %2485 = sbr.rel (%p2483) target = $region76
        $region75: #{tpu_custom_call.1} parent=35 // pred_region
          %v2486 = vld [vmem:[#allocation2] sm:$0xff]
          %v2487 = vld [vmem:[#allocation2 + $0x8] sm:$0xff]
          %v2488 = vld [vmem:[#allocation2 + $0x10] sm:$0xff]
          %v2489 = vld [vmem:[#allocation2 + $0x18] sm:$0xff]
          %v2490 = vld [vmem:[#allocation2 + $0x20] sm:$0xff]
          %v2491 = vld [vmem:[#allocation2 + $0x28] sm:$0xff]
          %v2492 = vld [vmem:[#allocation2 + $0x30] sm:$0xff]
          %v2493 = vld [vmem:[#allocation2 + $0x38] sm:$0xff]
          %v2494 = vld [vmem:[#allocation2 + $0x40] sm:$0xff]
          %v2495 = vld [vmem:[#allocation2 + $0x48] sm:$0xff]
          %v2496 = vld [vmem:[#allocation2 + $0x50] sm:$0xff]
          %v2497 = vld [vmem:[#allocation2 + $0x58] sm:$0xff]
          %v2498 = vld [vmem:[#allocation2 + $0x60] sm:$0xff]
          %v2499 = vld [vmem:[#allocation2 + $0x68] sm:$0xff]
          %v2500 = vld [vmem:[#allocation2 + $0x70] sm:$0xff]
          %v2501 = vld [vmem:[#allocation2 + $0x78] sm:$0xff]
          %v2502 = vld [vmem:[#allocation2 + $0x80] sm:$0xff]
          %v2503 = vld [vmem:[#allocation2 + $0x88] sm:$0xff]
          %v2504 = vld [vmem:[#allocation2 + $0x90] sm:$0xff]
          %v2505 = vld [vmem:[#allocation2 + $0x98] sm:$0xff]
          %v2506 = vld [vmem:[#allocation2 + $0xa0] sm:$0xff]
          %v2507 = vld [vmem:[#allocation2 + $0xa8] sm:$0xff]
          %v2508 = vld [vmem:[#allocation2 + $0xb0] sm:$0xff]
          %v2509 = vld [vmem:[#allocation2 + $0xb8] sm:$0xff]
          %v2510 = vld [vmem:[#allocation2 + $0xc0] sm:$0xff]
          %v2511 = vld [vmem:[#allocation2 + $0xc8] sm:$0xff]
          %v2512 = vld [vmem:[#allocation2 + $0xd0] sm:$0xff]
          %v2513 = vld [vmem:[#allocation2 + $0xd8] sm:$0xff]
          %v2514 = vld [vmem:[#allocation2 + $0xe0] sm:$0xff]
          %v2515 = vld [vmem:[#allocation2 + $0xe8] sm:$0xff]
          %v2516 = vld [vmem:[#allocation2 + $0xf0] sm:$0xff]
          %v2517 = vld [vmem:[#allocation2 + $0xf8] sm:$0xff]
          %v2518 = vld [vmem:[#allocation2 + $0x100] sm:$0xff]
          %v2519 = vld [vmem:[#allocation2 + $0x108] sm:$0xff]
          %v2520 = vld [vmem:[#allocation2 + $0x110] sm:$0xff]
          %v2521 = vld [vmem:[#allocation2 + $0x118] sm:$0xff]
          %v2522 = vld [vmem:[#allocation2 + $0x120] sm:$0xff]
          %v2523 = vld [vmem:[#allocation2 + $0x128] sm:$0xff]
          %v2524 = vld [vmem:[%s407] sm:$0x3]
          %v2526 = vlaneseq
          %v2527 = vshrl.u32 %v2526, 7
          %v2528 = vsub.s32 0, %v2527
          %v2529 = vrot.slane %v2524, %v2528
          %v2530 = vlaneseq
          %v2531 = vshrl.u32 %v2530, 7
          %v2532 = vsub.s32 1, %v2531
          %v2533 = vrot.slane %v2524, %v2532
          %v2536 = vadd.f32 %v2486, %v2529
          %v2537 = vadd.f32 %v2487, %v2533
          %v2538 = vadd.f32 %v2488, %v2529
          %v2539 = vadd.f32 %v2489, %v2533
          %v2540 = vadd.f32 %v2490, %v2529
          %v2541 = vadd.f32 %v2491, %v2533
          %v2542 = vadd.f32 %v2492, %v2529
          %v2543 = vadd.f32 %v2493, %v2533
          %v2544 = vadd.f32 %v2494, %v2529
          %v2545 = vadd.f32 %v2495, %v2533
          %v2546 = vadd.f32 %v2496, %v2529
          %v2547 = vadd.f32 %v2497, %v2533
          %v2548 = vadd.f32 %v2498, %v2529
          %v2549 = vadd.f32 %v2499, %v2533
          %v2550 = vadd.f32 %v2500, %v2529
          %v2551 = vadd.f32 %v2501, %v2533
          %v2552 = vadd.f32 %v2502, %v2529
          %v2553 = vadd.f32 %v2503, %v2533
          %v2554 = vadd.f32 %v2504, %v2529
          %v2555 = vadd.f32 %v2505, %v2533
          %v2556 = vadd.f32 %v2506, %v2529
          %v2557 = vadd.f32 %v2507, %v2533
          %v2558 = vadd.f32 %v2508, %v2529
          %v2559 = vadd.f32 %v2509, %v2533
          %v2560 = vadd.f32 %v2510, %v2529
          %v2561 = vadd.f32 %v2511, %v2533
          %v2562 = vadd.f32 %v2512, %v2529
          %v2563 = vadd.f32 %v2513, %v2533
          %v2564 = vadd.f32 %v2514, %v2529
          %v2565 = vadd.f32 %v2515, %v2533
          %v2566 = vadd.f32 %v2516, %v2529
          %v2567 = vadd.f32 %v2517, %v2533
          %v2568 = vadd.f32 %v2518, %v2529
          %v2569 = vadd.f32 %v2519, %v2533
          %v2570 = vadd.f32 %v2520, %v2529
          %v2571 = vadd.f32 %v2521, %v2533
          %v2572 = vadd.f32 %v2522, %v2529
          %v2573 = vadd.f32 %v2523, %v2533
          %2574 = vst [vmem:[%s446] sm:$0xff] %v2536
          %2575 = vst [vmem:[%s446 + $0x8] sm:$0xff] %v2537
          %2576 = vst [vmem:[%s446 + $0x10] sm:$0xff] %v2538
          %2577 = vst [vmem:[%s446 + $0x18] sm:$0xff] %v2539
          %2578 = vst [vmem:[%s446 + $0x20] sm:$0xff] %v2540
          %2579 = vst [vmem:[%s446 + $0x28] sm:$0xff] %v2541
          %2580 = vst [vmem:[%s446 + $0x30] sm:$0xff] %v2542
          %2581 = vst [vmem:[%s446 + $0x38] sm:$0xff] %v2543
          %2582 = vst [vmem:[%s446 + $0x40] sm:$0xff] %v2544
          %2583 = vst [vmem:[%s446 + $0x48] sm:$0xff] %v2545
          %2584 = vst [vmem:[%s446 + $0x50] sm:$0xff] %v2546
          %2585 = vst [vmem:[%s446 + $0x58] sm:$0xff] %v2547
          %2586 = vst [vmem:[%s446 + $0x60] sm:$0xff] %v2548
          %2587 = vst [vmem:[%s446 + $0x68] sm:$0xff] %v2549
          %2588 = vst [vmem:[%s446 + $0x70] sm:$0xff] %v2550
          %2589 = vst [vmem:[%s446 + $0x78] sm:$0xff] %v2551
          %2590 = vst [vmem:[%s446 + $0x80] sm:$0xff] %v2552
          %2591 = vst [vmem:[%s446 + $0x88] sm:$0xff] %v2553
          %2592 = vst [vmem:[%s446 + $0x90] sm:$0xff] %v2554
          %2593 = vst [vmem:[%s446 + $0x98] sm:$0xff] %v2555
          %2594 = vst [vmem:[%s446 + $0xa0] sm:$0xff] %v2556
          %2595 = vst [vmem:[%s446 + $0xa8] sm:$0xff] %v2557
          %2596 = vst [vmem:[%s446 + $0xb0] sm:$0xff] %v2558
          %2597 = vst [vmem:[%s446 + $0xb8] sm:$0xff] %v2559
          %2598 = vst [vmem:[%s446 + $0xc0] sm:$0xff] %v2560
          %2599 = vst [vmem:[%s446 + $0xc8] sm:$0xff] %v2561
          %2600 = vst [vmem:[%s446 + $0xd0] sm:$0xff] %v2562
          %2601 = vst [vmem:[%s446 + $0xd8] sm:$0xff] %v2563
          %2602 = vst [vmem:[%s446 + $0xe0] sm:$0xff] %v2564
          %2603 = vst [vmem:[%s446 + $0xe8] sm:$0xff] %v2565
          %2604 = vst [vmem:[%s446 + $0xf0] sm:$0xff] %v2566
          %2605 = vst [vmem:[%s446 + $0xf8] sm:$0xff] %v2567
          %2606 = vst [vmem:[%s446 + $0x100] sm:$0xff] %v2568
          %2607 = vst [vmem:[%s446 + $0x108] sm:$0xff] %v2569
          %2608 = vst [vmem:[%s446 + $0x110] sm:$0xff] %v2570
          %2609 = vst [vmem:[%s446 + $0x118] sm:$0xff] %v2571
          %2610 = vst [vmem:[%s446 + $0x120] sm:$0xff] %v2572
          %2611 = vst [vmem:[%s446 + $0x128] sm:$0xff] %v2573
        $region76: #{tpu_custom_call.1} parent=35 // pred_fallthru
          _
        %s2612 = sand.u32 %s222, 1
        %s2613 = scalar_lea.sflag [#allocation7], %s2612
        %s2614 = sand.u32 %s222, 1
        %s2615 = smul.addr %s2614, 304
        %s2616 = scalar_lea.vmem [#allocation13], %s2615
        // Predicated region
        $region77: #{tpu_custom_call.1} parent=35 // pred_check
          %p2617 = pneg %p232
        $region78: #{tpu_custom_call.1} parent=35 // pred_check_branch
          %2619 = sbr.rel (%p2617) target = $region80
        $region79: #{tpu_custom_call.1} parent=35 // pred_region
          %s2620 = smul.u32 19, %s32
          %s2621 = smul.u32 2, %s33
          %s2623 = ssub.s32 4864, 4864
          %2624 = vsyncadd %s2613, %s2623
          %s2625 = smul.addr %s2620, 4
          %s2626 = sadd.s32 %s2621, %s2625
          %s2627 = smul.addr %s2626, 128
          %s2628 = scalar_lea.hbm %s4, %s2627
          %s2629 = sshll.u32 %s2616, 4
          %s2630 = int_to_ptr.vmem [resolvable:$true] %s2629
          %2635 = dma.vmem_to_hbm [thread:$0]  %s2630, 4864, %s2628, %s2613, 256, 512, 16
        $region80: #{tpu_custom_call.1} parent=35 // pred_fallthru
          _
      $region36: #{tpu_custom_call.1} parent=5 // pred_fallthru
        _
      %p2636 = scmp.le.s32.totalorder 2, %s22
      // Predicated region
      $region81: #{tpu_custom_call.1} parent=5 // pred_check
        %p2637 = pneg %p2636
      $region82: #{tpu_custom_call.1} parent=5 // pred_check_branch
        %2639 = sbr.rel (%p2637) target = $region84
      $region83: #{tpu_custom_call.1} parent=5 // pred_region
        %s2640 = ssub.s32 %s22, 2
        // Predicated region
        $region85: #{tpu_custom_call.1} parent=83 // pred_check
          %p2641 = pneg %p238
        $region86: #{tpu_custom_call.1} parent=83 // pred_check_branch
          %2643 = sbr.rel (%p2641) target = $region88
        $region87: #{tpu_custom_call.1} parent=83 // pred_region
          %s2644 = sand.u32 %s223, 1
          %s2645 = scalar_lea.sflag [#allocation7], %s2644
          %s2646 = sand.u32 %s223, 1
          %s2647 = smul.addr %s2646, 304
          %s2648 = scalar_lea.vmem [#allocation13], %s2647
          %2649 = dma.done %s2645, 4864
        $region88: #{tpu_custom_call.1} parent=83 // pred_fallthru
          _
      $region84: #{tpu_custom_call.1} parent=5 // pred_fallthru
        _
    $region6: #{tpu_custom_call.1} parent=1 // loop_footer
      %s26 = sadd.s32 1, %s22
    $region7: #{tpu_custom_call.1} parent=1 // loop_footer_branch
      %21 = sbr.rel target = $region3
    $region8: #{tpu_custom_call.1} parent=1 // loop_exit
      _
    %2650 = vsyncpa [#allocation6], 1
    %s2651 = scalar_lea.sflag [#allocation6], 1
    %2652 = vsyncpa %s2651, 1
    %2653 = vsyncpa [#allocation9], 1
    %s2654 = scalar_lea.sflag [#allocation9], 1
    %2655 = vsyncpa %s2654, 1
    %2656 = vsyncpa [#allocation12], 1
    %s2657 = scalar_lea.sflag [#allocation12], 1
    %2658 = vsyncpa %s2657, 1
    %2659 = vsyncpa [#allocation7], 1
    %s2660 = scalar_lea.sflag [#allocation7], 1
    %2661 = vsyncpa %s2660, 1

</llo_original>
